<compile_context>
chip_gen: v6e
topology: v6e:2x2x1
jax: 0.10.0
libtpu: 0.0.40
codegen_flags: <defaults>
</compile_context>

<pallas_src>
import numpy as np
import jax
import jax.numpy as jnp
from jax.experimental import pallas as pl
from jax.experimental.pallas import tpu as pltpu

_PREC = jax.lax.Precision.HIGHEST   # plain-JAX (reference / wrapper) einsums only


def _round_up(x: int, m: int) -> int:
    return ((x + m - 1) // m) * m


# ----------------------------------------------------------------------------
# Bilinear 2x upsampling matrix, align_corners=True (nn.UpsamplingBilinear2d)
# ----------------------------------------------------------------------------
def _upsample_matrix_np(n_in: int) -> np.ndarray:
    """(2*n_in, n_in) interpolation matrix matching UpsamplingBilinear2d(scale=2)."""
    n_out = 2 * n_in
    if n_in == 1:
        return np.ones((n_out, 1), dtype=np.float32)
    scale = (n_in - 1) / (n_out - 1)                  # align_corners=True mapping
    src = np.arange(n_out, dtype=np.float64) * scale
    lo = np.minimum(np.floor(src).astype(np.int64), n_in - 1)
    hi = np.minimum(lo + 1, n_in - 1)
    frac = (src - lo).astype(np.float32)
    m = np.zeros((n_out, n_in), dtype=np.float32)
    m[np.arange(n_out), lo] += (1.0 - frac)
    m[np.arange(n_out), hi] += frac
    return m


# ----------------------------------------------------------------------------
# Pallas kernel: fused, H-tiled, nested bilinear-upsample + branch-sum (NCHW).
#   out_tile = Up_0( y_0[band_0] + Up_1( y_1[band_1] + ... Up_{nb-1}( y_{nb-1}[band] )))
# with per-tile banded H-interpolation matrices (static halos) and bf16 MXU matmuls.
# ----------------------------------------------------------------------------
def _make_decoder_kernel(num_branches: int, band_sizes):
    nb = num_branches

    def kernel(offs_ref, *refs):
        y_refs = refs[:nb]                    # (1, C, h_i, w_i) f32, resident per image
        mh_refs = refs[nb:2 * nb]             # (1, R_i, B_i) bf16, per-tile banded
        mwt_refs = refs[2 * nb:3 * nb]        # (w_i, 2*w_i) bf16
        out_ref = refs[-1]                    # (1, C, TILE_H, W) f32
        t = pl.program_id(1)

        def y_band(i):
            full_h = y_refs[i].shape[2]
            if band_sizes[i] == full_h:       # coarse level: whole height needed
                return y_refs[i][0].astype(jnp.float32)
            lo = offs_ref[i, t]               # 8-row-aligned static-per-tile offset
            return y_refs[i][0, :, pl.ds(lo, band_sizes[i]), :].astype(jnp.float32)

        def up2x(x, mh, mwt):
            # x: (C, B, w) f32.  mh: (R, B) bf16 banded.  mwt: (w, 2w) bf16. -> (C, R, 2w) f32
            c, b, w = x.shape
            r = mh.shape[0]
            w2 = mwt.shape[1]
            # H-stage: channel-batched MXU matmul on the small banded matrix.
            mh_b = jnp.broadcast_to(mh, (c, r, b))
            hx = jax.lax.dot_general(
                mh_b, x.astype(jnp.bfloat16),
                dimension_numbers=(((2,), (1,)), ((0,), (0,))),
                preferred_element_type=jnp.float32)                 # (c, r, w)
            # W-stage: flat lane-dense matmul (only leading dims are merged/split).
            wx = jnp.dot(hx.reshape(c * r, w).astype(jnp.bfloat16), mwt,
                         preferred_element_type=jnp.float32)        # (c*r, 2w)
            return wx.reshape(c, r, w2)

        # Nested accumulation, coarsest branch first, f32 accumulators.
        acc = y_band(nb - 1)
        for i in range(nb - 2, -1, -1):
            acc = y_band(i) + up2x(acc, mh_refs[i + 1][0], mwt_refs[i + 1][...])
        out = up2x(acc, mh_refs[0][0], mwt_refs[0][...])             # (C, TILE_H, W)
        out_ref[...] = out.reshape(out_ref.shape).astype(out_ref.dtype)

    return kernel


def al_decoder_auxiliary(skips, conv_weights, conv_bias, out_channels, tile_h=None):
    """skips[i]:        (N, 2**i * base_channels, H/2**(i+1), W/2**(i+1))  NCHW
       conv_weights[i]: (out_channels, C_i)   (PyTorch 1x1 conv weight squeezed)
       conv_bias:       (out_channels,)       (only branch 1 has a bias)
    """
    nb = len(skips)
    n = skips[0].shape[0]
    H = skips[0].shape[2] * 2
    W = skips[0].shape[3] * 2

    if tile_h is None:
        tile_h = H
        for cand in (128, 64, 32, 16, 8):
            if cand <= H and H % cand == 0:
                tile_h = cand
                break
    assert H % tile_h == 0, "tile_h must divide the output height"
    assert tile_h == H or tile_h % 8 == 0, "tile_h must be a multiple of 8"
    n_t = H // tile_h
    # NOTE: for lane-dense output stores, W should be a multiple of 128 (pad upstream
    # if it is not); correctness does not depend on it.

    # --- conv-first reorder: 1x1 conv (+ bias for branch 1) at native resolution.
    #     Tiny per-pixel matmuls; left to XLA.  Kept f32 (see TODO in header).
    ys = []
    for i, (s, w) in enumerate(zip(skips, conv_weights)):
        y = jnp.einsum('nchw,oc->nohw', s.astype(jnp.float32),
                       w.astype(jnp.float32), precision=_PREC)
        if i == 0:
            y = y + conv_bias.astype(jnp.float32).reshape(1, -1, 1, 1)
        ys.append(y)

    # --- static banding: per level i and output-row tile t, the input rows the tile
    #     depends on (derived from the actual nonzero pattern of the interp matrices,
    #     so halos are exact supersets by construction).
    mh_full = [_upsample_matrix_np(H >> (i + 1)) for i in range(nb)]
    band_lo = np.zeros((nb, n_t), dtype=np.int32)
    band_sz = [0] * nb
    mh_bands = []
    prev_lo = np.arange(n_t, dtype=np.int64) * tile_h     # level-0 output rows per tile
    prev_rows = tile_h
    for i in range(nb):
        h_in = H >> (i + 1)
        los = np.zeros(n_t, dtype=np.int64)
        his = np.zeros(n_t, dtype=np.int64)
        for t in range(n_t):
            rows = mh_full[i][int(prev_lo[t]): int(prev_lo[t]) + prev_rows]
            nz = np.nonzero(np.any(rows != 0.0, axis=0))[0]
            los[t], his[t] = int(nz.min()), int(nz.max())
        needed = int((his - los).max()) + 1
        bsz = min(h_in, _round_up(needed + 7, 8)) if h_in >= 8 else h_in
        lo = np.maximum(np.minimum((los // 8) * 8, h_in - bsz), 0)
        assert np.all(lo <= los) and np.all(lo + bsz > his), "band does not cover halo"
        band_lo[i, :] = lo.astype(np.int32)
        band_sz[i] = bsz
        mh_bands.append(np.stack(
            [mh_full[i][int(prev_lo[t]): int(prev_lo[t]) + prev_rows,
                        int(lo[t]): int(lo[t]) + bsz] for t in range(n_t)]))
        prev_lo, prev_rows = lo, bsz

    mh_args = [jnp.asarray(m, dtype=jnp.bfloat16) for m in mh_bands]
    mwt_args = [jnp.asarray(_upsample_matrix_np(W >> (i + 1)).T, dtype=jnp.bfloat16)
                for i in range(nb)]

    in_specs = []
    args = []
    for y in ys:
        c, hh, ww = y.shape[1], y.shape[2], y.shape[3]
        # resident across the tile axis (index_map ignores t) -> fetched once per image
        in_specs.append(pl.BlockSpec((1, c, hh, ww), lambda b, t, offs: (b, 0, 0, 0)))
        args.append(y)
    for m in mh_args:
        in_specs.append(pl.BlockSpec((1,) + m.shape[1:], lambda b, t, offs: (t, 0, 0)))
        args.append(m)
    for m in mwt_args:
        in_specs.append(pl.BlockSpec(m.shape, lambda b, t, offs: (0, 0)))
        args.append(m)

    out = pl.pallas_call(
        _make_decoder_kernel(nb, tuple(band_sz)),
        out_shape=jax.ShapeDtypeStruct((n, out_channels, H, W), jnp.float32),
        grid_spec=pltpu.PrefetchScalarGridSpec(
            num_scalar_prefetch=1,                       # per-(level, tile) row offsets
            grid=(n, n_t),
            in_specs=in_specs,
            out_specs=pl.BlockSpec((1, out_channels, tile_h, W),
                                   lambda b, t, offs: (b, 0, t, 0)),
        ),
        compiler_params=pltpu.CompilerParams(
            dimension_semantics=("parallel", "parallel"),
            vmem_limit_bytes=48 * 1024 * 1024),
    )(jnp.asarray(band_lo), *args)
    return out


# ----------------------------------------------------------------------------
# Pure-JAX reference in the ORIGINAL PyTorch order (upsample i times, then conv).
# ----------------------------------------------------------------------------
def _upsample2x_ref(x):
    _, _, h, w = x.shape
    mh = jnp.asarray(_upsample_matrix_np(h))
    mw = jnp.asarray(_upsample_matrix_np(w))
    x = jnp.einsum('oh,nchw->ncow', mh, x, precision=_PREC)
    x = jnp.einsum('pw,ncow->ncop', mw, x, precision=_PREC)
    return x


def _reference(skips, conv_weights, conv_bias):
    out = None
    for i, (s, w) in enumerate(zip(skips, conv_weights)):
        x = s.astype(jnp.float32)
        for _ in range(i + 1):
            x = _upsample2x_ref(x)
        y = jnp.einsum('nchw,oc->nohw', x, w.astype(jnp.float32), precision=_PREC)
        if i == 0:
            y = y + conv_bias.astype(jnp.float32).reshape(1, -1, 1, 1)
        out = y if out is None else out + y
    return out


if __name__ == "__main__":
    out_channels = 16
    base_channels = 8
    num_branches = 4
    N, H, W = 2, 64, 128
    TILE_H = 16          # 4 row-tiles -> exercises the banded/halo path

    key = jax.random.PRNGKey(0)
    keys = jax.random.split(key, 2 * num_branches + 1)

    def q(x):
        # Keep test data exactly representable in bf16 so the kernel's bf16 MXU
        # operands only round intermediate (accumulated) values.
        return x.astype(jnp.bfloat16).astype(jnp.float32)

    skips, conv_weights = [], []
    for i in range(num_branches):
        c_in = (2 ** i) * base_channels
        h = H // (2 ** (i + 1))
        w = W // (2 ** (i + 1))
        skips.append(q(jax.random.normal(keys[i], (N, c_in, h, w), jnp.float32)))
        conv_weights.append(
            q(0.05 * jax.random.normal(keys[num_branches + i],
                                       (out_channels, c_in), jnp.float32)))
    conv_bias = q(0.1 * jax.random.normal(keys[-1], (out_channels,), jnp.float32))

    fn = jax.jit(lambda sk, ws, b: al_decoder_auxiliary(sk, ws, b, out_channels,
                                                        tile_h=TILE_H))
    out = jax.block_until_ready(fn(skips, conv_weights, conv_bias))

    ref = jax.block_until_ready(_reference(skips, conv_weights, conv_bias))
    assert out.shape == (N, out_channels, H, W)
    # Tolerance covers the intended bf16 MXU operands (f32 accumulation) and the
    # reassociated conv-first / nested-upsample math; real bugs give O(0.1..1) errors.
    np.testing.assert_allclose(np.asarray(out), np.asarray(ref), rtol=2e-2, atol=2e-2)

    print("KERNEL_OK")
</pallas_src>

<mosaic_0001>
module attributes {stable_mosaic.version = 11 : i64} {
  func.func @kernel(%arg0: i32, %arg1: i32, %arg2: memref<4x4xi32, #tpu.memory_space<smem>>, %arg3: memref<1x16x32x64xf32, #tpu.memory_space<vmem>>, %arg4: memref<1x16x16x32xf32, #tpu.memory_space<vmem>>, %arg5: memref<1x16x8x16xf32, #tpu.memory_space<vmem>>, %arg6: memref<1x16x4x8xf32, #tpu.memory_space<vmem>>, %arg7: memref<1x16x24xbf16, #tpu.memory_space<vmem>>, %arg8: memref<1x24x16xbf16, #tpu.memory_space<vmem>>, %arg9: memref<1x16x8xbf16, #tpu.memory_space<vmem>>, %arg10: memref<1x8x4xbf16, #tpu.memory_space<vmem>>, %arg11: memref<64x128xbf16, #tpu.memory_space<vmem>>, %arg12: memref<32x64xbf16, #tpu.memory_space<vmem>>, %arg13: memref<16x32xbf16, #tpu.memory_space<vmem>>, %arg14: memref<8x16xbf16, #tpu.memory_space<vmem>>, %arg15: memref<1x16x16x128xf32, #tpu.memory_space<vmem>>) attributes {dimension_semantics = [#tpu.dimension_semantics<parallel>, #tpu.dimension_semantics<parallel>], iteration_bounds = array<i64: 2, 4>, scalar_prefetch = 1 : i64, scratch_operands = 0 : i64, tpu.core_type = #tpu.core_type<tc>, window_params = [{transform_indices = @transform_0, window_bounds = array<i64: 1, 16, 32, 64>}, {transform_indices = @transform_1, window_bounds = array<i64: 1, 16, 16, 32>}, {transform_indices = @transform_2, window_bounds = array<i64: 1, 16, 8, 16>}, {transform_indices = @transform_3, window_bounds = array<i64: 1, 16, 4, 8>}, {transform_indices = @transform_4, window_bounds = array<i64: 1, 16, 24>}, {transform_indices = @transform_5, window_bounds = array<i64: 1, 24, 16>}, {transform_indices = @transform_6, window_bounds = array<i64: 1, 16, 8>}, {transform_indices = @transform_7, window_bounds = array<i64: 1, 8, 4>}, {pipeline_mode = #tpu.pipeline_mode<synchronous>, transform_indices = @transform_8, window_bounds = array<i64: 64, 128>}, {pipeline_mode = #tpu.pipeline_mode<synchronous>, transform_indices = @transform_9, window_bounds = array<i64: 32, 64>}, {pipeline_mode = #tpu.pipeline_mode<synchronous>, transform_indices = @transform_10, window_bounds = array<i64: 16, 32>}, {pipeline_mode = #tpu.pipeline_mode<synchronous>, transform_indices = @transform_11, window_bounds = array<i64: 8, 16>}, {transform_indices = @transform_12, window_bounds = array<i64: 1, 16, 16, 128>}]} {
    %c0 = arith.constant 0 : index
    %c0_0 = arith.constant 0 : index
    %c0_1 = arith.constant 0 : index
    %c0_2 = arith.constant 0 : index
    %0 = vector.load %arg6[%c0, %c0_0, %c0_1, %c0_2] : memref<1x16x4x8xf32, #tpu.memory_space<vmem>>, vector<1x16x4x8xf32>
    %1 = vector.shape_cast %0 : vector<1x16x4x8xf32> to vector<16x4x8xf32>
    %c0_3 = arith.constant 0 : index
    %c0_4 = arith.constant 0 : index
    %c0_5 = arith.constant 0 : index
    %c0_6 = arith.constant 0 : index
    %2 = vector.load %arg5[%c0_3, %c0_4, %c0_5, %c0_6] : memref<1x16x8x16xf32, #tpu.memory_space<vmem>>, vector<1x16x8x16xf32>
    %3 = vector.shape_cast %2 : vector<1x16x8x16xf32> to vector<16x8x16xf32>
    %c0_7 = arith.constant 0 : index
    %c0_8 = arith.constant 0 : index
    %c0_9 = arith.constant 0 : index
    %4 = vector.load %arg10[%c0_7, %c0_8, %c0_9] : memref<1x8x4xbf16, #tpu.memory_space<vmem>>, vector<1x8x4xbf16>
    %5 = vector.shape_cast %4 : vector<1x8x4xbf16> to vector<8x4xbf16>
    %c0_10 = arith.constant 0 : index
    %c0_11 = arith.constant 0 : index
    %6 = vector.load %arg14[%c0_10, %c0_11] : memref<8x16xbf16, #tpu.memory_space<vmem>>, vector<8x16xbf16>
    %7 = vector.shape_cast %5 : vector<8x4xbf16> to vector<1x8x4xbf16>
    %8 = vector.broadcast %7 : vector<1x8x4xbf16> to vector<16x8x4xbf16>
    %9 = arith.truncf %1 : vector<16x4x8xf32> to vector<16x4x8xbf16>
    %cst = arith.constant dense<0.000000e+00> : vector<16x8x8xf32>
    %10 = tpu.matmul %8, %9, %cst {dimension_numbers = #tpu.dot_dimension_numbers<[2], [1], [1], [2], [0, 0, 0, 1, 1, 2], [0], [0]>} : vector<16x8x4xbf16>, vector<16x4x8xbf16>, vector<16x8x8xf32> -> vector<16x8x8xf32>
    %11 = vector.shape_cast %10 : vector<16x8x8xf32> to vector<128x8xf32>
    %12 = arith.truncf %11 : vector<128x8xf32> to vector<128x8xbf16>
    %cst_12 = arith.constant dense<0.000000e+00> : vector<128x16xf32>
    %13 = tpu.matmul %12, %6, %cst_12 {dimension_numbers = #tpu.dot_dimension_numbers<[1], [0], [0], [1], [0, 0, 1, 1], [], []>} : vector<128x8xbf16>, vector<8x16xbf16>, vector<128x16xf32> -> vector<128x16xf32>
    %14 = vector.shape_cast %13 : vector<128x16xf32> to vector<16x8x16xf32>
    %15 = arith.addf %3, %14 : vector<16x8x16xf32>
    %c0_13 = arith.constant 0 : index
    %c0_14 = arith.constant 0 : index
    %c0_15 = arith.constant 0 : index
    %c0_16 = arith.constant 0 : index
    %16 = vector.load %arg4[%c0_13, %c0_14, %c0_15, %c0_16] : memref<1x16x16x32xf32, #tpu.memory_space<vmem>>, vector<1x16x16x32xf32>
    %17 = vector.shape_cast %16 : vector<1x16x16x32xf32> to vector<16x16x32xf32>
    %c0_17 = arith.constant 0 : index
    %c0_18 = arith.constant 0 : index
    %c0_19 = arith.constant 0 : index
    %18 = vector.load %arg9[%c0_17, %c0_18, %c0_19] : memref<1x16x8xbf16, #tpu.memory_space<vmem>>, vector<1x16x8xbf16>
    %19 = vector.shape_cast %18 : vector<1x16x8xbf16> to vector<16x8xbf16>
    %c0_20 = arith.constant 0 : index
    %c0_21 = arith.constant 0 : index
    %20 = vector.load %arg13[%c0_20, %c0_21] : memref<16x32xbf16, #tpu.memory_space<vmem>>, vector<16x32xbf16>
    %21 = vector.shape_cast %19 : vector<16x8xbf16> to vector<1x16x8xbf16>
    %22 = vector.broadcast %21 : vector<1x16x8xbf16> to vector<16x16x8xbf16>
    %23 = arith.truncf %15 : vector<16x8x16xf32> to vector<16x8x16xbf16>
    %cst_22 = arith.constant dense<0.000000e+00> : vector<16x16x16xf32>
    %24 = tpu.matmul %22, %23, %cst_22 {dimension_numbers = #tpu.dot_dimension_numbers<[2], [1], [1], [2], [0, 0, 0, 1, 1, 2], [0], [0]>} : vector<16x16x8xbf16>, vector<16x8x16xbf16>, vector<16x16x16xf32> -> vector<16x16x16xf32>
    %25 = vector.shape_cast %24 : vector<16x16x16xf32> to vector<256x16xf32>
    %26 = arith.truncf %25 : vector<256x16xf32> to vector<256x16xbf16>
    %cst_23 = arith.constant dense<0.000000e+00> : vector<256x32xf32>
    %27 = tpu.matmul %26, %20, %cst_23 {dimension_numbers = #tpu.dot_dimension_numbers<[1], [0], [0], [1], [0, 0, 1, 1], [], []>} : vector<256x16xbf16>, vector<16x32xbf16>, vector<256x32xf32> -> vector<256x32xf32>
    %28 = vector.shape_cast %27 : vector<256x32xf32> to vector<16x16x32xf32>
    %29 = arith.addf %17, %28 : vector<16x16x32xf32>
    %c0_24 = arith.constant 0 : index
    %30 = arith.index_cast %arg1 : i32 to index
    %31 = memref.load %arg2[%c0_24, %30] : memref<4x4xi32, #tpu.memory_space<smem>>
    %c0_25 = arith.constant 0 : index
    %c0_26 = arith.constant 0 : index
    %32 = arith.index_cast %31 : i32 to index
    %c0_27 = arith.constant 0 : index
    %33 = vector.load %arg3[%c0_25, %c0_26, %32, %c0_27] : memref<1x16x32x64xf32, #tpu.memory_space<vmem>>, vector<1x16x24x64xf32>
    %34 = vector.shape_cast %33 : vector<1x16x24x64xf32> to vector<16x24x64xf32>
    %c0_28 = arith.constant 0 : index
    %c0_29 = arith.constant 0 : index
    %c0_30 = arith.constant 0 : index
    %35 = vector.load %arg8[%c0_28, %c0_29, %c0_30] : memref<1x24x16xbf16, #tpu.memory_space<vmem>>, vector<1x24x16xbf16>
    %36 = vector.shape_cast %35 : vector<1x24x16xbf16> to vector<24x16xbf16>
    %c0_31 = arith.constant 0 : index
    %c0_32 = arith.constant 0 : index
    %37 = vector.load %arg12[%c0_31, %c0_32] : memref<32x64xbf16, #tpu.memory_space<vmem>>, vector<32x64xbf16>
    %38 = vector.shape_cast %36 : vector<24x16xbf16> to vector<1x24x16xbf16>
    %39 = vector.broadcast %38 : vector<1x24x16xbf16> to vector<16x24x16xbf16>
    %40 = arith.truncf %29 : vector<16x16x32xf32> to vector<16x16x32xbf16>
    %cst_33 = arith.constant dense<0.000000e+00> : vector<16x24x32xf32>
    %41 = tpu.matmul %39, %40, %cst_33 {dimension_numbers = #tpu.dot_dimension_numbers<[2], [1], [1], [2], [0, 0, 0, 1, 1, 2], [0], [0]>} : vector<16x24x16xbf16>, vector<16x16x32xbf16>, vector<16x24x32xf32> -> vector<16x24x32xf32>
    %42 = vector.shape_cast %41 : vector<16x24x32xf32> to vector<384x32xf32>
    %43 = arith.truncf %42 : vector<384x32xf32> to vector<384x32xbf16>
    %cst_34 = arith.constant dense<0.000000e+00> : vector<384x64xf32>
    %44 = tpu.matmul %43, %37, %cst_34 {dimension_numbers = #tpu.dot_dimension_numbers<[1], [0], [0], [1], [0, 0, 1, 1], [], []>} : vector<384x32xbf16>, vector<32x64xbf16>, vector<384x64xf32> -> vector<384x64xf32>
    %45 = vector.shape_cast %44 : vector<384x64xf32> to vector<16x24x64xf32>
    %46 = arith.addf %34, %45 : vector<16x24x64xf32>
    %c0_35 = arith.constant 0 : index
    %c0_36 = arith.constant 0 : index
    %c0_37 = arith.constant 0 : index
    %47 = vector.load %arg7[%c0_35, %c0_36, %c0_37] : memref<1x16x24xbf16, #tpu.memory_space<vmem>>, vector<1x16x24xbf16>
    %48 = vector.shape_cast %47 : vector<1x16x24xbf16> to vector<16x24xbf16>
    %c0_38 = arith.constant 0 : index
    %c0_39 = arith.constant 0 : index
    %49 = vector.load %arg11[%c0_38, %c0_39] : memref<64x128xbf16, #tpu.memory_space<vmem>>, vector<64x128xbf16>
    %50 = vector.shape_cast %48 : vector<16x24xbf16> to vector<1x16x24xbf16>
    %51 = vector.broadcast %50 : vector<1x16x24xbf16> to vector<16x16x24xbf16>
    %52 = arith.truncf %46 : vector<16x24x64xf32> to vector<16x24x64xbf16>
    %cst_40 = arith.constant dense<0.000000e+00> : vector<16x16x64xf32>
    %53 = tpu.matmul %51, %52, %cst_40 {dimension_numbers = #tpu.dot_dimension_numbers<[2], [1], [1], [2], [0, 0, 0, 1, 1, 2], [0], [0]>} : vector<16x16x24xbf16>, vector<16x24x64xbf16>, vector<16x16x64xf32> -> vector<16x16x64xf32>
    %54 = vector.shape_cast %53 : vector<16x16x64xf32> to vector<256x64xf32>
    %55 = arith.truncf %54 : vector<256x64xf32> to vector<256x64xbf16>
    %cst_41 = arith.constant dense<0.000000e+00> : vector<256x128xf32>
    %56 = tpu.matmul %55, %49, %cst_41 {dimension_numbers = #tpu.dot_dimension_numbers<[1], [0], [0], [1], [0, 0, 1, 1], [], []>} : vector<256x64xbf16>, vector<64x128xbf16>, vector<256x128xf32> -> vector<256x128xf32>
    %57 = vector.shape_cast %56 : vector<256x128xf32> to vector<16x16x128xf32>
    %58 = vector.shape_cast %57 : vector<16x16x128xf32> to vector<1x16x16x128xf32>
    %c0_42 = arith.constant 0 : index
    %c0_43 = arith.constant 0 : index
    %c0_44 = arith.constant 0 : index
    %c0_45 = arith.constant 0 : index
    %59 = vector.load %arg15[%c0_42, %c0_43, %c0_44, %c0_45] : memref<1x16x16x128xf32, #tpu.memory_space<vmem>>, vector<1x16x16x128xf32>
    tpu.vector_store %arg15[%c0_42, %c0_43, %c0_44, %c0_45], %58 {strides = array<i32>} : memref<1x16x16x128xf32, #tpu.memory_space<vmem>>, vector<1x16x16x128xf32>,
    return
  }
  func.func @transform_0(%arg0: i32, %arg1: i32, %arg2: memref<4x4xi32, #tpu.memory_space<smem>>) -> (i32, i32, i32, i32) {
    %c0_i32 = arith.constant 0 : i32
    %c0_i32_0 = arith.constant 0 : i32
    %c0_i32_1 = arith.constant 0 : i32
    %c0_i32_2 = arith.constant 0 : i32
    return %arg0, %c0_i32, %c0_i32_0, %c0_i32_1 : i32, i32, i32, i32
  }
  func.func @transform_1(%arg0: i32, %arg1: i32, %arg2: memref<4x4xi32, #tpu.memory_space<smem>>) -> (i32, i32, i32, i32) {
    %c0_i32 = arith.constant 0 : i32
    %c0_i32_0 = arith.constant 0 : i32
    %c0_i32_1 = arith.constant 0 : i32
    %c0_i32_2 = arith.constant 0 : i32
    return %arg0, %c0_i32, %c0_i32_0, %c0_i32_1 : i32, i32, i32, i32
  }
  func.func @transform_2(%arg0: i32, %arg1: i32, %arg2: memref<4x4xi32, #tpu.memory_space<smem>>) -> (i32, i32, i32, i32) {
    %c0_i32 = arith.constant 0 : i32
    %c0_i32_0 = arith.constant 0 : i32
    %c0_i32_1 = arith.constant 0 : i32
    %c0_i32_2 = arith.constant 0 : i32
    return %arg0, %c0_i32, %c0_i32_0, %c0_i32_1 : i32, i32, i32, i32
  }
  func.func @transform_3(%arg0: i32, %arg1: i32, %arg2: memref<4x4xi32, #tpu.memory_space<smem>>) -> (i32, i32, i32, i32) {
    %c0_i32 = arith.constant 0 : i32
    %c0_i32_0 = arith.constant 0 : i32
    %c0_i32_1 = arith.constant 0 : i32
    %c0_i32_2 = arith.constant 0 : i32
    return %arg0, %c0_i32, %c0_i32_0, %c0_i32_1 : i32, i32, i32, i32
  }
  func.func @transform_4(%arg0: i32, %arg1: i32, %arg2: memref<4x4xi32, #tpu.memory_space<smem>>) -> (i32, i32, i32) {
    %c0_i32 = arith.constant 0 : i32
    %c0_i32_0 = arith.constant 0 : i32
    %c0_i32_1 = arith.constant 0 : i32
    return %arg1, %c0_i32, %c0_i32_0 : i32, i32, i32
  }
  func.func @transform_5(%arg0: i32, %arg1: i32, %arg2: memref<4x4xi32, #tpu.memory_space<smem>>) -> (i32, i32, i32) {
    %c0_i32 = arith.constant 0 : i32
    %c0_i32_0 = arith.constant 0 : i32
    %c0_i32_1 = arith.constant 0 : i32
    return %arg1, %c0_i32, %c0_i32_0 : i32, i32, i32
  }
  func.func @transform_6(%arg0: i32, %arg1: i32, %arg2: memref<4x4xi32, #tpu.memory_space<smem>>) -> (i32, i32, i32) {
    %c0_i32 = arith.constant 0 : i32
    %c0_i32_0 = arith.constant 0 : i32
    %c0_i32_1 = arith.constant 0 : i32
    return %arg1, %c0_i32, %c0_i32_0 : i32, i32, i32
  }
  func.func @transform_7(%arg0: i32, %arg1: i32, %arg2: memref<4x4xi32, #tpu.memory_space<smem>>) -> (i32, i32, i32) {
    %c0_i32 = arith.constant 0 : i32
    %c0_i32_0 = arith.constant 0 : i32
    %c0_i32_1 = arith.constant 0 : i32
    return %arg1, %c0_i32, %c0_i32_0 : i32, i32, i32
  }
  func.func @transform_8(%arg0: i32, %arg1: i32, %arg2: memref<4x4xi32, #tpu.memory_space<smem>>) -> (i32, i32) {
    %c0_i32 = arith.constant 0 : i32
    %c0_i32_0 = arith.constant 0 : i32
    %c0_i32_1 = arith.constant 0 : i32
    return %c0_i32, %c0_i32_0 : i32, i32
  }
  func.func @transform_9(%arg0: i32, %arg1: i32, %arg2: memref<4x4xi32, #tpu.memory_space<smem>>) -> (i32, i32) {
    %c0_i32 = arith.constant 0 : i32
    %c0_i32_0 = arith.constant 0 : i32
    %c0_i32_1 = arith.constant 0 : i32
    return %c0_i32, %c0_i32_0 : i32, i32
  }
  func.func @transform_10(%arg0: i32, %arg1: i32, %arg2: memref<4x4xi32, #tpu.memory_space<smem>>) -> (i32, i32) {
    %c0_i32 = arith.constant 0 : i32
    %c0_i32_0 = arith.constant 0 : i32
    %c0_i32_1 = arith.constant 0 : i32
    return %c0_i32, %c0_i32_0 : i32, i32
  }
  func.func @transform_11(%arg0: i32, %arg1: i32, %arg2: memref<4x4xi32, #tpu.memory_space<smem>>) -> (i32, i32) {
    %c0_i32 = arith.constant 0 : i32
    %c0_i32_0 = arith.constant 0 : i32
    %c0_i32_1 = arith.constant 0 : i32
    return %c0_i32, %c0_i32_0 : i32, i32
  }
  func.func @transform_12(%arg0: i32, %arg1: i32, %arg2: memref<4x4xi32, #tpu.memory_space<smem>>) -> (i32, i32, i32, i32) {
    %c0_i32 = arith.constant 0 : i32
    %c0_i32_0 = arith.constant 0 : i32
    %c0_i32_1 = arith.constant 0 : i32
    return %arg0, %c0_i32, %arg1, %c0_i32_0 : i32, i32, i32, i32
  }
}

</mosaic_0001>

<llo_original>
// kernel: _lambda_.1
$region0: #{_lambda_.1}
  #allocation0 [shape = 'u32[]', space=smem, size = 0x4, offset = 0x4, fixed_abs, tag = 'smem constant byte address 0x4 - core index']
  #allocation1 [shape = 'u32[144,128]{1,0:T(1,128)}', space=vmem, size = 0x12000, scoped, tag = 'internal scratch']
  #allocation2 [shape = 's32[1]{0}', space=sflag, size = 0x4, scoped, tag = 'scoped memory for _lambda_.1']
  #allocation3 [shape = 'u8[2048]{0}', space=smem, size = 0x800, scoped, tag = 'prefetched SMEM operand 0']
  #allocation6 [shape = 's32[]', space=sflag, size = 0x4, offset = 0, fixed_abs, tag = 'sflag constant byte address 0x0 - dummy sync flag']
  %s0 = inlined_call_operand.vmem [shape: s32[4,4], index: 0, kind: input, shape index: {}]
  %s1 = inlined_call_operand.vmem [shape: f32[2,16,32,64], index: 1, kind: input, shape index: {}]
  %s2 = inlined_call_operand.vmem [shape: f32[2,16,16,32], index: 2, kind: input, shape index: {}]
  %s3 = inlined_call_operand.vmem [shape: f32[2,16,8,16], index: 3, kind: input, shape index: {}]
  %s4 = inlined_call_operand.vmem [shape: f32[2,16,4,8], index: 4, kind: input, shape index: {}]
  %s5 = inlined_call_operand.vmem [shape: bf16[4,16,24], index: 5, kind: input, shape index: {}]
  %s6 = inlined_call_operand.vmem [shape: bf16[4,24,16], index: 6, kind: input, shape index: {}]
  %s7 = inlined_call_operand.vmem [shape: bf16[4,16,8], index: 7, kind: input, shape index: {}]
  %s8 = inlined_call_operand.vmem [shape: bf16[4,8,4], index: 8, kind: input, shape index: {}]
  %s9 = inlined_call_operand.vmem [shape: bf16[64,128], index: 9, kind: input, shape index: {}]
  %s10 = inlined_call_operand.vmem [shape: bf16[32,64], index: 10, kind: input, shape index: {}]
  %s11 = inlined_call_operand.vmem [shape: bf16[16,32], index: 11, kind: input, shape index: {}]
  %s12 = inlined_call_operand.vmem [shape: bf16[8,16], index: 12, kind: input, shape index: {}]
  %s13 = inlined_call_operand.hbm [shape: f32[2,16,64,128], index: 13, kind: output, shape index: {}]
  %s14 = sld [smem:[#allocation0]]
  $region81: #{_lambda_.1} parent=0
    _
  %s16 = ssub.s32 1, %s14
  %s17 = scalar_select 0, %s16, %s14
  %s18 = sshll.u32 %s0, 4
  %s19 = int_to_ptr.vmem [resolvable:$true] %s18
  %21 = dma.vmem_to_smem %s19, 64, [#allocation3], [#allocation2]
  %22 = dma.done [#allocation2], 64
  %23 = sfence
  $region1: #{_lambda_.1} parent=0
    #allocation4 [shape = 'u8[262144]{0}', space=vmem, size = 0x40000, scoped, tag = 'output window, operand 0']
    #allocation5 [shape = 's32[2]{0}', space=sflag, size = 0x8, scoped, tag = 'scoped memory for _lambda_.1']
    %24 = vsyncpa [#allocation5], 0
    %s25 = scalar_lea.sflag [#allocation5], 1
    %26 = vsyncpa %s25, 0
    loop: start=0, step=1, limit=10
    $region2: #{_lambda_.1} parent=1 // loop_pre_header
      _
    $region3: #{_lambda_.1} parent=1 // loop_header
      %s28 = sphi 0, %s32
      %p29 = scmp.ge.s32.totalorder %s28, 10
      %s35 = sphi 0, %s47
      %s36 = sphi 0, %s43
      %s37 = sphi 0, %s35
      %s38 = sphi 0, %s36
      %s39 = sphi 0, %s37
      %s40 = sphi 0, %s38
      %s50 = sphi 0, %s52
      %s53 = sphi 0, %s50
      %s54 = sphi 0, %s53
      %s70 = sphi 0, %s54
      %s76 = sphi 0, %s78
      %s79 = sphi 0, %s76
      %s80 = sphi 0, %s79
      %s96 = sphi 0, %s80
      %s102 = sphi 0, %s104
      %s105 = sphi 0, %s102
      %s106 = sphi 0, %s105
      %s122 = sphi 0, %s106
      %s128 = sphi 0, %s130
      %s131 = sphi 0, %s128
      %s132 = sphi 0, %s131
      %s148 = sphi 0, %s132
      %s154 = sphi 0, %s156
      %s157 = sphi 0, %s154
      %s158 = sphi 0, %s157
      %s174 = sphi 0, %s158
      %s180 = sphi 0, %s182
      %s183 = sphi 0, %s180
      %s184 = sphi 0, %s183
      %s200 = sphi 0, %s184
      %s206 = sphi 0, %s208
      %s209 = sphi 0, %s206
      %s210 = sphi 0, %s209
      %s226 = sphi 0, %s210
      %s232 = sphi 0, %s234
      %s235 = sphi 0, %s232
      %s236 = sphi 0, %s235
      %s252 = sphi 0, %s236
      %s256 = sphi 0, %s256
      %s258 = sphi 0, %s256
      %s259 = sphi 0, %s258
      %s273 = sphi 0, %s259
      %s277 = sphi 0, %s277
      %s279 = sphi 0, %s277
      %s280 = sphi 0, %s279
      %s294 = sphi 0, %s280
      %s298 = sphi 0, %s298
      %s300 = sphi 0, %s298
      %s301 = sphi 0, %s300
      %s315 = sphi 0, %s301
      %s319 = sphi 0, %s319
      %s321 = sphi 0, %s319
      %s322 = sphi 0, %s321
      %s336 = sphi 0, %s322
      %s344 = sphi 0, %s346
      %s347 = sphi 0, %s344
      %s348 = sphi 0, %s347
      %s364 = sphi 0, %s348
    $region4: #{_lambda_.1} parent=1 // loop_header_branch
      %31 = sbr.rel (%p29) target = $region8
    $region5: #{_lambda_.1} parent=1 // loop_body
      %s33 = ssub.s32 %s28, 1
      %s34 = ssub.s32 %s28, 2
      %s41 = sadd.s32 1, %s36
      %p42 = scmp.ge.s32.totalorder %s41, 4
      %s43 = scalar_select %p42, 0, %s41
      %s44 = sadd.s32 1, %s35
      %s45 = scalar_select %p42, %s44, %s35
      %p46 = scmp.ge.s32.totalorder %s45, 2
      %s47 = scalar_select %p46, 0, %s45
      %s48 = ssub.s32 %s35, %s47
      %p49 = scmp.eq.s32.totalorder %s48, 0
      %s51 = sadd.s32 %s50, 1
      %s52 = scalar_select %p49, %s50, %s51
      %p55 = pneg %p49
      %p56 = scmp.eq.s32.totalorder %s28, 7
      %p57 = por %p55, %p56
      %p58 = scmp.ne.s32.totalorder %s50, %s53
      %p59 = scmp.eq.s32.totalorder %s28, 0
      %p60 = por %p58, %p59
      %p61 = scmp.ne.s32.totalorder %s50, %s53
      %p62 = scmp.eq.s32.totalorder %s33, 7
      %p63 = por %p61, %p62
      %p64 = scmp.ne.s32.totalorder %s53, %s54
      %p65 = scmp.eq.s32.totalorder %s33, 0
      %p66 = por %p64, %p65
      %p67 = scmp.ne.s32.totalorder %s53, %s54
      %p68 = scmp.eq.s32.totalorder %s34, 7
      %p69 = por %p67, %p68
      %p71 = scmp.ne.s32.totalorder %s54, %s70
      %p72 = scmp.eq.s32.totalorder %s34, 0
      %p73 = por %p71, %p72
      %s74 = ssub.s32 %s35, %s47
      %p75 = scmp.eq.s32.totalorder %s74, 0
      %s77 = sadd.s32 %s76, 1
      %s78 = scalar_select %p75, %s76, %s77
      %p81 = pneg %p75
      %p82 = scmp.eq.s32.totalorder %s28, 7
      %p83 = por %p81, %p82
      %p84 = scmp.ne.s32.totalorder %s76, %s79
      %p85 = scmp.eq.s32.totalorder %s28, 0
      %p86 = por %p84, %p85
      %p87 = scmp.ne.s32.totalorder %s76, %s79
      %p88 = scmp.eq.s32.totalorder %s33, 7
      %p89 = por %p87, %p88
      %p90 = scmp.ne.s32.totalorder %s79, %s80
      %p91 = scmp.eq.s32.totalorder %s33, 0
      %p92 = por %p90, %p91
      %p93 = scmp.ne.s32.totalorder %s79, %s80
      %p94 = scmp.eq.s32.totalorder %s34, 7
      %p95 = por %p93, %p94
      %p97 = scmp.ne.s32.totalorder %s80, %s96
      %p98 = scmp.eq.s32.totalorder %s34, 0
      %p99 = por %p97, %p98
      %s100 = ssub.s32 %s35, %s47
      %p101 = scmp.eq.s32.totalorder %s100, 0
      %s103 = sadd.s32 %s102, 1
      %s104 = scalar_select %p101, %s102, %s103
      %p107 = pneg %p101
      %p108 = scmp.eq.s32.totalorder %s28, 7
      %p109 = por %p107, %p108
      %p110 = scmp.ne.s32.totalorder %s102, %s105
      %p111 = scmp.eq.s32.totalorder %s28, 0
      %p112 = por %p110, %p111
      %p113 = scmp.ne.s32.totalorder %s102, %s105
      %p114 = scmp.eq.s32.totalorder %s33, 7
      %p115 = por %p113, %p114
      %p116 = scmp.ne.s32.totalorder %s105, %s106
      %p117 = scmp.eq.s32.totalorder %s33, 0
      %p118 = por %p116, %p117
      %p119 = scmp.ne.s32.totalorder %s105, %s106
      %p120 = scmp.eq.s32.totalorder %s34, 7
      %p121 = por %p119, %p120
      %p123 = scmp.ne.s32.totalorder %s106, %s122
      %p124 = scmp.eq.s32.totalorder %s34, 0
      %p125 = por %p123, %p124
      %s126 = ssub.s32 %s35, %s47
      %p127 = scmp.eq.s32.totalorder %s126, 0
      %s129 = sadd.s32 %s128, 1
      %s130 = scalar_select %p127, %s128, %s129
      %p133 = pneg %p127
      %p134 = scmp.eq.s32.totalorder %s28, 7
      %p135 = por %p133, %p134
      %p136 = scmp.ne.s32.totalorder %s128, %s131
      %p137 = scmp.eq.s32.totalorder %s28, 0
      %p138 = por %p136, %p137
      %p139 = scmp.ne.s32.totalorder %s128, %s131
      %p140 = scmp.eq.s32.totalorder %s33, 7
      %p141 = por %p139, %p140
      %p142 = scmp.ne.s32.totalorder %s131, %s132
      %p143 = scmp.eq.s32.totalorder %s33, 0
      %p144 = por %p142, %p143
      %p145 = scmp.ne.s32.totalorder %s131, %s132
      %p146 = scmp.eq.s32.totalorder %s34, 7
      %p147 = por %p145, %p146
      %p149 = scmp.ne.s32.totalorder %s132, %s148
      %p150 = scmp.eq.s32.totalorder %s34, 0
      %p151 = por %p149, %p150
      %s152 = ssub.s32 %s36, %s43
      %p153 = scmp.eq.s32.totalorder %s152, 0
      %s155 = sadd.s32 %s154, 1
      %s156 = scalar_select %p153, %s154, %s155
      %p159 = pneg %p153
      %p160 = scmp.eq.s32.totalorder %s28, 7
      %p161 = por %p159, %p160
      %p162 = scmp.ne.s32.totalorder %s154, %s157
      %p163 = scmp.eq.s32.totalorder %s28, 0
      %p164 = por %p162, %p163
      %p165 = scmp.ne.s32.totalorder %s154, %s157
      %p166 = scmp.eq.s32.totalorder %s33, 7
      %p167 = por %p165, %p166
      %p168 = scmp.ne.s32.totalorder %s157, %s158
      %p169 = scmp.eq.s32.totalorder %s33, 0
      %p170 = por %p168, %p169
      %p171 = scmp.ne.s32.totalorder %s157, %s158
      %p172 = scmp.eq.s32.totalorder %s34, 7
      %p173 = por %p171, %p172
      %p175 = scmp.ne.s32.totalorder %s158, %s174
      %p176 = scmp.eq.s32.totalorder %s34, 0
      %p177 = por %p175, %p176
      %s178 = ssub.s32 %s36, %s43
      %p179 = scmp.eq.s32.totalorder %s178, 0
      %s181 = sadd.s32 %s180, 1
      %s182 = scalar_select %p179, %s180, %s181
      %p185 = pneg %p179
      %p186 = scmp.eq.s32.totalorder %s28, 7
      %p187 = por %p185, %p186
      %p188 = scmp.ne.s32.totalorder %s180, %s183
      %p189 = scmp.eq.s32.totalorder %s28, 0
      %p190 = por %p188, %p189
      %p191 = scmp.ne.s32.totalorder %s180, %s183
      %p192 = scmp.eq.s32.totalorder %s33, 7
      %p193 = por %p191, %p192
      %p194 = scmp.ne.s32.totalorder %s183, %s184
      %p195 = scmp.eq.s32.totalorder %s33, 0
      %p196 = por %p194, %p195
      %p197 = scmp.ne.s32.totalorder %s183, %s184
      %p198 = scmp.eq.s32.totalorder %s34, 7
      %p199 = por %p197, %p198
      %p201 = scmp.ne.s32.totalorder %s184, %s200
      %p202 = scmp.eq.s32.totalorder %s34, 0
      %p203 = por %p201, %p202
      %s204 = ssub.s32 %s36, %s43
      %p205 = scmp.eq.s32.totalorder %s204, 0
      %s207 = sadd.s32 %s206, 1
      %s208 = scalar_select %p205, %s206, %s207
      %p211 = pneg %p205
      %p212 = scmp.eq.s32.totalorder %s28, 7
      %p213 = por %p211, %p212
      %p214 = scmp.ne.s32.totalorder %s206, %s209
      %p215 = scmp.eq.s32.totalorder %s28, 0
      %p216 = por %p214, %p215
      %p217 = scmp.ne.s32.totalorder %s206, %s209
      %p218 = scmp.eq.s32.totalorder %s33, 7
      %p219 = por %p217, %p218
      %p220 = scmp.ne.s32.totalorder %s209, %s210
      %p221 = scmp.eq.s32.totalorder %s33, 0
      %p222 = por %p220, %p221
      %p223 = scmp.ne.s32.totalorder %s209, %s210
      %p224 = scmp.eq.s32.totalorder %s34, 7
      %p225 = por %p223, %p224
      %p227 = scmp.ne.s32.totalorder %s210, %s226
      %p228 = scmp.eq.s32.totalorder %s34, 0
      %p229 = por %p227, %p228
      %s230 = ssub.s32 %s36, %s43
      %p231 = scmp.eq.s32.totalorder %s230, 0
      %s233 = sadd.s32 %s232, 1
      %s234 = scalar_select %p231, %s232, %s233
      %p237 = pneg %p231
      %p238 = scmp.eq.s32.totalorder %s28, 7
      %p239 = por %p237, %p238
      %p240 = scmp.ne.s32.totalorder %s232, %s235
      %p241 = scmp.eq.s32.totalorder %s28, 0
      %p242 = por %p240, %p241
      %p243 = scmp.ne.s32.totalorder %s232, %s235
      %p244 = scmp.eq.s32.totalorder %s33, 7
      %p245 = por %p243, %p244
      %p246 = scmp.ne.s32.totalorder %s235, %s236
      %p247 = scmp.eq.s32.totalorder %s33, 0
      %p248 = por %p246, %p247
      %p249 = scmp.ne.s32.totalorder %s235, %s236
      %p250 = scmp.eq.s32.totalorder %s34, 7
      %p251 = por %p249, %p250
      %p253 = scmp.ne.s32.totalorder %s236, %s252
      %p254 = scmp.eq.s32.totalorder %s34, 0
      %p255 = por %p253, %p254
      %s257 = sadd.s32 %s256, 1
      %p260 = scmp.eq.s32.totalorder %s28, 7
      %p261 = scmp.ne.s32.totalorder %s256, %s258
      %p262 = scmp.eq.s32.totalorder %s28, 0
      %p263 = por %p261, %p262
      %p264 = scmp.ne.s32.totalorder %s256, %s258
      %p265 = scmp.eq.s32.totalorder %s33, 7
      %p266 = por %p264, %p265
      %p267 = scmp.ne.s32.totalorder %s258, %s259
      %p268 = scmp.eq.s32.totalorder %s33, 0
      %p269 = por %p267, %p268
      %p270 = scmp.ne.s32.totalorder %s258, %s259
      %p271 = scmp.eq.s32.totalorder %s34, 7
      %p272 = por %p270, %p271
      %p274 = scmp.ne.s32.totalorder %s259, %s273
      %p275 = scmp.eq.s32.totalorder %s34, 0
      %p276 = por %p274, %p275
      %s278 = sadd.s32 %s277, 1
      %p281 = scmp.eq.s32.totalorder %s28, 7
      %p282 = scmp.ne.s32.totalorder %s277, %s279
      %p283 = scmp.eq.s32.totalorder %s28, 0
      %p284 = por %p282, %p283
      %p285 = scmp.ne.s32.totalorder %s277, %s279
      %p286 = scmp.eq.s32.totalorder %s33, 7
      %p287 = por %p285, %p286
      %p288 = scmp.ne.s32.totalorder %s279, %s280
      %p289 = scmp.eq.s32.totalorder %s33, 0
      %p290 = por %p288, %p289
      %p291 = scmp.ne.s32.totalorder %s279, %s280
      %p292 = scmp.eq.s32.totalorder %s34, 7
      %p293 = por %p291, %p292
      %p295 = scmp.ne.s32.totalorder %s280, %s294
      %p296 = scmp.eq.s32.totalorder %s34, 0
      %p297 = por %p295, %p296
      %s299 = sadd.s32 %s298, 1
      %p302 = scmp.eq.s32.totalorder %s28, 7
      %p303 = scmp.ne.s32.totalorder %s298, %s300
      %p304 = scmp.eq.s32.totalorder %s28, 0
      %p305 = por %p303, %p304
      %p306 = scmp.ne.s32.totalorder %s298, %s300
      %p307 = scmp.eq.s32.totalorder %s33, 7
      %p308 = por %p306, %p307
      %p309 = scmp.ne.s32.totalorder %s300, %s301
      %p310 = scmp.eq.s32.totalorder %s33, 0
      %p311 = por %p309, %p310
      %p312 = scmp.ne.s32.totalorder %s300, %s301
      %p313 = scmp.eq.s32.totalorder %s34, 7
      %p314 = por %p312, %p313
      %p316 = scmp.ne.s32.totalorder %s301, %s315
      %p317 = scmp.eq.s32.totalorder %s34, 0
      %p318 = por %p316, %p317
      %s320 = sadd.s32 %s319, 1
      %p323 = scmp.eq.s32.totalorder %s28, 7
      %p324 = scmp.ne.s32.totalorder %s319, %s321
      %p325 = scmp.eq.s32.totalorder %s28, 0
      %p326 = por %p324, %p325
      %p327 = scmp.ne.s32.totalorder %s319, %s321
      %p328 = scmp.eq.s32.totalorder %s33, 7
      %p329 = por %p327, %p328
      %p330 = scmp.ne.s32.totalorder %s321, %s322
      %p331 = scmp.eq.s32.totalorder %s33, 0
      %p332 = por %p330, %p331
      %p333 = scmp.ne.s32.totalorder %s321, %s322
      %p334 = scmp.eq.s32.totalorder %s34, 7
      %p335 = por %p333, %p334
      %p337 = scmp.ne.s32.totalorder %s322, %s336
      %p338 = scmp.eq.s32.totalorder %s34, 0
      %p339 = por %p337, %p338
      %s340 = ssub.s32 %s35, %s47
      %s341 = ssub.s32 %s36, %s43
      %s342 = sor.u32 %s340, %s341
      %p343 = scmp.eq.s32.totalorder %s342, 0
      %s345 = sadd.s32 %s344, 1
      %s346 = scalar_select %p343, %s344, %s345
      %p349 = pneg %p343
      %p350 = scmp.eq.s32.totalorder %s28, 7
      %p351 = por %p349, %p350
      %p352 = scmp.ne.s32.totalorder %s344, %s347
      %p353 = scmp.eq.s32.totalorder %s28, 0
      %p354 = por %p352, %p353
      %p355 = scmp.ne.s32.totalorder %s344, %s347
      %p356 = scmp.eq.s32.totalorder %s33, 7
      %p357 = por %p355, %p356
      %p358 = scmp.ne.s32.totalorder %s347, %s348
      %p359 = scmp.eq.s32.totalorder %s33, 0
      %p360 = por %p358, %p359
      %p361 = scmp.ne.s32.totalorder %s347, %s348
      %p362 = scmp.eq.s32.totalorder %s34, 7
      %p363 = por %p361, %p362
      %p365 = scmp.ne.s32.totalorder %s348, %s364
      %p366 = scmp.eq.s32.totalorder %s34, 0
      %p367 = por %p365, %p366
      %p368 = scmp.le.s32.totalorder 1, %s28
      %p369 = scmp.lt.s32.totalorder %s28, 9
      %p370 = pnand %p368, %p369
      %p371 = pneg %p370
      // Predicated region
      $region9: #{_lambda_.1} parent=5 // pred_check
        _
      $region10: #{_lambda_.1} parent=5 // pred_check_branch
        %373 = sbr.rel (%p370) target = $region12
      $region11: #{_lambda_.1} parent=5 // pred_region
        %s374 = ssub.s32 %s28, 1
        // Predicated region
        $region13: #{_lambda_.1} parent=11 // pred_check
          %p375 = pneg %p269
        $region14: #{_lambda_.1} parent=11 // pred_check_branch
          %377 = sbr.rel (%p375) target = $region16
        $region15: #{_lambda_.1} parent=11 // pred_region
          _
        $region16: #{_lambda_.1} parent=11 // pred_fallthru
          _
        // Predicated region
        $region17: #{_lambda_.1} parent=11 // pred_check
          %p378 = pneg %p290
        $region18: #{_lambda_.1} parent=11 // pred_check_branch
          %380 = sbr.rel (%p378) target = $region20
        $region19: #{_lambda_.1} parent=11 // pred_region
          _
        $region20: #{_lambda_.1} parent=11 // pred_fallthru
          _
        // Predicated region
        $region21: #{_lambda_.1} parent=11 // pred_check
          %p381 = pneg %p311
        $region22: #{_lambda_.1} parent=11 // pred_check_branch
          %383 = sbr.rel (%p381) target = $region24
        $region23: #{_lambda_.1} parent=11 // pred_region
          _
        $region24: #{_lambda_.1} parent=11 // pred_fallthru
          _
        // Predicated region
        $region25: #{_lambda_.1} parent=11 // pred_check
          %p384 = pneg %p332
        $region26: #{_lambda_.1} parent=11 // pred_check_branch
          %386 = sbr.rel (%p384) target = $region28
        $region27: #{_lambda_.1} parent=11 // pred_region
          _
        $region28: #{_lambda_.1} parent=11 // pred_fallthru
          _
      $region12: #{_lambda_.1} parent=5 // pred_fallthru
        _
      %p387 = scmp.lt.s32.totalorder %s28, 8
      // Predicated region
      $region29: #{_lambda_.1} parent=5 // pred_check
        %p388 = pneg %p387
      $region30: #{_lambda_.1} parent=5 // pred_check_branch
        %390 = sbr.rel (%p388) target = $region32
      $region31: #{_lambda_.1} parent=5 // pred_region
        // Predicated region
        $region33: #{_lambda_.1} parent=31 // pred_check
          %p391 = pneg %p60
        $region34: #{_lambda_.1} parent=31 // pred_check_branch
          %393 = sbr.rel (%p391) target = $region36
        $region35: #{_lambda_.1} parent=31 // pred_region
          %p394 = scmp.lt.s32.totalorder %s35, 1
          %s395 = scalar_select %p394, %s35, 1
          %s396 = smul.addr %s395, 64
          %s397 = smul.addr %s396, 8
          %s398 = scalar_lea.vmem %s1, %s397
        $region36: #{_lambda_.1} parent=31 // pred_fallthru
          _
        // Predicated region
        $region37: #{_lambda_.1} parent=31 // pred_check
          %p399 = pneg %p86
        $region38: #{_lambda_.1} parent=31 // pred_check_branch
          %401 = sbr.rel (%p399) target = $region40
        $region39: #{_lambda_.1} parent=31 // pred_region
          %p402 = scmp.lt.s32.totalorder %s35, 1
          %s403 = scalar_select %p402, %s35, 1
          %s404 = smul.addr %s403, 32
          %s405 = smul.addr %s404, 8
          %s406 = scalar_lea.vmem %s2, %s405
        $region40: #{_lambda_.1} parent=31 // pred_fallthru
          _
        // Predicated region
        $region41: #{_lambda_.1} parent=31 // pred_check
          %p407 = pneg %p112
        $region42: #{_lambda_.1} parent=31 // pred_check_branch
          %409 = sbr.rel (%p407) target = $region44
        $region43: #{_lambda_.1} parent=31 // pred_region
          %p410 = scmp.lt.s32.totalorder %s35, 1
          %s411 = scalar_select %p410, %s35, 1
          %s412 = smul.addr %s411, 16
          %s413 = smul.addr %s412, 8
          %s414 = scalar_lea.vmem %s3, %s413
        $region44: #{_lambda_.1} parent=31 // pred_fallthru
          _
        // Predicated region
        $region45: #{_lambda_.1} parent=31 // pred_check
          %p415 = pneg %p138
        $region46: #{_lambda_.1} parent=31 // pred_check_branch
          %417 = sbr.rel (%p415) target = $region48
        $region47: #{_lambda_.1} parent=31 // pred_region
          %p418 = scmp.lt.s32.totalorder %s35, 1
          %s419 = scalar_select %p418, %s35, 1
          %s420 = smul.addr %s419, 16
          %s421 = smul.addr %s420, 4
          %s422 = scalar_lea.vmem %s4, %s421
        $region48: #{_lambda_.1} parent=31 // pred_fallthru
          _
        // Predicated region
        $region49: #{_lambda_.1} parent=31 // pred_check
          %p423 = pneg %p164
        $region50: #{_lambda_.1} parent=31 // pred_check_branch
          %425 = sbr.rel (%p423) target = $region52
        $region51: #{_lambda_.1} parent=31 // pred_region
          %p426 = scmp.lt.s32.totalorder %s36, 3
          %s427 = scalar_select %p426, %s36, 3
          %s428 = smul.addr %s427, 2
          %s429 = smul.addr %s428, 4
          %s430 = scalar_lea.vmem %s5, %s429
        $region52: #{_lambda_.1} parent=31 // pred_fallthru
          _
        // Predicated region
        $region53: #{_lambda_.1} parent=31 // pred_check
          %p431 = pneg %p190
        $region54: #{_lambda_.1} parent=31 // pred_check_branch
          %433 = sbr.rel (%p431) target = $region56
        $region55: #{_lambda_.1} parent=31 // pred_region
          %p434 = scmp.lt.s32.totalorder %s36, 3
          %s435 = scalar_select %p434, %s36, 3
          %s436 = smul.addr %s435, 3
          %s437 = smul.addr %s436, 4
          %s438 = scalar_lea.vmem %s6, %s437
        $region56: #{_lambda_.1} parent=31 // pred_fallthru
          _
        // Predicated region
        $region57: #{_lambda_.1} parent=31 // pred_check
          %p439 = pneg %p216
        $region58: #{_lambda_.1} parent=31 // pred_check_branch
          %441 = sbr.rel (%p439) target = $region60
        $region59: #{_lambda_.1} parent=31 // pred_region
          %p442 = scmp.lt.s32.totalorder %s36, 3
          %s443 = scalar_select %p442, %s36, 3
          %s444 = smul.addr %s443, 2
          %s445 = smul.addr %s444, 4
          %s446 = scalar_lea.vmem %s7, %s445
        $region60: #{_lambda_.1} parent=31 // pred_fallthru
          _
        // Predicated region
        $region61: #{_lambda_.1} parent=31 // pred_check
          %p447 = pneg %p242
        $region62: #{_lambda_.1} parent=31 // pred_check_branch
          %449 = sbr.rel (%p447) target = $region64
        $region63: #{_lambda_.1} parent=31 // pred_region
          %p450 = scmp.lt.s32.totalorder %s36, 3
          %s451 = scalar_select %p450, %s36, 3
          %s452 = smul.addr %s451, 4
          %s453 = scalar_lea.vmem %s8, %s452
        $region64: #{_lambda_.1} parent=31 // pred_fallthru
          _
      $region32: #{_lambda_.1} parent=5 // pred_fallthru
        _
      %p454 = scmp.le.s32.totalorder 1, %s28
      %p455 = scmp.lt.s32.totalorder %s28, 9
      %p456 = pnand %p454, %p455
      %p457 = pneg %p456
      // Predicated region
      $region65: #{_lambda_.1} parent=5 // pred_check
        _
      $region66: #{_lambda_.1} parent=5 // pred_check_branch
        %459 = sbr.rel (%p456) target = $region68
      $region67: #{_lambda_.1} parent=5 // pred_region
        %s460 = ssub.s32 %s28, 1
        %p461 = scmp.lt.s32.totalorder %s37, 1
        %s462 = scalar_select %p461, %s37, 1
        %s463 = smul.addr %s462, 64
        %s464 = smul.addr %s463, 8
        %s465 = scalar_lea.vmem %s1, %s464
        %p466 = pneg %p66
        %p467 = pneg %p63
        %p468 = scmp.lt.s32.totalorder %s37, 1
        %s469 = scalar_select %p468, %s37, 1
        %s470 = smul.addr %s469, 32
        %s471 = smul.addr %s470, 8
        %s472 = scalar_lea.vmem %s2, %s471
        %p473 = pneg %p92
        %p474 = pneg %p89
        %p475 = scmp.lt.s32.totalorder %s37, 1
        %s476 = scalar_select %p475, %s37, 1
        %s477 = smul.addr %s476, 16
        %s478 = smul.addr %s477, 8
        %s479 = scalar_lea.vmem %s3, %s478
        %p480 = pneg %p118
        %p481 = pneg %p115
        %p482 = scmp.lt.s32.totalorder %s37, 1
        %s483 = scalar_select %p482, %s37, 1
        %s484 = smul.addr %s483, 16
        %s485 = smul.addr %s484, 4
        %s486 = scalar_lea.vmem %s4, %s485
        %p487 = pneg %p144
        %p488 = pneg %p141
        %p489 = scmp.lt.s32.totalorder %s38, 3
        %s490 = scalar_select %p489, %s38, 3
        %s491 = smul.addr %s490, 2
        %s492 = smul.addr %s491, 4
        %s493 = scalar_lea.vmem %s5, %s492
        %p494 = pneg %p170
        %p495 = pneg %p167
        %p496 = scmp.lt.s32.totalorder %s38, 3
        %s497 = scalar_select %p496, %s38, 3
        %s498 = smul.addr %s497, 3
        %s499 = smul.addr %s498, 4
        %s500 = scalar_lea.vmem %s6, %s499
        %p501 = pneg %p196
        %p502 = pneg %p193
        %p503 = scmp.lt.s32.totalorder %s38, 3
        %s504 = scalar_select %p503, %s38, 3
        %s505 = smul.addr %s504, 2
        %s506 = smul.addr %s505, 4
        %s507 = scalar_lea.vmem %s7, %s506
        %p508 = pneg %p222
        %p509 = pneg %p219
        %p510 = scmp.lt.s32.totalorder %s38, 3
        %s511 = scalar_select %p510, %s38, 3
        %s512 = smul.addr %s511, 4
        %s513 = scalar_lea.vmem %s8, %s512
        %p514 = pneg %p248
        %p515 = pneg %p245
        %p516 = pneg %p269
        %p517 = pneg %p266
        %p518 = pneg %p290
        %p519 = pneg %p287
        %p520 = pneg %p311
        %p521 = pneg %p308
        %p522 = pneg %p332
        %p523 = pneg %p329
        %p524 = pneg %p360
        %p525 = pneg %p357
        %s526 = sand.u32 %s347, 1
        %s527 = scalar_lea.sflag [#allocation5], %s526
        %s528 = sand.u32 %s347, 1
        %s529 = smul.addr %s528, 256
        %s530 = scalar_lea.vmem [#allocation4], %s529
        %p531 = scmp.lt.s32.totalorder %s37, 1
        %s532 = scalar_select %p531, %s37, 1
        %s533 = smul.addr %s532, 64
        %s534 = smul.addr %s533, 8
        %s535 = scalar_lea.vmem %s1, %s534
        %p536 = scmp.lt.s32.totalorder %s37, 1
        %s537 = scalar_select %p536, %s37, 1
        %s538 = smul.addr %s537, 32
        %s539 = smul.addr %s538, 8
        %s540 = scalar_lea.vmem %s2, %s539
        %p541 = scmp.lt.s32.totalorder %s37, 1
        %s542 = scalar_select %p541, %s37, 1
        %s543 = smul.addr %s542, 16
        %s544 = smul.addr %s543, 8
        %s545 = scalar_lea.vmem %s3, %s544
        %p546 = scmp.lt.s32.totalorder %s37, 1
        %s547 = scalar_select %p546, %s37, 1
        %s548 = smul.addr %s547, 16
        %s549 = smul.addr %s548, 4
        %s550 = scalar_lea.vmem %s4, %s549
        %p551 = scmp.lt.s32.totalorder %s38, 3
        %s552 = scalar_select %p551, %s38, 3
        %s553 = smul.addr %s552, 2
        %s554 = smul.addr %s553, 4
        %s555 = scalar_lea.vmem %s5, %s554
        %p556 = scmp.lt.s32.totalorder %s38, 3
        %s557 = scalar_select %p556, %s38, 3
        %s558 = smul.addr %s557, 3
        %s559 = smul.addr %s558, 4
        %s560 = scalar_lea.vmem %s6, %s559
        %p561 = scmp.lt.s32.totalorder %s38, 3
        %s562 = scalar_select %p561, %s38, 3
        %s563 = smul.addr %s562, 2
        %s564 = smul.addr %s563, 4
        %s565 = scalar_lea.vmem %s7, %s564
        %p566 = scmp.lt.s32.totalorder %s38, 3
        %s567 = scalar_select %p566, %s38, 3
        %s568 = smul.addr %s567, 4
        %s569 = scalar_lea.vmem %s8, %s568
        %s570 = smul.u32 2, %s38
        %v572 = vld [vmem:[%s550] sm:$0xf]
        %v573 = vld [vmem:[%s550 + $0x4] sm:$0xf]
        %v574 = vld [vmem:[%s550 + $0x8] sm:$0xf]
        %v575 = vld [vmem:[%s550 + $0xc] sm:$0xf]
        %v576 = vld [vmem:[%s550 + $0x10] sm:$0xf]
        %v577 = vld [vmem:[%s550 + $0x14] sm:$0xf]
        %v578 = vld [vmem:[%s550 + $0x18] sm:$0xf]
        %v579 = vld [vmem:[%s550 + $0x1c] sm:$0xf]
        %v580 = vld [vmem:[%s550 + $0x20] sm:$0xf]
        %v581 = vld [vmem:[%s550 + $0x24] sm:$0xf]
        %v582 = vld [vmem:[%s550 + $0x28] sm:$0xf]
        %v583 = vld [vmem:[%s550 + $0x2c] sm:$0xf]
        %v584 = vld [vmem:[%s550 + $0x30] sm:$0xf]
        %v585 = vld [vmem:[%s550 + $0x34] sm:$0xf]
        %v586 = vld [vmem:[%s550 + $0x38] sm:$0xf]
        %v587 = vld [vmem:[%s550 + $0x3c] sm:$0xf]
        %v588 = vld [vmem:[%s545] sm:$0xff]
        %v589 = vld [vmem:[%s545 + $0x8] sm:$0xff]
        %v590 = vld [vmem:[%s545 + $0x10] sm:$0xff]
        %v591 = vld [vmem:[%s545 + $0x18] sm:$0xff]
        %v592 = vld [vmem:[%s545 + $0x20] sm:$0xff]
        %v593 = vld [vmem:[%s545 + $0x28] sm:$0xff]
        %v594 = vld [vmem:[%s545 + $0x30] sm:$0xff]
        %v595 = vld [vmem:[%s545 + $0x38] sm:$0xff]
        %v596 = vld [vmem:[%s545 + $0x40] sm:$0xff]
        %v597 = vld [vmem:[%s545 + $0x48] sm:$0xff]
        %v598 = vld [vmem:[%s545 + $0x50] sm:$0xff]
        %v599 = vld [vmem:[%s545 + $0x58] sm:$0xff]
        %v600 = vld [vmem:[%s545 + $0x60] sm:$0xff]
        %v601 = vld [vmem:[%s545 + $0x68] sm:$0xff]
        %v602 = vld [vmem:[%s545 + $0x70] sm:$0xff]
        %v603 = vld [vmem:[%s545 + $0x78] sm:$0xff]
        %v604 = vld [vmem:[%s569] sm:$0xf]
        %v605 = vld [vmem:[%s12] sm:$0xf]
        %v606 = vpack.c.bf16 %v572, %v572
        %v607 = vpack.c.bf16 %v573, %v573
        %v608 = vpack.c.bf16 %v574, %v574
        %v609 = vpack.c.bf16 %v575, %v575
        %v610 = vpack.c.bf16 %v576, %v576
        %v611 = vpack.c.bf16 %v577, %v577
        %v612 = vpack.c.bf16 %v578, %v578
        %v613 = vpack.c.bf16 %v579, %v579
        %v614 = vpack.c.bf16 %v580, %v580
        %v615 = vpack.c.bf16 %v581, %v581
        %v616 = vpack.c.bf16 %v582, %v582
        %v617 = vpack.c.bf16 %v583, %v583
        %v618 = vpack.c.bf16 %v584, %v584
        %v619 = vpack.c.bf16 %v585, %v585
        %v620 = vpack.c.bf16 %v586, %v586
        %v621 = vpack.c.bf16 %v587, %v587
        %vm622 = vcmask 31744
        %v624 = vsel %vm622, %v604, 0
        %vm626 = vcmask 1041408
        %v628 = vsel %vm626, %v606, 0
        %630 = vmatprep.subr.bf16.mxu0 0
        %631 = vmatpush1.bf16.msra.mxu0 0
        %632 = vmatprep.subr.bf16.mxu0 0
        %633 = vmatpush1.bf16.msra.mxu0 0
        %634 = vmatprep.subr.bf16.mxu0 0
        %635 = vmatpush1.bf16.msra.mxu0 0
        %636 = vmatprep.subr.bf16.mxu0 0
        %637 = vmatpush1.bf16.msra.mxu0 0
        %638 = vmatprep.subr.bf16.mxu0 0
        %639 = vmatpush1.bf16.msra.mxu0 0
        %640 = vmatprep.subr.bf16.mxu0 0
        %641 = vmatpush1.bf16.msra.mxu0 0
        %642 = vmatprep.subr.bf16.mxu0 0
        %643 = vmatpush1.bf16.msra.mxu0 0
        %644 = vmatprep.subr.bf16.mxu0 0
        %645 = vmatpush1.bf16.msra.mxu0 %v628
        %646 = vmatprep.subr.bf16.mxu0 0
        %647 = vmatpush2.bf16.msra.mxu0 0
        %648 = vmatprep.subr.bf16.mxu0 0
        %649 = vmatpush2.bf16.msra.mxu0 0
        %650 = vmatprep.subr.bf16.mxu0 0
        %651 = vmatpush2.bf16.msra.mxu0 0
        %652 = vmatprep.subr.bf16.mxu0 0
        %653 = vmatpush2.bf16.msra.mxu0 0
        %654 = vmatprep.subr.bf16.mxu0 0
        %655 = vmatpush2.bf16.msra.mxu0 0
        %656 = vmatprep.subr.bf16.mxu0 0
        %657 = vmatpush2.bf16.msra.mxu0 0
        %658 = vmatprep.subr.bf16.mxu0 0
        %659 = vmatpush2.bf16.msra.mxu0 0
        %660 = vmatprep.subr.bf16.mxu0 0
        %661 = vmatpush2.bf16.msra.mxu0 0
        %662 = vmatprep.mubr.bf16.mxu0 0
        %663 = vmatmul.mubr.bf16.gmra.mxu0 %v624
        %v664 = vpop.f32.mrf.mxu0
        %v665 = vadd.f32 0.0, %v664
        %v666 = vpop.f32.mrf.mxu0
        %v667 = vpop.f32.mrf.mxu0
        %v668 = vpop.f32.mrf.mxu0
        %669 = vdwg.mxu0
        %v671 = vsel %vm626, %v607, 0
        %673 = vmatprep.subr.bf16.mxu0 0
        %674 = vmatpush1.bf16.msra.mxu0 0
        %675 = vmatprep.subr.bf16.mxu0 0
        %676 = vmatpush1.bf16.msra.mxu0 0
        %677 = vmatprep.subr.bf16.mxu0 0
        %678 = vmatpush1.bf16.msra.mxu0 0
        %679 = vmatprep.subr.bf16.mxu0 0
        %680 = vmatpush1.bf16.msra.mxu0 0
        %681 = vmatprep.subr.bf16.mxu0 0
        %682 = vmatpush1.bf16.msra.mxu0 0
        %683 = vmatprep.subr.bf16.mxu0 0
        %684 = vmatpush1.bf16.msra.mxu0 0
        %685 = vmatprep.subr.bf16.mxu0 0
        %686 = vmatpush1.bf16.msra.mxu0 0
        %687 = vmatprep.subr.bf16.mxu0 0
        %688 = vmatpush1.bf16.msra.mxu0 %v671
        %689 = vmatprep.subr.bf16.mxu0 0
        %690 = vmatpush2.bf16.msra.mxu0 0
        %691 = vmatprep.subr.bf16.mxu0 0
        %692 = vmatpush2.bf16.msra.mxu0 0
        %693 = vmatprep.subr.bf16.mxu0 0
        %694 = vmatpush2.bf16.msra.mxu0 0
        %695 = vmatprep.subr.bf16.mxu0 0
        %696 = vmatpush2.bf16.msra.mxu0 0
        %697 = vmatprep.subr.bf16.mxu0 0
        %698 = vmatpush2.bf16.msra.mxu0 0
        %699 = vmatprep.subr.bf16.mxu0 0
        %700 = vmatpush2.bf16.msra.mxu0 0
        %701 = vmatprep.subr.bf16.mxu0 0
        %702 = vmatpush2.bf16.msra.mxu0 0
        %703 = vmatprep.subr.bf16.mxu0 0
        %704 = vmatpush2.bf16.msra.mxu0 0
        %705 = vmatprep.mubr.bf16.mxu0 0
        %706 = vmatmul.mubr.bf16.gmra.mxu0 %v624
        %v707 = vpop.f32.mrf.mxu0
        %v708 = vadd.f32 0.0, %v707
        %v709 = vpop.f32.mrf.mxu0
        %v710 = vpop.f32.mrf.mxu0
        %v711 = vpop.f32.mrf.mxu0
        %712 = vdwg.mxu0
        %v714 = vsel %vm626, %v608, 0
        %716 = vmatprep.subr.bf16.mxu0 0
        %717 = vmatpush1.bf16.msra.mxu0 0
        %718 = vmatprep.subr.bf16.mxu0 0
        %719 = vmatpush1.bf16.msra.mxu0 0
        %720 = vmatprep.subr.bf16.mxu0 0
        %721 = vmatpush1.bf16.msra.mxu0 0
        %722 = vmatprep.subr.bf16.mxu0 0
        %723 = vmatpush1.bf16.msra.mxu0 0
        %724 = vmatprep.subr.bf16.mxu0 0
        %725 = vmatpush1.bf16.msra.mxu0 0
        %726 = vmatprep.subr.bf16.mxu0 0
        %727 = vmatpush1.bf16.msra.mxu0 0
        %728 = vmatprep.subr.bf16.mxu0 0
        %729 = vmatpush1.bf16.msra.mxu0 0
        %730 = vmatprep.subr.bf16.mxu0 0
        %731 = vmatpush1.bf16.msra.mxu0 %v714
        %732 = vmatprep.subr.bf16.mxu0 0
        %733 = vmatpush2.bf16.msra.mxu0 0
        %734 = vmatprep.subr.bf16.mxu0 0
        %735 = vmatpush2.bf16.msra.mxu0 0
        %736 = vmatprep.subr.bf16.mxu0 0
        %737 = vmatpush2.bf16.msra.mxu0 0
        %738 = vmatprep.subr.bf16.mxu0 0
        %739 = vmatpush2.bf16.msra.mxu0 0
        %740 = vmatprep.subr.bf16.mxu0 0
        %741 = vmatpush2.bf16.msra.mxu0 0
        %742 = vmatprep.subr.bf16.mxu0 0
        %743 = vmatpush2.bf16.msra.mxu0 0
        %744 = vmatprep.subr.bf16.mxu0 0
        %745 = vmatpush2.bf16.msra.mxu0 0
        %746 = vmatprep.subr.bf16.mxu0 0
        %747 = vmatpush2.bf16.msra.mxu0 0
        %748 = vmatprep.mubr.bf16.mxu0 0
        %749 = vmatmul.mubr.bf16.gmra.mxu0 %v624
        %v750 = vpop.f32.mrf.mxu0
        %v751 = vadd.f32 0.0, %v750
        %v752 = vpop.f32.mrf.mxu0
        %v753 = vpop.f32.mrf.mxu0
        %v754 = vpop.f32.mrf.mxu0
        %755 = vdwg.mxu0
        %v757 = vsel %vm626, %v609, 0
        %759 = vmatprep.subr.bf16.mxu0 0
        %760 = vmatpush1.bf16.msra.mxu0 0
        %761 = vmatprep.subr.bf16.mxu0 0
        %762 = vmatpush1.bf16.msra.mxu0 0
        %763 = vmatprep.subr.bf16.mxu0 0
        %764 = vmatpush1.bf16.msra.mxu0 0
        %765 = vmatprep.subr.bf16.mxu0 0
        %766 = vmatpush1.bf16.msra.mxu0 0
        %767 = vmatprep.subr.bf16.mxu0 0
        %768 = vmatpush1.bf16.msra.mxu0 0
        %769 = vmatprep.subr.bf16.mxu0 0
        %770 = vmatpush1.bf16.msra.mxu0 0
        %771 = vmatprep.subr.bf16.mxu0 0
        %772 = vmatpush1.bf16.msra.mxu0 0
        %773 = vmatprep.subr.bf16.mxu0 0
        %774 = vmatpush1.bf16.msra.mxu0 %v757
        %775 = vmatprep.subr.bf16.mxu0 0
        %776 = vmatpush2.bf16.msra.mxu0 0
        %777 = vmatprep.subr.bf16.mxu0 0
        %778 = vmatpush2.bf16.msra.mxu0 0
        %779 = vmatprep.subr.bf16.mxu0 0
        %780 = vmatpush2.bf16.msra.mxu0 0
        %781 = vmatprep.subr.bf16.mxu0 0
        %782 = vmatpush2.bf16.msra.mxu0 0
        %783 = vmatprep.subr.bf16.mxu0 0
        %784 = vmatpush2.bf16.msra.mxu0 0
        %785 = vmatprep.subr.bf16.mxu0 0
        %786 = vmatpush2.bf16.msra.mxu0 0
        %787 = vmatprep.subr.bf16.mxu0 0
        %788 = vmatpush2.bf16.msra.mxu0 0
        %789 = vmatprep.subr.bf16.mxu0 0
        %790 = vmatpush2.bf16.msra.mxu0 0
        %791 = vmatprep.mubr.bf16.mxu0 0
        %792 = vmatmul.mubr.bf16.gmra.mxu0 %v624
        %v793 = vpop.f32.mrf.mxu0
        %v794 = vadd.f32 0.0, %v793
        %v795 = vpop.f32.mrf.mxu0
        %v796 = vpop.f32.mrf.mxu0
        %v797 = vpop.f32.mrf.mxu0
        %798 = vdwg.mxu0
        %v800 = vsel %vm626, %v610, 0
        %802 = vmatprep.subr.bf16.mxu0 0
        %803 = vmatpush1.bf16.msra.mxu0 0
        %804 = vmatprep.subr.bf16.mxu0 0
        %805 = vmatpush1.bf16.msra.mxu0 0
        %806 = vmatprep.subr.bf16.mxu0 0
        %807 = vmatpush1.bf16.msra.mxu0 0
        %808 = vmatprep.subr.bf16.mxu0 0
        %809 = vmatpush1.bf16.msra.mxu0 0
        %810 = vmatprep.subr.bf16.mxu0 0
        %811 = vmatpush1.bf16.msra.mxu0 0
        %812 = vmatprep.subr.bf16.mxu0 0
        %813 = vmatpush1.bf16.msra.mxu0 0
        %814 = vmatprep.subr.bf16.mxu0 0
        %815 = vmatpush1.bf16.msra.mxu0 0
        %816 = vmatprep.subr.bf16.mxu0 0
        %817 = vmatpush1.bf16.msra.mxu0 %v800
        %818 = vmatprep.subr.bf16.mxu0 0
        %819 = vmatpush2.bf16.msra.mxu0 0
        %820 = vmatprep.subr.bf16.mxu0 0
        %821 = vmatpush2.bf16.msra.mxu0 0
        %822 = vmatprep.subr.bf16.mxu0 0
        %823 = vmatpush2.bf16.msra.mxu0 0
        %824 = vmatprep.subr.bf16.mxu0 0
        %825 = vmatpush2.bf16.msra.mxu0 0
        %826 = vmatprep.subr.bf16.mxu0 0
        %827 = vmatpush2.bf16.msra.mxu0 0
        %828 = vmatprep.subr.bf16.mxu0 0
        %829 = vmatpush2.bf16.msra.mxu0 0
        %830 = vmatprep.subr.bf16.mxu0 0
        %831 = vmatpush2.bf16.msra.mxu0 0
        %832 = vmatprep.subr.bf16.mxu0 0
        %833 = vmatpush2.bf16.msra.mxu0 0
        %834 = vmatprep.mubr.bf16.mxu0 0
        %835 = vmatmul.mubr.bf16.gmra.mxu0 %v624
        %v836 = vpop.f32.mrf.mxu0
        %v837 = vadd.f32 0.0, %v836
        %v838 = vpop.f32.mrf.mxu0
        %v839 = vpop.f32.mrf.mxu0
        %v840 = vpop.f32.mrf.mxu0
        %841 = vdwg.mxu0
        %v843 = vsel %vm626, %v611, 0
        %845 = vmatprep.subr.bf16.mxu0 0
        %846 = vmatpush1.bf16.msra.mxu0 0
        %847 = vmatprep.subr.bf16.mxu0 0
        %848 = vmatpush1.bf16.msra.mxu0 0
        %849 = vmatprep.subr.bf16.mxu0 0
        %850 = vmatpush1.bf16.msra.mxu0 0
        %851 = vmatprep.subr.bf16.mxu0 0
        %852 = vmatpush1.bf16.msra.mxu0 0
        %853 = vmatprep.subr.bf16.mxu0 0
        %854 = vmatpush1.bf16.msra.mxu0 0
        %855 = vmatprep.subr.bf16.mxu0 0
        %856 = vmatpush1.bf16.msra.mxu0 0
        %857 = vmatprep.subr.bf16.mxu0 0
        %858 = vmatpush1.bf16.msra.mxu0 0
        %859 = vmatprep.subr.bf16.mxu0 0
        %860 = vmatpush1.bf16.msra.mxu0 %v843
        %861 = vmatprep.subr.bf16.mxu0 0
        %862 = vmatpush2.bf16.msra.mxu0 0
        %863 = vmatprep.subr.bf16.mxu0 0
        %864 = vmatpush2.bf16.msra.mxu0 0
        %865 = vmatprep.subr.bf16.mxu0 0
        %866 = vmatpush2.bf16.msra.mxu0 0
        %867 = vmatprep.subr.bf16.mxu0 0
        %868 = vmatpush2.bf16.msra.mxu0 0
        %869 = vmatprep.subr.bf16.mxu0 0
        %870 = vmatpush2.bf16.msra.mxu0 0
        %871 = vmatprep.subr.bf16.mxu0 0
        %872 = vmatpush2.bf16.msra.mxu0 0
        %873 = vmatprep.subr.bf16.mxu0 0
        %874 = vmatpush2.bf16.msra.mxu0 0
        %875 = vmatprep.subr.bf16.mxu0 0
        %876 = vmatpush2.bf16.msra.mxu0 0
        %877 = vmatprep.mubr.bf16.mxu0 0
        %878 = vmatmul.mubr.bf16.gmra.mxu0 %v624
        %v879 = vpop.f32.mrf.mxu0
        %v880 = vadd.f32 0.0, %v879
        %v881 = vpop.f32.mrf.mxu0
        %v882 = vpop.f32.mrf.mxu0
        %v883 = vpop.f32.mrf.mxu0
        %884 = vdwg.mxu0
        %v886 = vsel %vm626, %v612, 0
        %888 = vmatprep.subr.bf16.mxu0 0
        %889 = vmatpush1.bf16.msra.mxu0 0
        %890 = vmatprep.subr.bf16.mxu0 0
        %891 = vmatpush1.bf16.msra.mxu0 0
        %892 = vmatprep.subr.bf16.mxu0 0
        %893 = vmatpush1.bf16.msra.mxu0 0
        %894 = vmatprep.subr.bf16.mxu0 0
        %895 = vmatpush1.bf16.msra.mxu0 0
        %896 = vmatprep.subr.bf16.mxu0 0
        %897 = vmatpush1.bf16.msra.mxu0 0
        %898 = vmatprep.subr.bf16.mxu0 0
        %899 = vmatpush1.bf16.msra.mxu0 0
        %900 = vmatprep.subr.bf16.mxu0 0
        %901 = vmatpush1.bf16.msra.mxu0 0
        %902 = vmatprep.subr.bf16.mxu0 0
        %903 = vmatpush1.bf16.msra.mxu0 %v886
        %904 = vmatprep.subr.bf16.mxu0 0
        %905 = vmatpush2.bf16.msra.mxu0 0
        %906 = vmatprep.subr.bf16.mxu0 0
        %907 = vmatpush2.bf16.msra.mxu0 0
        %908 = vmatprep.subr.bf16.mxu0 0
        %909 = vmatpush2.bf16.msra.mxu0 0
        %910 = vmatprep.subr.bf16.mxu0 0
        %911 = vmatpush2.bf16.msra.mxu0 0
        %912 = vmatprep.subr.bf16.mxu0 0
        %913 = vmatpush2.bf16.msra.mxu0 0
        %914 = vmatprep.subr.bf16.mxu0 0
        %915 = vmatpush2.bf16.msra.mxu0 0
        %916 = vmatprep.subr.bf16.mxu0 0
        %917 = vmatpush2.bf16.msra.mxu0 0
        %918 = vmatprep.subr.bf16.mxu0 0
        %919 = vmatpush2.bf16.msra.mxu0 0
        %920 = vmatprep.mubr.bf16.mxu0 0
        %921 = vmatmul.mubr.bf16.gmra.mxu0 %v624
        %v922 = vpop.f32.mrf.mxu0
        %v923 = vadd.f32 0.0, %v922
        %v924 = vpop.f32.mrf.mxu0
        %v925 = vpop.f32.mrf.mxu0
        %v926 = vpop.f32.mrf.mxu0
        %927 = vdwg.mxu0
        %v929 = vsel %vm626, %v613, 0
        %931 = vmatprep.subr.bf16.mxu0 0
        %932 = vmatpush1.bf16.msra.mxu0 0
        %933 = vmatprep.subr.bf16.mxu0 0
        %934 = vmatpush1.bf16.msra.mxu0 0
        %935 = vmatprep.subr.bf16.mxu0 0
        %936 = vmatpush1.bf16.msra.mxu0 0
        %937 = vmatprep.subr.bf16.mxu0 0
        %938 = vmatpush1.bf16.msra.mxu0 0
        %939 = vmatprep.subr.bf16.mxu0 0
        %940 = vmatpush1.bf16.msra.mxu0 0
        %941 = vmatprep.subr.bf16.mxu0 0
        %942 = vmatpush1.bf16.msra.mxu0 0
        %943 = vmatprep.subr.bf16.mxu0 0
        %944 = vmatpush1.bf16.msra.mxu0 0
        %945 = vmatprep.subr.bf16.mxu0 0
        %946 = vmatpush1.bf16.msra.mxu0 %v929
        %947 = vmatprep.subr.bf16.mxu0 0
        %948 = vmatpush2.bf16.msra.mxu0 0
        %949 = vmatprep.subr.bf16.mxu0 0
        %950 = vmatpush2.bf16.msra.mxu0 0
        %951 = vmatprep.subr.bf16.mxu0 0
        %952 = vmatpush2.bf16.msra.mxu0 0
        %953 = vmatprep.subr.bf16.mxu0 0
        %954 = vmatpush2.bf16.msra.mxu0 0
        %955 = vmatprep.subr.bf16.mxu0 0
        %956 = vmatpush2.bf16.msra.mxu0 0
        %957 = vmatprep.subr.bf16.mxu0 0
        %958 = vmatpush2.bf16.msra.mxu0 0
        %959 = vmatprep.subr.bf16.mxu0 0
        %960 = vmatpush2.bf16.msra.mxu0 0
        %961 = vmatprep.subr.bf16.mxu0 0
        %962 = vmatpush2.bf16.msra.mxu0 0
        %963 = vmatprep.mubr.bf16.mxu0 0
        %964 = vmatmul.mubr.bf16.gmra.mxu0 %v624
        %v965 = vpop.f32.mrf.mxu0
        %v966 = vadd.f32 0.0, %v965
        %v967 = vpop.f32.mrf.mxu0
        %v968 = vpop.f32.mrf.mxu0
        %v969 = vpop.f32.mrf.mxu0
        %970 = vdwg.mxu0
        %v972 = vsel %vm626, %v614, 0
        %974 = vmatprep.subr.bf16.mxu0 0
        %975 = vmatpush1.bf16.msra.mxu0 0
        %976 = vmatprep.subr.bf16.mxu0 0
        %977 = vmatpush1.bf16.msra.mxu0 0
        %978 = vmatprep.subr.bf16.mxu0 0
        %979 = vmatpush1.bf16.msra.mxu0 0
        %980 = vmatprep.subr.bf16.mxu0 0
        %981 = vmatpush1.bf16.msra.mxu0 0
        %982 = vmatprep.subr.bf16.mxu0 0
        %983 = vmatpush1.bf16.msra.mxu0 0
        %984 = vmatprep.subr.bf16.mxu0 0
        %985 = vmatpush1.bf16.msra.mxu0 0
        %986 = vmatprep.subr.bf16.mxu0 0
        %987 = vmatpush1.bf16.msra.mxu0 0
        %988 = vmatprep.subr.bf16.mxu0 0
        %989 = vmatpush1.bf16.msra.mxu0 %v972
        %990 = vmatprep.subr.bf16.mxu0 0
        %991 = vmatpush2.bf16.msra.mxu0 0
        %992 = vmatprep.subr.bf16.mxu0 0
        %993 = vmatpush2.bf16.msra.mxu0 0
        %994 = vmatprep.subr.bf16.mxu0 0
        %995 = vmatpush2.bf16.msra.mxu0 0
        %996 = vmatprep.subr.bf16.mxu0 0
        %997 = vmatpush2.bf16.msra.mxu0 0
        %998 = vmatprep.subr.bf16.mxu0 0
        %999 = vmatpush2.bf16.msra.mxu0 0
        %1000 = vmatprep.subr.bf16.mxu0 0
        %1001 = vmatpush2.bf16.msra.mxu0 0
        %1002 = vmatprep.subr.bf16.mxu0 0
        %1003 = vmatpush2.bf16.msra.mxu0 0
        %1004 = vmatprep.subr.bf16.mxu0 0
        %1005 = vmatpush2.bf16.msra.mxu0 0
        %1006 = vmatprep.mubr.bf16.mxu0 0
        %1007 = vmatmul.mubr.bf16.gmra.mxu0 %v624
        %v1008 = vpop.f32.mrf.mxu0
        %v1009 = vadd.f32 0.0, %v1008
        %v1010 = vpop.f32.mrf.mxu0
        %v1011 = vpop.f32.mrf.mxu0
        %v1012 = vpop.f32.mrf.mxu0
        %1013 = vdwg.mxu0
        %v1015 = vsel %vm626, %v615, 0
        %1017 = vmatprep.subr.bf16.mxu0 0
        %1018 = vmatpush1.bf16.msra.mxu0 0
        %1019 = vmatprep.subr.bf16.mxu0 0
        %1020 = vmatpush1.bf16.msra.mxu0 0
        %1021 = vmatprep.subr.bf16.mxu0 0
        %1022 = vmatpush1.bf16.msra.mxu0 0
        %1023 = vmatprep.subr.bf16.mxu0 0
        %1024 = vmatpush1.bf16.msra.mxu0 0
        %1025 = vmatprep.subr.bf16.mxu0 0
        %1026 = vmatpush1.bf16.msra.mxu0 0
        %1027 = vmatprep.subr.bf16.mxu0 0
        %1028 = vmatpush1.bf16.msra.mxu0 0
        %1029 = vmatprep.subr.bf16.mxu0 0
        %1030 = vmatpush1.bf16.msra.mxu0 0
        %1031 = vmatprep.subr.bf16.mxu0 0
        %1032 = vmatpush1.bf16.msra.mxu0 %v1015
        %1033 = vmatprep.subr.bf16.mxu0 0
        %1034 = vmatpush2.bf16.msra.mxu0 0
        %1035 = vmatprep.subr.bf16.mxu0 0
        %1036 = vmatpush2.bf16.msra.mxu0 0
        %1037 = vmatprep.subr.bf16.mxu0 0
        %1038 = vmatpush2.bf16.msra.mxu0 0
        %1039 = vmatprep.subr.bf16.mxu0 0
        %1040 = vmatpush2.bf16.msra.mxu0 0
        %1041 = vmatprep.subr.bf16.mxu0 0
        %1042 = vmatpush2.bf16.msra.mxu0 0
        %1043 = vmatprep.subr.bf16.mxu0 0
        %1044 = vmatpush2.bf16.msra.mxu0 0
        %1045 = vmatprep.subr.bf16.mxu0 0
        %1046 = vmatpush2.bf16.msra.mxu0 0
        %1047 = vmatprep.subr.bf16.mxu0 0
        %1048 = vmatpush2.bf16.msra.mxu0 0
        %1049 = vmatprep.mubr.bf16.mxu0 0
        %1050 = vmatmul.mubr.bf16.gmra.mxu0 %v624
        %v1051 = vpop.f32.mrf.mxu0
        %v1052 = vadd.f32 0.0, %v1051
        %v1053 = vpop.f32.mrf.mxu0
        %v1054 = vpop.f32.mrf.mxu0
        %v1055 = vpop.f32.mrf.mxu0
        %1056 = vdwg.mxu0
        %v1058 = vsel %vm626, %v616, 0
        %1060 = vmatprep.subr.bf16.mxu0 0
        %1061 = vmatpush1.bf16.msra.mxu0 0
        %1062 = vmatprep.subr.bf16.mxu0 0
        %1063 = vmatpush1.bf16.msra.mxu0 0
        %1064 = vmatprep.subr.bf16.mxu0 0
        %1065 = vmatpush1.bf16.msra.mxu0 0
        %1066 = vmatprep.subr.bf16.mxu0 0
        %1067 = vmatpush1.bf16.msra.mxu0 0
        %1068 = vmatprep.subr.bf16.mxu0 0
        %1069 = vmatpush1.bf16.msra.mxu0 0
        %1070 = vmatprep.subr.bf16.mxu0 0
        %1071 = vmatpush1.bf16.msra.mxu0 0
        %1072 = vmatprep.subr.bf16.mxu0 0
        %1073 = vmatpush1.bf16.msra.mxu0 0
        %1074 = vmatprep.subr.bf16.mxu0 0
        %1075 = vmatpush1.bf16.msra.mxu0 %v1058
        %1076 = vmatprep.subr.bf16.mxu0 0
        %1077 = vmatpush2.bf16.msra.mxu0 0
        %1078 = vmatprep.subr.bf16.mxu0 0
        %1079 = vmatpush2.bf16.msra.mxu0 0
        %1080 = vmatprep.subr.bf16.mxu0 0
        %1081 = vmatpush2.bf16.msra.mxu0 0
        %1082 = vmatprep.subr.bf16.mxu0 0
        %1083 = vmatpush2.bf16.msra.mxu0 0
        %1084 = vmatprep.subr.bf16.mxu0 0
        %1085 = vmatpush2.bf16.msra.mxu0 0
        %1086 = vmatprep.subr.bf16.mxu0 0
        %1087 = vmatpush2.bf16.msra.mxu0 0
        %1088 = vmatprep.subr.bf16.mxu0 0
        %1089 = vmatpush2.bf16.msra.mxu0 0
        %1090 = vmatprep.subr.bf16.mxu0 0
        %1091 = vmatpush2.bf16.msra.mxu0 0
        %1092 = vmatprep.mubr.bf16.mxu0 0
        %1093 = vmatmul.mubr.bf16.gmra.mxu0 %v624
        %v1094 = vpop.f32.mrf.mxu0
        %v1095 = vadd.f32 0.0, %v1094
        %v1096 = vpop.f32.mrf.mxu0
        %v1097 = vpop.f32.mrf.mxu0
        %v1098 = vpop.f32.mrf.mxu0
        %1099 = vdwg.mxu0
        %v1101 = vsel %vm626, %v617, 0
        %1103 = vmatprep.subr.bf16.mxu0 0
        %1104 = vmatpush1.bf16.msra.mxu0 0
        %1105 = vmatprep.subr.bf16.mxu0 0
        %1106 = vmatpush1.bf16.msra.mxu0 0
        %1107 = vmatprep.subr.bf16.mxu0 0
        %1108 = vmatpush1.bf16.msra.mxu0 0
        %1109 = vmatprep.subr.bf16.mxu0 0
        %1110 = vmatpush1.bf16.msra.mxu0 0
        %1111 = vmatprep.subr.bf16.mxu0 0
        %1112 = vmatpush1.bf16.msra.mxu0 0
        %1113 = vmatprep.subr.bf16.mxu0 0
        %1114 = vmatpush1.bf16.msra.mxu0 0
        %1115 = vmatprep.subr.bf16.mxu0 0
        %1116 = vmatpush1.bf16.msra.mxu0 0
        %1117 = vmatprep.subr.bf16.mxu0 0
        %1118 = vmatpush1.bf16.msra.mxu0 %v1101
        %1119 = vmatprep.subr.bf16.mxu0 0
        %1120 = vmatpush2.bf16.msra.mxu0 0
        %1121 = vmatprep.subr.bf16.mxu0 0
        %1122 = vmatpush2.bf16.msra.mxu0 0
        %1123 = vmatprep.subr.bf16.mxu0 0
        %1124 = vmatpush2.bf16.msra.mxu0 0
        %1125 = vmatprep.subr.bf16.mxu0 0
        %1126 = vmatpush2.bf16.msra.mxu0 0
        %1127 = vmatprep.subr.bf16.mxu0 0
        %1128 = vmatpush2.bf16.msra.mxu0 0
        %1129 = vmatprep.subr.bf16.mxu0 0
        %1130 = vmatpush2.bf16.msra.mxu0 0
        %1131 = vmatprep.subr.bf16.mxu0 0
        %1132 = vmatpush2.bf16.msra.mxu0 0
        %1133 = vmatprep.subr.bf16.mxu0 0
        %1134 = vmatpush2.bf16.msra.mxu0 0
        %1135 = vmatprep.mubr.bf16.mxu0 0
        %1136 = vmatmul.mubr.bf16.gmra.mxu0 %v624
        %v1137 = vpop.f32.mrf.mxu0
        %v1138 = vadd.f32 0.0, %v1137
        %v1139 = vpop.f32.mrf.mxu0
        %v1140 = vpop.f32.mrf.mxu0
        %v1141 = vpop.f32.mrf.mxu0
        %1142 = vdwg.mxu0
        %v1144 = vsel %vm626, %v618, 0
        %1146 = vmatprep.subr.bf16.mxu0 0
        %1147 = vmatpush1.bf16.msra.mxu0 0
        %1148 = vmatprep.subr.bf16.mxu0 0
        %1149 = vmatpush1.bf16.msra.mxu0 0
        %1150 = vmatprep.subr.bf16.mxu0 0
        %1151 = vmatpush1.bf16.msra.mxu0 0
        %1152 = vmatprep.subr.bf16.mxu0 0
        %1153 = vmatpush1.bf16.msra.mxu0 0
        %1154 = vmatprep.subr.bf16.mxu0 0
        %1155 = vmatpush1.bf16.msra.mxu0 0
        %1156 = vmatprep.subr.bf16.mxu0 0
        %1157 = vmatpush1.bf16.msra.mxu0 0
        %1158 = vmatprep.subr.bf16.mxu0 0
        %1159 = vmatpush1.bf16.msra.mxu0 0
        %1160 = vmatprep.subr.bf16.mxu0 0
        %1161 = vmatpush1.bf16.msra.mxu0 %v1144
        %1162 = vmatprep.subr.bf16.mxu0 0
        %1163 = vmatpush2.bf16.msra.mxu0 0
        %1164 = vmatprep.subr.bf16.mxu0 0
        %1165 = vmatpush2.bf16.msra.mxu0 0
        %1166 = vmatprep.subr.bf16.mxu0 0
        %1167 = vmatpush2.bf16.msra.mxu0 0
        %1168 = vmatprep.subr.bf16.mxu0 0
        %1169 = vmatpush2.bf16.msra.mxu0 0
        %1170 = vmatprep.subr.bf16.mxu0 0
        %1171 = vmatpush2.bf16.msra.mxu0 0
        %1172 = vmatprep.subr.bf16.mxu0 0
        %1173 = vmatpush2.bf16.msra.mxu0 0
        %1174 = vmatprep.subr.bf16.mxu0 0
        %1175 = vmatpush2.bf16.msra.mxu0 0
        %1176 = vmatprep.subr.bf16.mxu0 0
        %1177 = vmatpush2.bf16.msra.mxu0 0
        %1178 = vmatprep.mubr.bf16.mxu0 0
        %1179 = vmatmul.mubr.bf16.gmra.mxu0 %v624
        %v1180 = vpop.f32.mrf.mxu0
        %v1181 = vadd.f32 0.0, %v1180
        %v1182 = vpop.f32.mrf.mxu0
        %v1183 = vpop.f32.mrf.mxu0
        %v1184 = vpop.f32.mrf.mxu0
        %1185 = vdwg.mxu0
        %v1187 = vsel %vm626, %v619, 0
        %1189 = vmatprep.subr.bf16.mxu0 0
        %1190 = vmatpush1.bf16.msra.mxu0 0
        %1191 = vmatprep.subr.bf16.mxu0 0
        %1192 = vmatpush1.bf16.msra.mxu0 0
        %1193 = vmatprep.subr.bf16.mxu0 0
        %1194 = vmatpush1.bf16.msra.mxu0 0
        %1195 = vmatprep.subr.bf16.mxu0 0
        %1196 = vmatpush1.bf16.msra.mxu0 0
        %1197 = vmatprep.subr.bf16.mxu0 0
        %1198 = vmatpush1.bf16.msra.mxu0 0
        %1199 = vmatprep.subr.bf16.mxu0 0
        %1200 = vmatpush1.bf16.msra.mxu0 0
        %1201 = vmatprep.subr.bf16.mxu0 0
        %1202 = vmatpush1.bf16.msra.mxu0 0
        %1203 = vmatprep.subr.bf16.mxu0 0
        %1204 = vmatpush1.bf16.msra.mxu0 %v1187
        %1205 = vmatprep.subr.bf16.mxu0 0
        %1206 = vmatpush2.bf16.msra.mxu0 0
        %1207 = vmatprep.subr.bf16.mxu0 0
        %1208 = vmatpush2.bf16.msra.mxu0 0
        %1209 = vmatprep.subr.bf16.mxu0 0
        %1210 = vmatpush2.bf16.msra.mxu0 0
        %1211 = vmatprep.subr.bf16.mxu0 0
        %1212 = vmatpush2.bf16.msra.mxu0 0
        %1213 = vmatprep.subr.bf16.mxu0 0
        %1214 = vmatpush2.bf16.msra.mxu0 0
        %1215 = vmatprep.subr.bf16.mxu0 0
        %1216 = vmatpush2.bf16.msra.mxu0 0
        %1217 = vmatprep.subr.bf16.mxu0 0
        %1218 = vmatpush2.bf16.msra.mxu0 0
        %1219 = vmatprep.subr.bf16.mxu0 0
        %1220 = vmatpush2.bf16.msra.mxu0 0
        %1221 = vmatprep.mubr.bf16.mxu0 0
        %1222 = vmatmul.mubr.bf16.gmra.mxu0 %v624
        %v1223 = vpop.f32.mrf.mxu0
        %v1224 = vadd.f32 0.0, %v1223
        %v1225 = vpop.f32.mrf.mxu0
        %v1226 = vpop.f32.mrf.mxu0
        %v1227 = vpop.f32.mrf.mxu0
        %1228 = vdwg.mxu0
        %v1230 = vsel %vm626, %v620, 0
        %1232 = vmatprep.subr.bf16.mxu0 0
        %1233 = vmatpush1.bf16.msra.mxu0 0
        %1234 = vmatprep.subr.bf16.mxu0 0
        %1235 = vmatpush1.bf16.msra.mxu0 0
        %1236 = vmatprep.subr.bf16.mxu0 0
        %1237 = vmatpush1.bf16.msra.mxu0 0
        %1238 = vmatprep.subr.bf16.mxu0 0
        %1239 = vmatpush1.bf16.msra.mxu0 0
        %1240 = vmatprep.subr.bf16.mxu0 0
        %1241 = vmatpush1.bf16.msra.mxu0 0
        %1242 = vmatprep.subr.bf16.mxu0 0
        %1243 = vmatpush1.bf16.msra.mxu0 0
        %1244 = vmatprep.subr.bf16.mxu0 0
        %1245 = vmatpush1.bf16.msra.mxu0 0
        %1246 = vmatprep.subr.bf16.mxu0 0
        %1247 = vmatpush1.bf16.msra.mxu0 %v1230
        %1248 = vmatprep.subr.bf16.mxu0 0
        %1249 = vmatpush2.bf16.msra.mxu0 0
        %1250 = vmatprep.subr.bf16.mxu0 0
        %1251 = vmatpush2.bf16.msra.mxu0 0
        %1252 = vmatprep.subr.bf16.mxu0 0
        %1253 = vmatpush2.bf16.msra.mxu0 0
        %1254 = vmatprep.subr.bf16.mxu0 0
        %1255 = vmatpush2.bf16.msra.mxu0 0
        %1256 = vmatprep.subr.bf16.mxu0 0
        %1257 = vmatpush2.bf16.msra.mxu0 0
        %1258 = vmatprep.subr.bf16.mxu0 0
        %1259 = vmatpush2.bf16.msra.mxu0 0
        %1260 = vmatprep.subr.bf16.mxu0 0
        %1261 = vmatpush2.bf16.msra.mxu0 0
        %1262 = vmatprep.subr.bf16.mxu0 0
        %1263 = vmatpush2.bf16.msra.mxu0 0
        %1264 = vmatprep.mubr.bf16.mxu0 0
        %1265 = vmatmul.mubr.bf16.gmra.mxu0 %v624
        %v1266 = vpop.f32.mrf.mxu0
        %v1267 = vadd.f32 0.0, %v1266
        %v1268 = vpop.f32.mrf.mxu0
        %v1269 = vpop.f32.mrf.mxu0
        %v1270 = vpop.f32.mrf.mxu0
        %1271 = vdwg.mxu0
        %v1273 = vsel %vm626, %v621, 0
        %1275 = vmatprep.subr.bf16.mxu0 0
        %1276 = vmatpush1.bf16.msra.mxu0 0
        %1277 = vmatprep.subr.bf16.mxu0 0
        %1278 = vmatpush1.bf16.msra.mxu0 0
        %1279 = vmatprep.subr.bf16.mxu0 0
        %1280 = vmatpush1.bf16.msra.mxu0 0
        %1281 = vmatprep.subr.bf16.mxu0 0
        %1282 = vmatpush1.bf16.msra.mxu0 0
        %1283 = vmatprep.subr.bf16.mxu0 0
        %1284 = vmatpush1.bf16.msra.mxu0 0
        %1285 = vmatprep.subr.bf16.mxu0 0
        %1286 = vmatpush1.bf16.msra.mxu0 0
        %1287 = vmatprep.subr.bf16.mxu0 0
        %1288 = vmatpush1.bf16.msra.mxu0 0
        %1289 = vmatprep.subr.bf16.mxu0 0
        %1290 = vmatpush1.bf16.msra.mxu0 %v1273
        %1291 = vmatprep.subr.bf16.mxu0 0
        %1292 = vmatpush2.bf16.msra.mxu0 0
        %1293 = vmatprep.subr.bf16.mxu0 0
        %1294 = vmatpush2.bf16.msra.mxu0 0
        %1295 = vmatprep.subr.bf16.mxu0 0
        %1296 = vmatpush2.bf16.msra.mxu0 0
        %1297 = vmatprep.subr.bf16.mxu0 0
        %1298 = vmatpush2.bf16.msra.mxu0 0
        %1299 = vmatprep.subr.bf16.mxu0 0
        %1300 = vmatpush2.bf16.msra.mxu0 0
        %1301 = vmatprep.subr.bf16.mxu0 0
        %1302 = vmatpush2.bf16.msra.mxu0 0
        %1303 = vmatprep.subr.bf16.mxu0 0
        %1304 = vmatpush2.bf16.msra.mxu0 0
        %1305 = vmatprep.subr.bf16.mxu0 0
        %1306 = vmatpush2.bf16.msra.mxu0 0
        %1307 = vmatprep.mubr.bf16.mxu0 0
        %1308 = vmatmul.mubr.bf16.gmra.mxu0 %v624
        %v1309 = vpop.f32.mrf.mxu0
        %v1310 = vadd.f32 0.0, %v1309
        %v1311 = vpop.f32.mrf.mxu0
        %v1312 = vpop.f32.mrf.mxu0
        %v1313 = vpop.f32.mrf.mxu0
        %1314 = vdwg.mxu0
        %v1315 = vpack.c.bf16 %v708, %v665
        %v1316 = vpack.c.bf16 %v794, %v751
        %v1317 = vpack.c.bf16 %v880, %v837
        %v1318 = vpack.c.bf16 %v966, %v923
        %v1319 = vpack.c.bf16 %v1052, %v1009
        %v1320 = vpack.c.bf16 %v1138, %v1095
        %v1321 = vpack.c.bf16 %v1224, %v1181
        %v1322 = vpack.c.bf16 %v1310, %v1267
        %vm1323 = vcmask 64512
        %v1325 = vsel %vm1323, %v1315, 0
        %v1328 = vsel %vm1323, %v1316, 0
        %v1331 = vsel %vm1323, %v1317, 0
        %v1334 = vsel %vm1323, %v1318, 0
        %v1337 = vsel %vm1323, %v1319, 0
        %v1340 = vsel %vm1323, %v1320, 0
        %v1343 = vsel %vm1323, %v1321, 0
        %v1346 = vsel %vm1323, %v1322, 0
        %vm1348 = vcmask 1043456
        %v1350 = vsel %vm1348, %v605, 0
        %1352 = vmatprep.subr.bf16.mxu0 0
        %1353 = vmatpush1.bf16.msra.mxu0 0
        %1354 = vmatprep.subr.bf16.mxu0 0
        %1355 = vmatpush1.bf16.msra.mxu0 0
        %1356 = vmatprep.subr.bf16.mxu0 0
        %1357 = vmatpush1.bf16.msra.mxu0 0
        %1358 = vmatprep.subr.bf16.mxu0 0
        %1359 = vmatpush1.bf16.msra.mxu0 0
        %1360 = vmatprep.subr.bf16.mxu0 0
        %1361 = vmatpush1.bf16.msra.mxu0 0
        %1362 = vmatprep.subr.bf16.mxu0 0
        %1363 = vmatpush1.bf16.msra.mxu0 0
        %1364 = vmatprep.subr.bf16.mxu0 0
        %1365 = vmatpush1.bf16.msra.mxu0 0
        %1366 = vmatprep.subr.bf16.mxu0 0
        %1367 = vmatpush1.bf16.msra.mxu0 %v1350
        %1368 = vmatprep.subr.bf16.mxu0 0
        %1369 = vmatpush2.bf16.msra.mxu0 0
        %1370 = vmatprep.subr.bf16.mxu0 0
        %1371 = vmatpush2.bf16.msra.mxu0 0
        %1372 = vmatprep.subr.bf16.mxu0 0
        %1373 = vmatpush2.bf16.msra.mxu0 0
        %1374 = vmatprep.subr.bf16.mxu0 0
        %1375 = vmatpush2.bf16.msra.mxu0 0
        %1376 = vmatprep.subr.bf16.mxu0 0
        %1377 = vmatpush2.bf16.msra.mxu0 0
        %1378 = vmatprep.subr.bf16.mxu0 0
        %1379 = vmatpush2.bf16.msra.mxu0 0
        %1380 = vmatprep.subr.bf16.mxu0 0
        %1381 = vmatpush2.bf16.msra.mxu0 0
        %1382 = vmatprep.subr.bf16.mxu0 0
        %1383 = vmatpush2.bf16.msra.mxu0 0
        %1384 = vmatprep.mubr.bf16.mxu0 0
        %1385 = vmatmul.mubr.bf16.gmra.mxu0 %v1325
        %v1386 = vpop.f32.mrf.mxu0
        %v1387 = vadd.f32 0.0, %v1386
        %v1388 = vpop.f32.mrf.mxu0
        %v1389 = vpop.f32.mrf.mxu0
        %v1390 = vadd.f32 0.0, %v1389
        %v1391 = vpop.f32.mrf.mxu0
        %1392 = vmatprep.mubr.bf16.mxu0 0
        %1393 = vmatmul.mubr.bf16.gmra.mxu0 %v1328
        %v1394 = vpop.f32.mrf.mxu0
        %v1395 = vadd.f32 0.0, %v1394
        %v1396 = vpop.f32.mrf.mxu0
        %v1397 = vpop.f32.mrf.mxu0
        %v1398 = vadd.f32 0.0, %v1397
        %v1399 = vpop.f32.mrf.mxu0
        %1400 = vmatprep.mubr.bf16.mxu0 0
        %1401 = vmatmul.mubr.bf16.gmra.mxu0 %v1331
        %v1402 = vpop.f32.mrf.mxu0
        %v1403 = vadd.f32 0.0, %v1402
        %v1404 = vpop.f32.mrf.mxu0
        %v1405 = vpop.f32.mrf.mxu0
        %v1406 = vadd.f32 0.0, %v1405
        %v1407 = vpop.f32.mrf.mxu0
        %1408 = vmatprep.mubr.bf16.mxu0 0
        %1409 = vmatmul.mubr.bf16.gmra.mxu0 %v1334
        %v1410 = vpop.f32.mrf.mxu0
        %v1411 = vadd.f32 0.0, %v1410
        %v1412 = vpop.f32.mrf.mxu0
        %v1413 = vpop.f32.mrf.mxu0
        %v1414 = vadd.f32 0.0, %v1413
        %v1415 = vpop.f32.mrf.mxu0
        %1416 = vmatprep.mubr.bf16.mxu0 0
        %1417 = vmatmul.mubr.bf16.gmra.mxu0 %v1337
        %v1418 = vpop.f32.mrf.mxu0
        %v1419 = vadd.f32 0.0, %v1418
        %v1420 = vpop.f32.mrf.mxu0
        %v1421 = vpop.f32.mrf.mxu0
        %v1422 = vadd.f32 0.0, %v1421
        %v1423 = vpop.f32.mrf.mxu0
        %1424 = vmatprep.mubr.bf16.mxu0 0
        %1425 = vmatmul.mubr.bf16.gmra.mxu0 %v1340
        %v1426 = vpop.f32.mrf.mxu0
        %v1427 = vadd.f32 0.0, %v1426
        %v1428 = vpop.f32.mrf.mxu0
        %v1429 = vpop.f32.mrf.mxu0
        %v1430 = vadd.f32 0.0, %v1429
        %v1431 = vpop.f32.mrf.mxu0
        %1432 = vmatprep.mubr.bf16.mxu0 0
        %1433 = vmatmul.mubr.bf16.gmra.mxu0 %v1343
        %v1434 = vpop.f32.mrf.mxu0
        %v1435 = vadd.f32 0.0, %v1434
        %v1436 = vpop.f32.mrf.mxu0
        %v1437 = vpop.f32.mrf.mxu0
        %v1438 = vadd.f32 0.0, %v1437
        %v1439 = vpop.f32.mrf.mxu0
        %1440 = vmatprep.mubr.bf16.mxu0 0
        %1441 = vmatmul.mubr.bf16.gmra.mxu0 %v1346
        %v1442 = vpop.f32.mrf.mxu0
        %v1443 = vadd.f32 0.0, %v1442
        %v1444 = vpop.f32.mrf.mxu0
        %v1445 = vpop.f32.mrf.mxu0
        %v1446 = vadd.f32 0.0, %v1445
        %v1447 = vpop.f32.mrf.mxu0
        %1448 = vdwg.mxu0
        %v1449 = vadd.f32 %v588, %v1387
        %v1450 = vadd.f32 %v589, %v1390
        %v1451 = vadd.f32 %v590, %v1395
        %v1452 = vadd.f32 %v591, %v1398
        %v1453 = vadd.f32 %v592, %v1403
        %v1454 = vadd.f32 %v593, %v1406
        %v1455 = vadd.f32 %v594, %v1411
        %v1456 = vadd.f32 %v595, %v1414
        %v1457 = vadd.f32 %v596, %v1419
        %v1458 = vadd.f32 %v597, %v1422
        %v1459 = vadd.f32 %v598, %v1427
        %v1460 = vadd.f32 %v599, %v1430
        %v1461 = vadd.f32 %v600, %v1435
        %v1462 = vadd.f32 %v601, %v1438
        %v1463 = vadd.f32 %v602, %v1443
        %v1464 = vadd.f32 %v603, %v1446
        %v1465 = vld [vmem:[%s540] sm:$0xff]
        %v1466 = vld [vmem:[%s540 + $0x8] sm:$0xff]
        %v1467 = vld [vmem:[%s540 + $0x10] sm:$0xff]
        %v1468 = vld [vmem:[%s540 + $0x18] sm:$0xff]
        %v1469 = vld [vmem:[%s540 + $0x20] sm:$0xff]
        %v1470 = vld [vmem:[%s540 + $0x28] sm:$0xff]
        %v1471 = vld [vmem:[%s540 + $0x30] sm:$0xff]
        %v1472 = vld [vmem:[%s540 + $0x38] sm:$0xff]
        %v1473 = vld [vmem:[%s540 + $0x40] sm:$0xff]
        %v1474 = vld [vmem:[%s540 + $0x48] sm:$0xff]
        %v1475 = vld [vmem:[%s540 + $0x50] sm:$0xff]
        %v1476 = vld [vmem:[%s540 + $0x58] sm:$0xff]
        %v1477 = vld [vmem:[%s540 + $0x60] sm:$0xff]
        %v1478 = vld [vmem:[%s540 + $0x68] sm:$0xff]
        %v1479 = vld [vmem:[%s540 + $0x70] sm:$0xff]
        %v1480 = vld [vmem:[%s540 + $0x78] sm:$0xff]
        %v1481 = vld [vmem:[%s540 + $0x80] sm:$0xff]
        %v1482 = vld [vmem:[%s540 + $0x88] sm:$0xff]
        %v1483 = vld [vmem:[%s540 + $0x90] sm:$0xff]
        %v1484 = vld [vmem:[%s540 + $0x98] sm:$0xff]
        %v1485 = vld [vmem:[%s540 + $0xa0] sm:$0xff]
        %v1486 = vld [vmem:[%s540 + $0xa8] sm:$0xff]
        %v1487 = vld [vmem:[%s540 + $0xb0] sm:$0xff]
        %v1488 = vld [vmem:[%s540 + $0xb8] sm:$0xff]
        %v1489 = vld [vmem:[%s540 + $0xc0] sm:$0xff]
        %v1490 = vld [vmem:[%s540 + $0xc8] sm:$0xff]
        %v1491 = vld [vmem:[%s540 + $0xd0] sm:$0xff]
        %v1492 = vld [vmem:[%s540 + $0xd8] sm:$0xff]
        %v1493 = vld [vmem:[%s540 + $0xe0] sm:$0xff]
        %v1494 = vld [vmem:[%s540 + $0xe8] sm:$0xff]
        %v1495 = vld [vmem:[%s540 + $0xf0] sm:$0xff]
        %v1496 = vld [vmem:[%s540 + $0xf8] sm:$0xff]
        %v1497 = vld [vmem:[%s565] sm:$0xf]
        %v1498 = vld [vmem:[%s565 + $0x4] sm:$0xf]
        %v1499 = vld [vmem:[%s11] sm:$0xf]
        %v1500 = vld [vmem:[%s11 + $0x4] sm:$0xf]
        %v1501 = vpack.c.bf16 %v1449, %v1449
        %v1502 = vpack.c.bf16 %v1450, %v1450
        %v1503 = vpack.c.bf16 %v1451, %v1451
        %v1504 = vpack.c.bf16 %v1452, %v1452
        %v1505 = vpack.c.bf16 %v1453, %v1453
        %v1506 = vpack.c.bf16 %v1454, %v1454
        %v1507 = vpack.c.bf16 %v1455, %v1455
        %v1508 = vpack.c.bf16 %v1456, %v1456
        %v1509 = vpack.c.bf16 %v1457, %v1457
        %v1510 = vpack.c.bf16 %v1458, %v1458
        %v1511 = vpack.c.bf16 %v1459, %v1459
        %v1512 = vpack.c.bf16 %v1460, %v1460
        %v1513 = vpack.c.bf16 %v1461, %v1461
        %v1514 = vpack.c.bf16 %v1462, %v1462
        %v1515 = vpack.c.bf16 %v1463, %v1463
        %v1516 = vpack.c.bf16 %v1464, %v1464
        %v1519 = vunpack.c.l.b16 %v1497
        %v1520 = vunpack.c.l.b16 %v1498
        %v1521 = vpack.c.b16 %v1520, %v1519
        %v1523 = vsel %vm1323, %v1521, 0
        %v1526 = vsel %vm1348, %v1501, 0
        %1528 = vmatprep.subr.bf16.mxu0 0
        %1529 = vmatpush1.bf16.msra.mxu0 0
        %1530 = vmatprep.subr.bf16.mxu0 0
        %1531 = vmatpush1.bf16.msra.mxu0 0
        %1532 = vmatprep.subr.bf16.mxu0 0
        %1533 = vmatpush1.bf16.msra.mxu0 0
        %1534 = vmatprep.subr.bf16.mxu0 0
        %1535 = vmatpush1.bf16.msra.mxu0 0
        %1536 = vmatprep.subr.bf16.mxu0 0
        %1537 = vmatpush1.bf16.msra.mxu0 0
        %1538 = vmatprep.subr.bf16.mxu0 0
        %1539 = vmatpush1.bf16.msra.mxu0 0
        %1540 = vmatprep.subr.bf16.mxu0 0
        %1541 = vmatpush1.bf16.msra.mxu0 0
        %1542 = vmatprep.subr.bf16.mxu0 0
        %1543 = vmatpush1.bf16.msra.mxu0 %v1526
        %1544 = vmatprep.subr.bf16.mxu0 0
        %1545 = vmatpush2.bf16.msra.mxu0 0
        %1546 = vmatprep.subr.bf16.mxu0 0
        %1547 = vmatpush2.bf16.msra.mxu0 0
        %1548 = vmatprep.subr.bf16.mxu0 0
        %1549 = vmatpush2.bf16.msra.mxu0 0
        %1550 = vmatprep.subr.bf16.mxu0 0
        %1551 = vmatpush2.bf16.msra.mxu0 0
        %1552 = vmatprep.subr.bf16.mxu0 0
        %1553 = vmatpush2.bf16.msra.mxu0 0
        %1554 = vmatprep.subr.bf16.mxu0 0
        %1555 = vmatpush2.bf16.msra.mxu0 0
        %1556 = vmatprep.subr.bf16.mxu0 0
        %1557 = vmatpush2.bf16.msra.mxu0 0
        %1558 = vmatprep.subr.bf16.mxu0 0
        %1559 = vmatpush2.bf16.msra.mxu0 0
        %1560 = vmatprep.mubr.bf16.mxu0 0
        %1561 = vmatmul.mubr.bf16.gmra.mxu0 %v1523
        %v1562 = vpop.f32.mrf.mxu0
        %v1563 = vadd.f32 0.0, %v1562
        %v1564 = vpop.f32.mrf.mxu0
        %v1565 = vpop.f32.mrf.mxu0
        %v1566 = vadd.f32 0.0, %v1565
        %v1567 = vpop.f32.mrf.mxu0
        %1568 = vdwg.mxu0
        %v1570 = vsel %vm1348, %v1502, 0
        %1572 = vmatprep.subr.bf16.mxu0 0
        %1573 = vmatpush1.bf16.msra.mxu0 0
        %1574 = vmatprep.subr.bf16.mxu0 0
        %1575 = vmatpush1.bf16.msra.mxu0 0
        %1576 = vmatprep.subr.bf16.mxu0 0
        %1577 = vmatpush1.bf16.msra.mxu0 0
        %1578 = vmatprep.subr.bf16.mxu0 0
        %1579 = vmatpush1.bf16.msra.mxu0 0
        %1580 = vmatprep.subr.bf16.mxu0 0
        %1581 = vmatpush1.bf16.msra.mxu0 0
        %1582 = vmatprep.subr.bf16.mxu0 0
        %1583 = vmatpush1.bf16.msra.mxu0 0
        %1584 = vmatprep.subr.bf16.mxu0 0
        %1585 = vmatpush1.bf16.msra.mxu0 0
        %1586 = vmatprep.subr.bf16.mxu0 0
        %1587 = vmatpush1.bf16.msra.mxu0 %v1570
        %1588 = vmatprep.subr.bf16.mxu0 0
        %1589 = vmatpush2.bf16.msra.mxu0 0
        %1590 = vmatprep.subr.bf16.mxu0 0
        %1591 = vmatpush2.bf16.msra.mxu0 0
        %1592 = vmatprep.subr.bf16.mxu0 0
        %1593 = vmatpush2.bf16.msra.mxu0 0
        %1594 = vmatprep.subr.bf16.mxu0 0
        %1595 = vmatpush2.bf16.msra.mxu0 0
        %1596 = vmatprep.subr.bf16.mxu0 0
        %1597 = vmatpush2.bf16.msra.mxu0 0
        %1598 = vmatprep.subr.bf16.mxu0 0
        %1599 = vmatpush2.bf16.msra.mxu0 0
        %1600 = vmatprep.subr.bf16.mxu0 0
        %1601 = vmatpush2.bf16.msra.mxu0 0
        %1602 = vmatprep.subr.bf16.mxu0 0
        %1603 = vmatpush2.bf16.msra.mxu0 0
        %1604 = vmatprep.mubr.bf16.mxu0 0
        %1605 = vmatmul.mubr.bf16.gmra.mxu0 %v1523
        %v1606 = vpop.f32.mrf.mxu0
        %v1607 = vadd.f32 0.0, %v1606
        %v1608 = vpop.f32.mrf.mxu0
        %v1609 = vpop.f32.mrf.mxu0
        %v1610 = vadd.f32 0.0, %v1609
        %v1611 = vpop.f32.mrf.mxu0
        %1612 = vdwg.mxu0
        %v1614 = vsel %vm1348, %v1503, 0
        %1616 = vmatprep.subr.bf16.mxu0 0
        %1617 = vmatpush1.bf16.msra.mxu0 0
        %1618 = vmatprep.subr.bf16.mxu0 0
        %1619 = vmatpush1.bf16.msra.mxu0 0
        %1620 = vmatprep.subr.bf16.mxu0 0
        %1621 = vmatpush1.bf16.msra.mxu0 0
        %1622 = vmatprep.subr.bf16.mxu0 0
        %1623 = vmatpush1.bf16.msra.mxu0 0
        %1624 = vmatprep.subr.bf16.mxu0 0
        %1625 = vmatpush1.bf16.msra.mxu0 0
        %1626 = vmatprep.subr.bf16.mxu0 0
        %1627 = vmatpush1.bf16.msra.mxu0 0
        %1628 = vmatprep.subr.bf16.mxu0 0
        %1629 = vmatpush1.bf16.msra.mxu0 0
        %1630 = vmatprep.subr.bf16.mxu0 0
        %1631 = vmatpush1.bf16.msra.mxu0 %v1614
        %1632 = vmatprep.subr.bf16.mxu0 0
        %1633 = vmatpush2.bf16.msra.mxu0 0
        %1634 = vmatprep.subr.bf16.mxu0 0
        %1635 = vmatpush2.bf16.msra.mxu0 0
        %1636 = vmatprep.subr.bf16.mxu0 0
        %1637 = vmatpush2.bf16.msra.mxu0 0
        %1638 = vmatprep.subr.bf16.mxu0 0
        %1639 = vmatpush2.bf16.msra.mxu0 0
        %1640 = vmatprep.subr.bf16.mxu0 0
        %1641 = vmatpush2.bf16.msra.mxu0 0
        %1642 = vmatprep.subr.bf16.mxu0 0
        %1643 = vmatpush2.bf16.msra.mxu0 0
        %1644 = vmatprep.subr.bf16.mxu0 0
        %1645 = vmatpush2.bf16.msra.mxu0 0
        %1646 = vmatprep.subr.bf16.mxu0 0
        %1647 = vmatpush2.bf16.msra.mxu0 0
        %1648 = vmatprep.mubr.bf16.mxu0 0
        %1649 = vmatmul.mubr.bf16.gmra.mxu0 %v1523
        %v1650 = vpop.f32.mrf.mxu0
        %v1651 = vadd.f32 0.0, %v1650
        %v1652 = vpop.f32.mrf.mxu0
        %v1653 = vpop.f32.mrf.mxu0
        %v1654 = vadd.f32 0.0, %v1653
        %v1655 = vpop.f32.mrf.mxu0
        %1656 = vdwg.mxu0
        %v1658 = vsel %vm1348, %v1504, 0
        %1660 = vmatprep.subr.bf16.mxu0 0
        %1661 = vmatpush1.bf16.msra.mxu0 0
        %1662 = vmatprep.subr.bf16.mxu0 0
        %1663 = vmatpush1.bf16.msra.mxu0 0
        %1664 = vmatprep.subr.bf16.mxu0 0
        %1665 = vmatpush1.bf16.msra.mxu0 0
        %1666 = vmatprep.subr.bf16.mxu0 0
        %1667 = vmatpush1.bf16.msra.mxu0 0
        %1668 = vmatprep.subr.bf16.mxu0 0
        %1669 = vmatpush1.bf16.msra.mxu0 0
        %1670 = vmatprep.subr.bf16.mxu0 0
        %1671 = vmatpush1.bf16.msra.mxu0 0
        %1672 = vmatprep.subr.bf16.mxu0 0
        %1673 = vmatpush1.bf16.msra.mxu0 0
        %1674 = vmatprep.subr.bf16.mxu0 0
        %1675 = vmatpush1.bf16.msra.mxu0 %v1658
        %1676 = vmatprep.subr.bf16.mxu0 0
        %1677 = vmatpush2.bf16.msra.mxu0 0
        %1678 = vmatprep.subr.bf16.mxu0 0
        %1679 = vmatpush2.bf16.msra.mxu0 0
        %1680 = vmatprep.subr.bf16.mxu0 0
        %1681 = vmatpush2.bf16.msra.mxu0 0
        %1682 = vmatprep.subr.bf16.mxu0 0
        %1683 = vmatpush2.bf16.msra.mxu0 0
        %1684 = vmatprep.subr.bf16.mxu0 0
        %1685 = vmatpush2.bf16.msra.mxu0 0
        %1686 = vmatprep.subr.bf16.mxu0 0
        %1687 = vmatpush2.bf16.msra.mxu0 0
        %1688 = vmatprep.subr.bf16.mxu0 0
        %1689 = vmatpush2.bf16.msra.mxu0 0
        %1690 = vmatprep.subr.bf16.mxu0 0
        %1691 = vmatpush2.bf16.msra.mxu0 0
        %1692 = vmatprep.mubr.bf16.mxu0 0
        %1693 = vmatmul.mubr.bf16.gmra.mxu0 %v1523
        %v1694 = vpop.f32.mrf.mxu0
        %v1695 = vadd.f32 0.0, %v1694
        %v1696 = vpop.f32.mrf.mxu0
        %v1697 = vpop.f32.mrf.mxu0
        %v1698 = vadd.f32 0.0, %v1697
        %v1699 = vpop.f32.mrf.mxu0
        %1700 = vdwg.mxu0
        %v1702 = vsel %vm1348, %v1505, 0
        %1704 = vmatprep.subr.bf16.mxu0 0
        %1705 = vmatpush1.bf16.msra.mxu0 0
        %1706 = vmatprep.subr.bf16.mxu0 0
        %1707 = vmatpush1.bf16.msra.mxu0 0
        %1708 = vmatprep.subr.bf16.mxu0 0
        %1709 = vmatpush1.bf16.msra.mxu0 0
        %1710 = vmatprep.subr.bf16.mxu0 0
        %1711 = vmatpush1.bf16.msra.mxu0 0
        %1712 = vmatprep.subr.bf16.mxu0 0
        %1713 = vmatpush1.bf16.msra.mxu0 0
        %1714 = vmatprep.subr.bf16.mxu0 0
        %1715 = vmatpush1.bf16.msra.mxu0 0
        %1716 = vmatprep.subr.bf16.mxu0 0
        %1717 = vmatpush1.bf16.msra.mxu0 0
        %1718 = vmatprep.subr.bf16.mxu0 0
        %1719 = vmatpush1.bf16.msra.mxu0 %v1702
        %1720 = vmatprep.subr.bf16.mxu0 0
        %1721 = vmatpush2.bf16.msra.mxu0 0
        %1722 = vmatprep.subr.bf16.mxu0 0
        %1723 = vmatpush2.bf16.msra.mxu0 0
        %1724 = vmatprep.subr.bf16.mxu0 0
        %1725 = vmatpush2.bf16.msra.mxu0 0
        %1726 = vmatprep.subr.bf16.mxu0 0
        %1727 = vmatpush2.bf16.msra.mxu0 0
        %1728 = vmatprep.subr.bf16.mxu0 0
        %1729 = vmatpush2.bf16.msra.mxu0 0
        %1730 = vmatprep.subr.bf16.mxu0 0
        %1731 = vmatpush2.bf16.msra.mxu0 0
        %1732 = vmatprep.subr.bf16.mxu0 0
        %1733 = vmatpush2.bf16.msra.mxu0 0
        %1734 = vmatprep.subr.bf16.mxu0 0
        %1735 = vmatpush2.bf16.msra.mxu0 0
        %1736 = vmatprep.mubr.bf16.mxu0 0
        %1737 = vmatmul.mubr.bf16.gmra.mxu0 %v1523
        %v1738 = vpop.f32.mrf.mxu0
        %v1739 = vadd.f32 0.0, %v1738
        %v1740 = vpop.f32.mrf.mxu0
        %v1741 = vpop.f32.mrf.mxu0
        %v1742 = vadd.f32 0.0, %v1741
        %v1743 = vpop.f32.mrf.mxu0
        %1744 = vdwg.mxu0
        %v1746 = vsel %vm1348, %v1506, 0
        %1748 = vmatprep.subr.bf16.mxu0 0
        %1749 = vmatpush1.bf16.msra.mxu0 0
        %1750 = vmatprep.subr.bf16.mxu0 0
        %1751 = vmatpush1.bf16.msra.mxu0 0
        %1752 = vmatprep.subr.bf16.mxu0 0
        %1753 = vmatpush1.bf16.msra.mxu0 0
        %1754 = vmatprep.subr.bf16.mxu0 0
        %1755 = vmatpush1.bf16.msra.mxu0 0
        %1756 = vmatprep.subr.bf16.mxu0 0
        %1757 = vmatpush1.bf16.msra.mxu0 0
        %1758 = vmatprep.subr.bf16.mxu0 0
        %1759 = vmatpush1.bf16.msra.mxu0 0
        %1760 = vmatprep.subr.bf16.mxu0 0
        %1761 = vmatpush1.bf16.msra.mxu0 0
        %1762 = vmatprep.subr.bf16.mxu0 0
        %1763 = vmatpush1.bf16.msra.mxu0 %v1746
        %1764 = vmatprep.subr.bf16.mxu0 0
        %1765 = vmatpush2.bf16.msra.mxu0 0
        %1766 = vmatprep.subr.bf16.mxu0 0
        %1767 = vmatpush2.bf16.msra.mxu0 0
        %1768 = vmatprep.subr.bf16.mxu0 0
        %1769 = vmatpush2.bf16.msra.mxu0 0
        %1770 = vmatprep.subr.bf16.mxu0 0
        %1771 = vmatpush2.bf16.msra.mxu0 0
        %1772 = vmatprep.subr.bf16.mxu0 0
        %1773 = vmatpush2.bf16.msra.mxu0 0
        %1774 = vmatprep.subr.bf16.mxu0 0
        %1775 = vmatpush2.bf16.msra.mxu0 0
        %1776 = vmatprep.subr.bf16.mxu0 0
        %1777 = vmatpush2.bf16.msra.mxu0 0
        %1778 = vmatprep.subr.bf16.mxu0 0
        %1779 = vmatpush2.bf16.msra.mxu0 0
        %1780 = vmatprep.mubr.bf16.mxu0 0
        %1781 = vmatmul.mubr.bf16.gmra.mxu0 %v1523
        %v1782 = vpop.f32.mrf.mxu0
        %v1783 = vadd.f32 0.0, %v1782
        %v1784 = vpop.f32.mrf.mxu0
        %v1785 = vpop.f32.mrf.mxu0
        %v1786 = vadd.f32 0.0, %v1785
        %v1787 = vpop.f32.mrf.mxu0
        %1788 = vdwg.mxu0
        %v1790 = vsel %vm1348, %v1507, 0
        %1792 = vmatprep.subr.bf16.mxu0 0
        %1793 = vmatpush1.bf16.msra.mxu0 0
        %1794 = vmatprep.subr.bf16.mxu0 0
        %1795 = vmatpush1.bf16.msra.mxu0 0
        %1796 = vmatprep.subr.bf16.mxu0 0
        %1797 = vmatpush1.bf16.msra.mxu0 0
        %1798 = vmatprep.subr.bf16.mxu0 0
        %1799 = vmatpush1.bf16.msra.mxu0 0
        %1800 = vmatprep.subr.bf16.mxu0 0
        %1801 = vmatpush1.bf16.msra.mxu0 0
        %1802 = vmatprep.subr.bf16.mxu0 0
        %1803 = vmatpush1.bf16.msra.mxu0 0
        %1804 = vmatprep.subr.bf16.mxu0 0
        %1805 = vmatpush1.bf16.msra.mxu0 0
        %1806 = vmatprep.subr.bf16.mxu0 0
        %1807 = vmatpush1.bf16.msra.mxu0 %v1790
        %1808 = vmatprep.subr.bf16.mxu0 0
        %1809 = vmatpush2.bf16.msra.mxu0 0
        %1810 = vmatprep.subr.bf16.mxu0 0
        %1811 = vmatpush2.bf16.msra.mxu0 0
        %1812 = vmatprep.subr.bf16.mxu0 0
        %1813 = vmatpush2.bf16.msra.mxu0 0
        %1814 = vmatprep.subr.bf16.mxu0 0
        %1815 = vmatpush2.bf16.msra.mxu0 0
        %1816 = vmatprep.subr.bf16.mxu0 0
        %1817 = vmatpush2.bf16.msra.mxu0 0
        %1818 = vmatprep.subr.bf16.mxu0 0
        %1819 = vmatpush2.bf16.msra.mxu0 0
        %1820 = vmatprep.subr.bf16.mxu0 0
        %1821 = vmatpush2.bf16.msra.mxu0 0
        %1822 = vmatprep.subr.bf16.mxu0 0
        %1823 = vmatpush2.bf16.msra.mxu0 0
        %1824 = vmatprep.mubr.bf16.mxu0 0
        %1825 = vmatmul.mubr.bf16.gmra.mxu0 %v1523
        %v1826 = vpop.f32.mrf.mxu0
        %v1827 = vadd.f32 0.0, %v1826
        %v1828 = vpop.f32.mrf.mxu0
        %v1829 = vpop.f32.mrf.mxu0
        %v1830 = vadd.f32 0.0, %v1829
        %v1831 = vpop.f32.mrf.mxu0
        %1832 = vdwg.mxu0
        %v1834 = vsel %vm1348, %v1508, 0
        %1836 = vmatprep.subr.bf16.mxu0 0
        %1837 = vmatpush1.bf16.msra.mxu0 0
        %1838 = vmatprep.subr.bf16.mxu0 0
        %1839 = vmatpush1.bf16.msra.mxu0 0
        %1840 = vmatprep.subr.bf16.mxu0 0
        %1841 = vmatpush1.bf16.msra.mxu0 0
        %1842 = vmatprep.subr.bf16.mxu0 0
        %1843 = vmatpush1.bf16.msra.mxu0 0
        %1844 = vmatprep.subr.bf16.mxu0 0
        %1845 = vmatpush1.bf16.msra.mxu0 0
        %1846 = vmatprep.subr.bf16.mxu0 0
        %1847 = vmatpush1.bf16.msra.mxu0 0
        %1848 = vmatprep.subr.bf16.mxu0 0
        %1849 = vmatpush1.bf16.msra.mxu0 0
        %1850 = vmatprep.subr.bf16.mxu0 0
        %1851 = vmatpush1.bf16.msra.mxu0 %v1834
        %1852 = vmatprep.subr.bf16.mxu0 0
        %1853 = vmatpush2.bf16.msra.mxu0 0
        %1854 = vmatprep.subr.bf16.mxu0 0
        %1855 = vmatpush2.bf16.msra.mxu0 0
        %1856 = vmatprep.subr.bf16.mxu0 0
        %1857 = vmatpush2.bf16.msra.mxu0 0
        %1858 = vmatprep.subr.bf16.mxu0 0
        %1859 = vmatpush2.bf16.msra.mxu0 0
        %1860 = vmatprep.subr.bf16.mxu0 0
        %1861 = vmatpush2.bf16.msra.mxu0 0
        %1862 = vmatprep.subr.bf16.mxu0 0
        %1863 = vmatpush2.bf16.msra.mxu0 0
        %1864 = vmatprep.subr.bf16.mxu0 0
        %1865 = vmatpush2.bf16.msra.mxu0 0
        %1866 = vmatprep.subr.bf16.mxu0 0
        %1867 = vmatpush2.bf16.msra.mxu0 0
        %1868 = vmatprep.mubr.bf16.mxu0 0
        %1869 = vmatmul.mubr.bf16.gmra.mxu0 %v1523
        %v1870 = vpop.f32.mrf.mxu0
        %v1871 = vadd.f32 0.0, %v1870
        %v1872 = vpop.f32.mrf.mxu0
        %v1873 = vpop.f32.mrf.mxu0
        %v1874 = vadd.f32 0.0, %v1873
        %v1875 = vpop.f32.mrf.mxu0
        %1876 = vdwg.mxu0
        %v1878 = vsel %vm1348, %v1509, 0
        %1880 = vmatprep.subr.bf16.mxu0 0
        %1881 = vmatpush1.bf16.msra.mxu0 0
        %1882 = vmatprep.subr.bf16.mxu0 0
        %1883 = vmatpush1.bf16.msra.mxu0 0
        %1884 = vmatprep.subr.bf16.mxu0 0
        %1885 = vmatpush1.bf16.msra.mxu0 0
        %1886 = vmatprep.subr.bf16.mxu0 0
        %1887 = vmatpush1.bf16.msra.mxu0 0
        %1888 = vmatprep.subr.bf16.mxu0 0
        %1889 = vmatpush1.bf16.msra.mxu0 0
        %1890 = vmatprep.subr.bf16.mxu0 0
        %1891 = vmatpush1.bf16.msra.mxu0 0
        %1892 = vmatprep.subr.bf16.mxu0 0
        %1893 = vmatpush1.bf16.msra.mxu0 0
        %1894 = vmatprep.subr.bf16.mxu0 0
        %1895 = vmatpush1.bf16.msra.mxu0 %v1878
        %1896 = vmatprep.subr.bf16.mxu0 0
        %1897 = vmatpush2.bf16.msra.mxu0 0
        %1898 = vmatprep.subr.bf16.mxu0 0
        %1899 = vmatpush2.bf16.msra.mxu0 0
        %1900 = vmatprep.subr.bf16.mxu0 0
        %1901 = vmatpush2.bf16.msra.mxu0 0
        %1902 = vmatprep.subr.bf16.mxu0 0
        %1903 = vmatpush2.bf16.msra.mxu0 0
        %1904 = vmatprep.subr.bf16.mxu0 0
        %1905 = vmatpush2.bf16.msra.mxu0 0
        %1906 = vmatprep.subr.bf16.mxu0 0
        %1907 = vmatpush2.bf16.msra.mxu0 0
        %1908 = vmatprep.subr.bf16.mxu0 0
        %1909 = vmatpush2.bf16.msra.mxu0 0
        %1910 = vmatprep.subr.bf16.mxu0 0
        %1911 = vmatpush2.bf16.msra.mxu0 0
        %1912 = vmatprep.mubr.bf16.mxu0 0
        %1913 = vmatmul.mubr.bf16.gmra.mxu0 %v1523
        %v1914 = vpop.f32.mrf.mxu0
        %v1915 = vadd.f32 0.0, %v1914
        %v1916 = vpop.f32.mrf.mxu0
        %v1917 = vpop.f32.mrf.mxu0
        %v1918 = vadd.f32 0.0, %v1917
        %v1919 = vpop.f32.mrf.mxu0
        %1920 = vdwg.mxu0
        %v1922 = vsel %vm1348, %v1510, 0
        %1924 = vmatprep.subr.bf16.mxu0 0
        %1925 = vmatpush1.bf16.msra.mxu0 0
        %1926 = vmatprep.subr.bf16.mxu0 0
        %1927 = vmatpush1.bf16.msra.mxu0 0
        %1928 = vmatprep.subr.bf16.mxu0 0
        %1929 = vmatpush1.bf16.msra.mxu0 0
        %1930 = vmatprep.subr.bf16.mxu0 0
        %1931 = vmatpush1.bf16.msra.mxu0 0
        %1932 = vmatprep.subr.bf16.mxu0 0
        %1933 = vmatpush1.bf16.msra.mxu0 0
        %1934 = vmatprep.subr.bf16.mxu0 0
        %1935 = vmatpush1.bf16.msra.mxu0 0
        %1936 = vmatprep.subr.bf16.mxu0 0
        %1937 = vmatpush1.bf16.msra.mxu0 0
        %1938 = vmatprep.subr.bf16.mxu0 0
        %1939 = vmatpush1.bf16.msra.mxu0 %v1922
        %1940 = vmatprep.subr.bf16.mxu0 0
        %1941 = vmatpush2.bf16.msra.mxu0 0
        %1942 = vmatprep.subr.bf16.mxu0 0
        %1943 = vmatpush2.bf16.msra.mxu0 0
        %1944 = vmatprep.subr.bf16.mxu0 0
        %1945 = vmatpush2.bf16.msra.mxu0 0
        %1946 = vmatprep.subr.bf16.mxu0 0
        %1947 = vmatpush2.bf16.msra.mxu0 0
        %1948 = vmatprep.subr.bf16.mxu0 0
        %1949 = vmatpush2.bf16.msra.mxu0 0
        %1950 = vmatprep.subr.bf16.mxu0 0
        %1951 = vmatpush2.bf16.msra.mxu0 0
        %1952 = vmatprep.subr.bf16.mxu0 0
        %1953 = vmatpush2.bf16.msra.mxu0 0
        %1954 = vmatprep.subr.bf16.mxu0 0
        %1955 = vmatpush2.bf16.msra.mxu0 0
        %1956 = vmatprep.mubr.bf16.mxu0 0
        %1957 = vmatmul.mubr.bf16.gmra.mxu0 %v1523
        %v1958 = vpop.f32.mrf.mxu0
        %v1959 = vadd.f32 0.0, %v1958
        %v1960 = vpop.f32.mrf.mxu0
        %v1961 = vpop.f32.mrf.mxu0
        %v1962 = vadd.f32 0.0, %v1961
        %v1963 = vpop.f32.mrf.mxu0
        %1964 = vdwg.mxu0
        %v1966 = vsel %vm1348, %v1511, 0
        %1968 = vmatprep.subr.bf16.mxu0 0
        %1969 = vmatpush1.bf16.msra.mxu0 0
        %1970 = vmatprep.subr.bf16.mxu0 0
        %1971 = vmatpush1.bf16.msra.mxu0 0
        %1972 = vmatprep.subr.bf16.mxu0 0
        %1973 = vmatpush1.bf16.msra.mxu0 0
        %1974 = vmatprep.subr.bf16.mxu0 0
        %1975 = vmatpush1.bf16.msra.mxu0 0
        %1976 = vmatprep.subr.bf16.mxu0 0
        %1977 = vmatpush1.bf16.msra.mxu0 0
        %1978 = vmatprep.subr.bf16.mxu0 0
        %1979 = vmatpush1.bf16.msra.mxu0 0
        %1980 = vmatprep.subr.bf16.mxu0 0
        %1981 = vmatpush1.bf16.msra.mxu0 0
        %1982 = vmatprep.subr.bf16.mxu0 0
        %1983 = vmatpush1.bf16.msra.mxu0 %v1966
        %1984 = vmatprep.subr.bf16.mxu0 0
        %1985 = vmatpush2.bf16.msra.mxu0 0
        %1986 = vmatprep.subr.bf16.mxu0 0
        %1987 = vmatpush2.bf16.msra.mxu0 0
        %1988 = vmatprep.subr.bf16.mxu0 0
        %1989 = vmatpush2.bf16.msra.mxu0 0
        %1990 = vmatprep.subr.bf16.mxu0 0
        %1991 = vmatpush2.bf16.msra.mxu0 0
        %1992 = vmatprep.subr.bf16.mxu0 0
        %1993 = vmatpush2.bf16.msra.mxu0 0
        %1994 = vmatprep.subr.bf16.mxu0 0
        %1995 = vmatpush2.bf16.msra.mxu0 0
        %1996 = vmatprep.subr.bf16.mxu0 0
        %1997 = vmatpush2.bf16.msra.mxu0 0
        %1998 = vmatprep.subr.bf16.mxu0 0
        %1999 = vmatpush2.bf16.msra.mxu0 0
        %2000 = vmatprep.mubr.bf16.mxu0 0
        %2001 = vmatmul.mubr.bf16.gmra.mxu0 %v1523
        %v2002 = vpop.f32.mrf.mxu0
        %v2003 = vadd.f32 0.0, %v2002
        %v2004 = vpop.f32.mrf.mxu0
        %v2005 = vpop.f32.mrf.mxu0
        %v2006 = vadd.f32 0.0, %v2005
        %v2007 = vpop.f32.mrf.mxu0
        %2008 = vdwg.mxu0
        %v2010 = vsel %vm1348, %v1512, 0
        %2012 = vmatprep.subr.bf16.mxu0 0
        %2013 = vmatpush1.bf16.msra.mxu0 0
        %2014 = vmatprep.subr.bf16.mxu0 0
        %2015 = vmatpush1.bf16.msra.mxu0 0
        %2016 = vmatprep.subr.bf16.mxu0 0
        %2017 = vmatpush1.bf16.msra.mxu0 0
        %2018 = vmatprep.subr.bf16.mxu0 0
        %2019 = vmatpush1.bf16.msra.mxu0 0
        %2020 = vmatprep.subr.bf16.mxu0 0
        %2021 = vmatpush1.bf16.msra.mxu0 0
        %2022 = vmatprep.subr.bf16.mxu0 0
        %2023 = vmatpush1.bf16.msra.mxu0 0
        %2024 = vmatprep.subr.bf16.mxu0 0
        %2025 = vmatpush1.bf16.msra.mxu0 0
        %2026 = vmatprep.subr.bf16.mxu0 0
        %2027 = vmatpush1.bf16.msra.mxu0 %v2010
        %2028 = vmatprep.subr.bf16.mxu0 0
        %2029 = vmatpush2.bf16.msra.mxu0 0
        %2030 = vmatprep.subr.bf16.mxu0 0
        %2031 = vmatpush2.bf16.msra.mxu0 0
        %2032 = vmatprep.subr.bf16.mxu0 0
        %2033 = vmatpush2.bf16.msra.mxu0 0
        %2034 = vmatprep.subr.bf16.mxu0 0
        %2035 = vmatpush2.bf16.msra.mxu0 0
        %2036 = vmatprep.subr.bf16.mxu0 0
        %2037 = vmatpush2.bf16.msra.mxu0 0
        %2038 = vmatprep.subr.bf16.mxu0 0
        %2039 = vmatpush2.bf16.msra.mxu0 0
        %2040 = vmatprep.subr.bf16.mxu0 0
        %2041 = vmatpush2.bf16.msra.mxu0 0
        %2042 = vmatprep.subr.bf16.mxu0 0
        %2043 = vmatpush2.bf16.msra.mxu0 0
        %2044 = vmatprep.mubr.bf16.mxu0 0
        %2045 = vmatmul.mubr.bf16.gmra.mxu0 %v1523
        %v2046 = vpop.f32.mrf.mxu0
        %v2047 = vadd.f32 0.0, %v2046
        %v2048 = vpop.f32.mrf.mxu0
        %v2049 = vpop.f32.mrf.mxu0
        %v2050 = vadd.f32 0.0, %v2049
        %v2051 = vpop.f32.mrf.mxu0
        %2052 = vdwg.mxu0
        %v2054 = vsel %vm1348, %v1513, 0
        %2056 = vmatprep.subr.bf16.mxu0 0
        %2057 = vmatpush1.bf16.msra.mxu0 0
        %2058 = vmatprep.subr.bf16.mxu0 0
        %2059 = vmatpush1.bf16.msra.mxu0 0
        %2060 = vmatprep.subr.bf16.mxu0 0
        %2061 = vmatpush1.bf16.msra.mxu0 0
        %2062 = vmatprep.subr.bf16.mxu0 0
        %2063 = vmatpush1.bf16.msra.mxu0 0
        %2064 = vmatprep.subr.bf16.mxu0 0
        %2065 = vmatpush1.bf16.msra.mxu0 0
        %2066 = vmatprep.subr.bf16.mxu0 0
        %2067 = vmatpush1.bf16.msra.mxu0 0
        %2068 = vmatprep.subr.bf16.mxu0 0
        %2069 = vmatpush1.bf16.msra.mxu0 0
        %2070 = vmatprep.subr.bf16.mxu0 0
        %2071 = vmatpush1.bf16.msra.mxu0 %v2054
        %2072 = vmatprep.subr.bf16.mxu0 0
        %2073 = vmatpush2.bf16.msra.mxu0 0
        %2074 = vmatprep.subr.bf16.mxu0 0
        %2075 = vmatpush2.bf16.msra.mxu0 0
        %2076 = vmatprep.subr.bf16.mxu0 0
        %2077 = vmatpush2.bf16.msra.mxu0 0
        %2078 = vmatprep.subr.bf16.mxu0 0
        %2079 = vmatpush2.bf16.msra.mxu0 0
        %2080 = vmatprep.subr.bf16.mxu0 0
        %2081 = vmatpush2.bf16.msra.mxu0 0
        %2082 = vmatprep.subr.bf16.mxu0 0
        %2083 = vmatpush2.bf16.msra.mxu0 0
        %2084 = vmatprep.subr.bf16.mxu0 0
        %2085 = vmatpush2.bf16.msra.mxu0 0
        %2086 = vmatprep.subr.bf16.mxu0 0
        %2087 = vmatpush2.bf16.msra.mxu0 0
        %2088 = vmatprep.mubr.bf16.mxu0 0
        %2089 = vmatmul.mubr.bf16.gmra.mxu0 %v1523
        %v2090 = vpop.f32.mrf.mxu0
        %v2091 = vadd.f32 0.0, %v2090
        %v2092 = vpop.f32.mrf.mxu0
        %v2093 = vpop.f32.mrf.mxu0
        %v2094 = vadd.f32 0.0, %v2093
        %v2095 = vpop.f32.mrf.mxu0
        %2096 = vdwg.mxu0
        %v2098 = vsel %vm1348, %v1514, 0
        %2100 = vmatprep.subr.bf16.mxu0 0
        %2101 = vmatpush1.bf16.msra.mxu0 0
        %2102 = vmatprep.subr.bf16.mxu0 0
        %2103 = vmatpush1.bf16.msra.mxu0 0
        %2104 = vmatprep.subr.bf16.mxu0 0
        %2105 = vmatpush1.bf16.msra.mxu0 0
        %2106 = vmatprep.subr.bf16.mxu0 0
        %2107 = vmatpush1.bf16.msra.mxu0 0
        %2108 = vmatprep.subr.bf16.mxu0 0
        %2109 = vmatpush1.bf16.msra.mxu0 0
        %2110 = vmatprep.subr.bf16.mxu0 0
        %2111 = vmatpush1.bf16.msra.mxu0 0
        %2112 = vmatprep.subr.bf16.mxu0 0
        %2113 = vmatpush1.bf16.msra.mxu0 0
        %2114 = vmatprep.subr.bf16.mxu0 0
        %2115 = vmatpush1.bf16.msra.mxu0 %v2098
        %2116 = vmatprep.subr.bf16.mxu0 0
        %2117 = vmatpush2.bf16.msra.mxu0 0
        %2118 = vmatprep.subr.bf16.mxu0 0
        %2119 = vmatpush2.bf16.msra.mxu0 0
        %2120 = vmatprep.subr.bf16.mxu0 0
        %2121 = vmatpush2.bf16.msra.mxu0 0
        %2122 = vmatprep.subr.bf16.mxu0 0
        %2123 = vmatpush2.bf16.msra.mxu0 0
        %2124 = vmatprep.subr.bf16.mxu0 0
        %2125 = vmatpush2.bf16.msra.mxu0 0
        %2126 = vmatprep.subr.bf16.mxu0 0
        %2127 = vmatpush2.bf16.msra.mxu0 0
        %2128 = vmatprep.subr.bf16.mxu0 0
        %2129 = vmatpush2.bf16.msra.mxu0 0
        %2130 = vmatprep.subr.bf16.mxu0 0
        %2131 = vmatpush2.bf16.msra.mxu0 0
        %2132 = vmatprep.mubr.bf16.mxu0 0
        %2133 = vmatmul.mubr.bf16.gmra.mxu0 %v1523
        %v2134 = vpop.f32.mrf.mxu0
        %v2135 = vadd.f32 0.0, %v2134
        %v2136 = vpop.f32.mrf.mxu0
        %v2137 = vpop.f32.mrf.mxu0
        %v2138 = vadd.f32 0.0, %v2137
        %v2139 = vpop.f32.mrf.mxu0
        %2140 = vdwg.mxu0
        %v2142 = vsel %vm1348, %v1515, 0
        %2144 = vmatprep.subr.bf16.mxu0 0
        %2145 = vmatpush1.bf16.msra.mxu0 0
        %2146 = vmatprep.subr.bf16.mxu0 0
        %2147 = vmatpush1.bf16.msra.mxu0 0
        %2148 = vmatprep.subr.bf16.mxu0 0
        %2149 = vmatpush1.bf16.msra.mxu0 0
        %2150 = vmatprep.subr.bf16.mxu0 0
        %2151 = vmatpush1.bf16.msra.mxu0 0
        %2152 = vmatprep.subr.bf16.mxu0 0
        %2153 = vmatpush1.bf16.msra.mxu0 0
        %2154 = vmatprep.subr.bf16.mxu0 0
        %2155 = vmatpush1.bf16.msra.mxu0 0
        %2156 = vmatprep.subr.bf16.mxu0 0
        %2157 = vmatpush1.bf16.msra.mxu0 0
        %2158 = vmatprep.subr.bf16.mxu0 0
        %2159 = vmatpush1.bf16.msra.mxu0 %v2142
        %2160 = vmatprep.subr.bf16.mxu0 0
        %2161 = vmatpush2.bf16.msra.mxu0 0
        %2162 = vmatprep.subr.bf16.mxu0 0
        %2163 = vmatpush2.bf16.msra.mxu0 0
        %2164 = vmatprep.subr.bf16.mxu0 0
        %2165 = vmatpush2.bf16.msra.mxu0 0
        %2166 = vmatprep.subr.bf16.mxu0 0
        %2167 = vmatpush2.bf16.msra.mxu0 0
        %2168 = vmatprep.subr.bf16.mxu0 0
        %2169 = vmatpush2.bf16.msra.mxu0 0
        %2170 = vmatprep.subr.bf16.mxu0 0
        %2171 = vmatpush2.bf16.msra.mxu0 0
        %2172 = vmatprep.subr.bf16.mxu0 0
        %2173 = vmatpush2.bf16.msra.mxu0 0
        %2174 = vmatprep.subr.bf16.mxu0 0
        %2175 = vmatpush2.bf16.msra.mxu0 0
        %2176 = vmatprep.mubr.bf16.mxu0 0
        %2177 = vmatmul.mubr.bf16.gmra.mxu0 %v1523
        %v2178 = vpop.f32.mrf.mxu0
        %v2179 = vadd.f32 0.0, %v2178
        %v2180 = vpop.f32.mrf.mxu0
        %v2181 = vpop.f32.mrf.mxu0
        %v2182 = vadd.f32 0.0, %v2181
        %v2183 = vpop.f32.mrf.mxu0
        %2184 = vdwg.mxu0
        %v2186 = vsel %vm1348, %v1516, 0
        %2188 = vmatprep.subr.bf16.mxu0 0
        %2189 = vmatpush1.bf16.msra.mxu0 0
        %2190 = vmatprep.subr.bf16.mxu0 0
        %2191 = vmatpush1.bf16.msra.mxu0 0
        %2192 = vmatprep.subr.bf16.mxu0 0
        %2193 = vmatpush1.bf16.msra.mxu0 0
        %2194 = vmatprep.subr.bf16.mxu0 0
        %2195 = vmatpush1.bf16.msra.mxu0 0
        %2196 = vmatprep.subr.bf16.mxu0 0
        %2197 = vmatpush1.bf16.msra.mxu0 0
        %2198 = vmatprep.subr.bf16.mxu0 0
        %2199 = vmatpush1.bf16.msra.mxu0 0
        %2200 = vmatprep.subr.bf16.mxu0 0
        %2201 = vmatpush1.bf16.msra.mxu0 0
        %2202 = vmatprep.subr.bf16.mxu0 0
        %2203 = vmatpush1.bf16.msra.mxu0 %v2186
        %2204 = vmatprep.subr.bf16.mxu0 0
        %2205 = vmatpush2.bf16.msra.mxu0 0
        %2206 = vmatprep.subr.bf16.mxu0 0
        %2207 = vmatpush2.bf16.msra.mxu0 0
        %2208 = vmatprep.subr.bf16.mxu0 0
        %2209 = vmatpush2.bf16.msra.mxu0 0
        %2210 = vmatprep.subr.bf16.mxu0 0
        %2211 = vmatpush2.bf16.msra.mxu0 0
        %2212 = vmatprep.subr.bf16.mxu0 0
        %2213 = vmatpush2.bf16.msra.mxu0 0
        %2214 = vmatprep.subr.bf16.mxu0 0
        %2215 = vmatpush2.bf16.msra.mxu0 0
        %2216 = vmatprep.subr.bf16.mxu0 0
        %2217 = vmatpush2.bf16.msra.mxu0 0
        %2218 = vmatprep.subr.bf16.mxu0 0
        %2219 = vmatpush2.bf16.msra.mxu0 0
        %2220 = vmatprep.mubr.bf16.mxu0 0
        %2221 = vmatmul.mubr.bf16.gmra.mxu0 %v1523
        %v2222 = vpop.f32.mrf.mxu0
        %v2223 = vadd.f32 0.0, %v2222
        %v2224 = vpop.f32.mrf.mxu0
        %v2225 = vpop.f32.mrf.mxu0
        %v2226 = vadd.f32 0.0, %v2225
        %v2227 = vpop.f32.mrf.mxu0
        %2228 = vdwg.mxu0
        %v2229 = vpack.c.bf16 %v1566, %v1563
        %v2230 = vpack.c.bf16 %v1610, %v1607
        %v2231 = vpack.c.bf16 %v1654, %v1651
        %v2232 = vpack.c.bf16 %v1698, %v1695
        %v2233 = vpack.c.bf16 %v1742, %v1739
        %v2234 = vpack.c.bf16 %v1786, %v1783
        %v2235 = vpack.c.bf16 %v1830, %v1827
        %v2236 = vpack.c.bf16 %v1874, %v1871
        %v2237 = vpack.c.bf16 %v1918, %v1915
        %v2238 = vpack.c.bf16 %v1962, %v1959
        %v2239 = vpack.c.bf16 %v2006, %v2003
        %v2240 = vpack.c.bf16 %v2050, %v2047
        %v2241 = vpack.c.bf16 %v2094, %v2091
        %v2242 = vpack.c.bf16 %v2138, %v2135
        %v2243 = vpack.c.bf16 %v2182, %v2179
        %v2244 = vpack.c.bf16 %v2226, %v2223
        %v2247 = vunpack.c.l.b16 %v1499
        %v2248 = vunpack.c.l.b16 %v1500
        %v2249 = vpack.c.b16 %v2248, %v2247
        %vm2251 = vcmask 130048
        %v2253 = vsel %vm2251, %v2229, 0
        %v2256 = vsel %vm2251, %v2230, 0
        %v2259 = vsel %vm2251, %v2231, 0
        %v2262 = vsel %vm2251, %v2232, 0
        %v2265 = vsel %vm2251, %v2233, 0
        %v2268 = vsel %vm2251, %v2234, 0
        %v2271 = vsel %vm2251, %v2235, 0
        %v2274 = vsel %vm2251, %v2236, 0
        %v2277 = vsel %vm2251, %v2237, 0
        %v2280 = vsel %vm2251, %v2238, 0
        %v2283 = vsel %vm2251, %v2239, 0
        %v2286 = vsel %vm2251, %v2240, 0
        %v2289 = vsel %vm2251, %v2241, 0
        %v2292 = vsel %vm2251, %v2242, 0
        %v2295 = vsel %vm2251, %v2243, 0
        %v2298 = vsel %vm2251, %v2244, 0
        %2300 = vmatprep.subr.bf16.mxu0 0
        %2301 = vmatpush1.bf16.msra.mxu0 0
        %2302 = vmatprep.subr.bf16.mxu0 0
        %2303 = vmatpush1.bf16.msra.mxu0 0
        %2304 = vmatprep.subr.bf16.mxu0 0
        %2305 = vmatpush1.bf16.msra.mxu0 0
        %2306 = vmatprep.subr.bf16.mxu0 0
        %2307 = vmatpush1.bf16.msra.mxu0 0
        %2308 = vmatprep.subr.bf16.mxu0 0
        %2309 = vmatpush1.bf16.msra.mxu0 0
        %2310 = vmatprep.subr.bf16.mxu0 0
        %2311 = vmatpush1.bf16.msra.mxu0 0
        %2312 = vmatprep.subr.bf16.mxu0 0
        %2313 = vmatpush1.bf16.msra.mxu0 0
        %2314 = vmatprep.subr.bf16.mxu0 0
        %2315 = vmatpush1.bf16.msra.mxu0 %v2249
        %2316 = vmatprep.subr.bf16.mxu0 0
        %2317 = vmatpush2.bf16.msra.mxu0 0
        %2318 = vmatprep.subr.bf16.mxu0 0
        %2319 = vmatpush2.bf16.msra.mxu0 0
        %2320 = vmatprep.subr.bf16.mxu0 0
        %2321 = vmatpush2.bf16.msra.mxu0 0
        %2322 = vmatprep.subr.bf16.mxu0 0
        %2323 = vmatpush2.bf16.msra.mxu0 0
        %2324 = vmatprep.subr.bf16.mxu0 0
        %2325 = vmatpush2.bf16.msra.mxu0 0
        %2326 = vmatprep.subr.bf16.mxu0 0
        %2327 = vmatpush2.bf16.msra.mxu0 0
        %2328 = vmatprep.subr.bf16.mxu0 0
        %2329 = vmatpush2.bf16.msra.mxu0 0
        %2330 = vmatprep.subr.bf16.mxu0 0
        %2331 = vmatpush2.bf16.msra.mxu0 0
        %2332 = vmatprep.mubr.bf16.mxu0 0
        %2333 = vmatmul.mubr.bf16.gmra.mxu0 %v2253
        %v2334 = vpop.f32.mrf.mxu0
        %v2335 = vadd.f32 0.0, %v2334
        %v2336 = vpop.f32.mrf.mxu0
        %v2337 = vpop.f32.mrf.mxu0
        %v2338 = vadd.f32 0.0, %v2337
        %v2339 = vpop.f32.mrf.mxu0
        %2340 = vmatprep.mubr.bf16.mxu0 0
        %2341 = vmatmul.mubr.bf16.gmra.mxu0 %v2256
        %v2342 = vpop.f32.mrf.mxu0
        %v2343 = vadd.f32 0.0, %v2342
        %v2344 = vpop.f32.mrf.mxu0
        %v2345 = vpop.f32.mrf.mxu0
        %v2346 = vadd.f32 0.0, %v2345
        %v2347 = vpop.f32.mrf.mxu0
        %2348 = vmatprep.mubr.bf16.mxu0 0
        %2349 = vmatmul.mubr.bf16.gmra.mxu0 %v2259
        %v2350 = vpop.f32.mrf.mxu0
        %v2351 = vadd.f32 0.0, %v2350
        %v2352 = vpop.f32.mrf.mxu0
        %v2353 = vpop.f32.mrf.mxu0
        %v2354 = vadd.f32 0.0, %v2353
        %v2355 = vpop.f32.mrf.mxu0
        %2356 = vmatprep.mubr.bf16.mxu0 0
        %2357 = vmatmul.mubr.bf16.gmra.mxu0 %v2262
        %v2358 = vpop.f32.mrf.mxu0
        %v2359 = vadd.f32 0.0, %v2358
        %v2360 = vpop.f32.mrf.mxu0
        %v2361 = vpop.f32.mrf.mxu0
        %v2362 = vadd.f32 0.0, %v2361
        %v2363 = vpop.f32.mrf.mxu0
        %2364 = vmatprep.mubr.bf16.mxu0 0
        %2365 = vmatmul.mubr.bf16.gmra.mxu0 %v2265
        %v2366 = vpop.f32.mrf.mxu0
        %v2367 = vadd.f32 0.0, %v2366
        %v2368 = vpop.f32.mrf.mxu0
        %v2369 = vpop.f32.mrf.mxu0
        %v2370 = vadd.f32 0.0, %v2369
        %v2371 = vpop.f32.mrf.mxu0
        %2372 = vmatprep.mubr.bf16.mxu0 0
        %2373 = vmatmul.mubr.bf16.gmra.mxu0 %v2268
        %v2374 = vpop.f32.mrf.mxu0
        %v2375 = vadd.f32 0.0, %v2374
        %v2376 = vpop.f32.mrf.mxu0
        %v2377 = vpop.f32.mrf.mxu0
        %v2378 = vadd.f32 0.0, %v2377
        %v2379 = vpop.f32.mrf.mxu0
        %2380 = vmatprep.mubr.bf16.mxu0 0
        %2381 = vmatmul.mubr.bf16.gmra.mxu0 %v2271
        %v2382 = vpop.f32.mrf.mxu0
        %v2383 = vadd.f32 0.0, %v2382
        %v2384 = vpop.f32.mrf.mxu0
        %v2385 = vpop.f32.mrf.mxu0
        %v2386 = vadd.f32 0.0, %v2385
        %v2387 = vpop.f32.mrf.mxu0
        %2388 = vmatprep.mubr.bf16.mxu0 0
        %2389 = vmatmul.mubr.bf16.gmra.mxu0 %v2274
        %v2390 = vpop.f32.mrf.mxu0
        %v2391 = vadd.f32 0.0, %v2390
        %v2392 = vpop.f32.mrf.mxu0
        %v2393 = vpop.f32.mrf.mxu0
        %v2394 = vadd.f32 0.0, %v2393
        %v2395 = vpop.f32.mrf.mxu0
        %2396 = vmatprep.mubr.bf16.mxu0 0
        %2397 = vmatmul.mubr.bf16.gmra.mxu0 %v2277
        %v2398 = vpop.f32.mrf.mxu0
        %v2399 = vadd.f32 0.0, %v2398
        %v2400 = vpop.f32.mrf.mxu0
        %v2401 = vpop.f32.mrf.mxu0
        %v2402 = vadd.f32 0.0, %v2401
        %v2403 = vpop.f32.mrf.mxu0
        %2404 = vmatprep.mubr.bf16.mxu0 0
        %2405 = vmatmul.mubr.bf16.gmra.mxu0 %v2280
        %v2406 = vpop.f32.mrf.mxu0
        %v2407 = vadd.f32 0.0, %v2406
        %v2408 = vpop.f32.mrf.mxu0
        %v2409 = vpop.f32.mrf.mxu0
        %v2410 = vadd.f32 0.0, %v2409
        %v2411 = vpop.f32.mrf.mxu0
        %2412 = vmatprep.mubr.bf16.mxu0 0
        %2413 = vmatmul.mubr.bf16.gmra.mxu0 %v2283
        %v2414 = vpop.f32.mrf.mxu0
        %v2415 = vadd.f32 0.0, %v2414
        %v2416 = vpop.f32.mrf.mxu0
        %v2417 = vpop.f32.mrf.mxu0
        %v2418 = vadd.f32 0.0, %v2417
        %v2419 = vpop.f32.mrf.mxu0
        %2420 = vmatprep.mubr.bf16.mxu0 0
        %2421 = vmatmul.mubr.bf16.gmra.mxu0 %v2286
        %v2422 = vpop.f32.mrf.mxu0
        %v2423 = vadd.f32 0.0, %v2422
        %v2424 = vpop.f32.mrf.mxu0
        %v2425 = vpop.f32.mrf.mxu0
        %v2426 = vadd.f32 0.0, %v2425
        %v2427 = vpop.f32.mrf.mxu0
        %2428 = vmatprep.mubr.bf16.mxu0 0
        %2429 = vmatmul.mubr.bf16.gmra.mxu0 %v2289
        %v2430 = vpop.f32.mrf.mxu0
        %v2431 = vadd.f32 0.0, %v2430
        %v2432 = vpop.f32.mrf.mxu0
        %v2433 = vpop.f32.mrf.mxu0
        %v2434 = vadd.f32 0.0, %v2433
        %v2435 = vpop.f32.mrf.mxu0
        %2436 = vmatprep.mubr.bf16.mxu0 0
        %2437 = vmatmul.mubr.bf16.gmra.mxu0 %v2292
        %v2438 = vpop.f32.mrf.mxu0
        %v2439 = vadd.f32 0.0, %v2438
        %v2440 = vpop.f32.mrf.mxu0
        %v2441 = vpop.f32.mrf.mxu0
        %v2442 = vadd.f32 0.0, %v2441
        %v2443 = vpop.f32.mrf.mxu0
        %2444 = vmatprep.mubr.bf16.mxu0 0
        %2445 = vmatmul.mubr.bf16.gmra.mxu0 %v2295
        %v2446 = vpop.f32.mrf.mxu0
        %v2447 = vadd.f32 0.0, %v2446
        %v2448 = vpop.f32.mrf.mxu0
        %v2449 = vpop.f32.mrf.mxu0
        %v2450 = vadd.f32 0.0, %v2449
        %v2451 = vpop.f32.mrf.mxu0
        %2452 = vmatprep.mubr.bf16.mxu0 0
        %2453 = vmatmul.mubr.bf16.gmra.mxu0 %v2298
        %v2454 = vpop.f32.mrf.mxu0
        %v2455 = vadd.f32 0.0, %v2454
        %v2456 = vpop.f32.mrf.mxu0
        %v2457 = vpop.f32.mrf.mxu0
        %v2458 = vadd.f32 0.0, %v2457
        %v2459 = vpop.f32.mrf.mxu0
        %2460 = vdwg.mxu0
        %v2461 = vadd.f32 %v1465, %v2335
        %v2462 = vadd.f32 %v1466, %v2338
        %v2463 = vadd.f32 %v1467, %v2343
        %v2464 = vadd.f32 %v1468, %v2346
        %v2465 = vadd.f32 %v1469, %v2351
        %v2466 = vadd.f32 %v1470, %v2354
        %v2467 = vadd.f32 %v1471, %v2359
        %v2468 = vadd.f32 %v1472, %v2362
        %v2469 = vadd.f32 %v1473, %v2367
        %v2470 = vadd.f32 %v1474, %v2370
        %v2471 = vadd.f32 %v1475, %v2375
        %v2472 = vadd.f32 %v1476, %v2378
        %v2473 = vadd.f32 %v1477, %v2383
        %v2474 = vadd.f32 %v1478, %v2386
        %v2475 = vadd.f32 %v1479, %v2391
        %v2476 = vadd.f32 %v1480, %v2394
        %v2477 = vadd.f32 %v1481, %v2399
        %v2478 = vadd.f32 %v1482, %v2402
        %v2479 = vadd.f32 %v1483, %v2407
        %v2480 = vadd.f32 %v1484, %v2410
        %v2481 = vadd.f32 %v1485, %v2415
        %v2482 = vadd.f32 %v1486, %v2418
        %v2483 = vadd.f32 %v1487, %v2423
        %v2484 = vadd.f32 %v1488, %v2426
        %v2485 = vadd.f32 %v1489, %v2431
        %v2486 = vadd.f32 %v1490, %v2434
        %v2487 = vadd.f32 %v1491, %v2439
        %v2488 = vadd.f32 %v1492, %v2442
        %v2489 = vadd.f32 %v1493, %v2447
        %v2490 = vadd.f32 %v1494, %v2450
        %v2491 = vadd.f32 %v1495, %v2455
        %v2492 = vadd.f32 %v1496, %v2458
        %s2493 = sld [smem:[#allocation3 + %s38]]
        %s2494 = scalar_lea.vmem %s535, %s2493
        %v2495 = vld [vmem:[%s2494] sm:$0xff]
        %v2496 = vld [vmem:[%s2494 + $0x8] sm:$0xff]
        %v2497 = vld [vmem:[%s2494 + $0x10] sm:$0xff]
        %v2498 = vld [vmem:[%s2494 + $0x20] sm:$0xff]
        %v2499 = vld [vmem:[%s2494 + $0x28] sm:$0xff]
        %v2500 = vld [vmem:[%s2494 + $0x30] sm:$0xff]
        %v2501 = vld [vmem:[%s2494 + $0x40] sm:$0xff]
        %v2502 = vld [vmem:[%s2494 + $0x48] sm:$0xff]
        %v2503 = vld [vmem:[%s2494 + $0x50] sm:$0xff]
        %v2504 = vld [vmem:[%s2494 + $0x60] sm:$0xff]
        %v2505 = vld [vmem:[%s2494 + $0x68] sm:$0xff]
        %v2506 = vld [vmem:[%s2494 + $0x70] sm:$0xff]
        %v2507 = vld [vmem:[%s2494 + $0x80] sm:$0xff]
        %v2508 = vld [vmem:[%s2494 + $0x88] sm:$0xff]
        %v2509 = vld [vmem:[%s2494 + $0x90] sm:$0xff]
        %v2510 = vld [vmem:[%s2494 + $0xa0] sm:$0xff]
        %v2511 = vld [vmem:[%s2494 + $0xa8] sm:$0xff]
        %v2512 = vld [vmem:[%s2494 + $0xb0] sm:$0xff]
        %v2513 = vld [vmem:[%s2494 + $0xc0] sm:$0xff]
        %v2514 = vld [vmem:[%s2494 + $0xc8] sm:$0xff]
        %v2515 = vld [vmem:[%s2494 + $0xd0] sm:$0xff]
        %v2516 = vld [vmem:[%s2494 + $0xe0] sm:$0xff]
        %v2517 = vld [vmem:[%s2494 + $0xe8] sm:$0xff]
        %v2518 = vld [vmem:[%s2494 + $0xf0] sm:$0xff]
        %v2519 = vld [vmem:[%s2494 + $0x100] sm:$0xff]
        %v2520 = vld [vmem:[%s2494 + $0x108] sm:$0xff]
        %v2521 = vld [vmem:[%s2494 + $0x110] sm:$0xff]
        %v2522 = vld [vmem:[%s2494 + $0x120] sm:$0xff]
        %v2523 = vld [vmem:[%s2494 + $0x128] sm:$0xff]
        %v2524 = vld [vmem:[%s2494 + $0x130] sm:$0xff]
        %v2525 = vld [vmem:[%s2494 + $0x140] sm:$0xff]
        %v2526 = vld [vmem:[%s2494 + $0x148] sm:$0xff]
        %v2527 = vld [vmem:[%s2494 + $0x150] sm:$0xff]
        %v2528 = vld [vmem:[%s2494 + $0x160] sm:$0xff]
        %v2529 = vld [vmem:[%s2494 + $0x168] sm:$0xff]
        %v2530 = vld [vmem:[%s2494 + $0x170] sm:$0xff]
        %v2531 = vld [vmem:[%s2494 + $0x180] sm:$0xff]
        %v2532 = vld [vmem:[%s2494 + $0x188] sm:$0xff]
        %v2533 = vld [vmem:[%s2494 + $0x190] sm:$0xff]
        %v2534 = vld [vmem:[%s2494 + $0x1a0] sm:$0xff]
        %v2535 = vld [vmem:[%s2494 + $0x1a8] sm:$0xff]
        %v2536 = vld [vmem:[%s2494 + $0x1b0] sm:$0xff]
        %v2537 = vld [vmem:[%s2494 + $0x1c0] sm:$0xff]
        %v2538 = vld [vmem:[%s2494 + $0x1c8] sm:$0xff]
        %v2539 = vld [vmem:[%s2494 + $0x1d0] sm:$0xff]
        %v2540 = vld [vmem:[%s2494 + $0x1e0] sm:$0xff]
        %v2541 = vld [vmem:[%s2494 + $0x1e8] sm:$0xff]
        %v2542 = vld [vmem:[%s2494 + $0x1f0] sm:$0xff]
        %v2543 = vld [vmem:[%s560] sm:$0xf]
        %v2544 = vld [vmem:[%s560 + $0x4] sm:$0xf]
        %v2545 = vld [vmem:[%s560 + $0x8] sm:$0xf]
        %v2546 = vld [vmem:[%s10] sm:$0xf]
        %v2547 = vld [vmem:[%s10 + $0x4] sm:$0xf]
        %v2548 = vld [vmem:[%s10 + $0x8] sm:$0xf]
        %v2549 = vld [vmem:[%s10 + $0xc] sm:$0xf]
        %v2550 = vpack.c.bf16 %v2462, %v2461
        %v2551 = vpack.c.bf16 %v2464, %v2463
        %v2552 = vpack.c.bf16 %v2466, %v2465
        %v2553 = vpack.c.bf16 %v2468, %v2467
        %v2554 = vpack.c.bf16 %v2470, %v2469
        %v2555 = vpack.c.bf16 %v2472, %v2471
        %v2556 = vpack.c.bf16 %v2474, %v2473
        %v2557 = vpack.c.bf16 %v2476, %v2475
        %v2558 = vpack.c.bf16 %v2478, %v2477
        %v2559 = vpack.c.bf16 %v2480, %v2479
        %v2560 = vpack.c.bf16 %v2482, %v2481
        %v2561 = vpack.c.bf16 %v2484, %v2483
        %v2562 = vpack.c.bf16 %v2486, %v2485
        %v2563 = vpack.c.bf16 %v2488, %v2487
        %v2564 = vpack.c.bf16 %v2490, %v2489
        %v2565 = vpack.c.bf16 %v2492, %v2491
        %v2569 = vunpack.c.l.b16 %v2543
        %v2570 = vunpack.c.l.b16 %v2544
        %v2571 = vunpack.c.l.b16 %v2545
        %v2572 = vpack.c.b16 %v2570, %v2569
        %v2573 = vpack.c.b16 %v2571, %v2571
        %v2575 = vsel %vm2251, %v2572, 0
        %v2578 = vsel %vm2251, %v2573, 0
        %2580 = vmatprep.subr.bf16.mxu0 0
        %2581 = vmatpush1.bf16.msra.mxu0 0
        %2582 = vmatprep.subr.bf16.mxu0 0
        %2583 = vmatpush1.bf16.msra.mxu0 0
        %2584 = vmatprep.subr.bf16.mxu0 0
        %2585 = vmatpush1.bf16.msra.mxu0 0
        %2586 = vmatprep.subr.bf16.mxu0 0
        %2587 = vmatpush1.bf16.msra.mxu0 0
        %2588 = vmatprep.subr.bf16.mxu0 0
        %2589 = vmatpush1.bf16.msra.mxu0 0
        %2590 = vmatprep.subr.bf16.mxu0 0
        %2591 = vmatpush1.bf16.msra.mxu0 0
        %2592 = vmatprep.subr.bf16.mxu0 0
        %2593 = vmatpush1.bf16.msra.mxu0 0
        %2594 = vmatprep.subr.bf16.mxu0 0
        %2595 = vmatpush1.bf16.msra.mxu0 %v2550
        %2596 = vmatprep.subr.bf16.mxu0 0
        %2597 = vmatpush2.bf16.msra.mxu0 0
        %2598 = vmatprep.subr.bf16.mxu0 0
        %2599 = vmatpush2.bf16.msra.mxu0 0
        %2600 = vmatprep.subr.bf16.mxu0 0
        %2601 = vmatpush2.bf16.msra.mxu0 0
        %2602 = vmatprep.subr.bf16.mxu0 0
        %2603 = vmatpush2.bf16.msra.mxu0 0
        %2604 = vmatprep.subr.bf16.mxu0 0
        %2605 = vmatpush2.bf16.msra.mxu0 0
        %2606 = vmatprep.subr.bf16.mxu0 0
        %2607 = vmatpush2.bf16.msra.mxu0 0
        %2608 = vmatprep.subr.bf16.mxu0 0
        %2609 = vmatpush2.bf16.msra.mxu0 0
        %2610 = vmatprep.subr.bf16.mxu0 0
        %2611 = vmatpush2.bf16.msra.mxu0 0
        %2612 = vmatprep.mubr.bf16.mxu0 0
        %2613 = vmatmul.mubr.bf16.gmra.mxu0 %v2575
        %v2614 = vpop.f32.mrf.mxu0
        %v2615 = vadd.f32 0.0, %v2614
        %v2616 = vpop.f32.mrf.mxu0
        %v2617 = vpop.f32.mrf.mxu0
        %v2618 = vadd.f32 0.0, %v2617
        %v2619 = vpop.f32.mrf.mxu0
        %2620 = vmatprep.mubr.bf16.mxu0 0
        %2621 = vmatmul.mubr.bf16.gmra.mxu0 %v2578
        %v2622 = vpop.f32.mrf.mxu0
        %v2623 = vadd.f32 0.0, %v2622
        %v2624 = vpop.f32.mrf.mxu0
        %v2625 = vpop.f32.mrf.mxu0
        %v2626 = vpop.f32.mrf.mxu0
        %2627 = vdwg.mxu0
        %2628 = vmatprep.subr.bf16.mxu0 0
        %2629 = vmatpush1.bf16.msra.mxu0 0
        %2630 = vmatprep.subr.bf16.mxu0 0
        %2631 = vmatpush1.bf16.msra.mxu0 0
        %2632 = vmatprep.subr.bf16.mxu0 0
        %2633 = vmatpush1.bf16.msra.mxu0 0
        %2634 = vmatprep.subr.bf16.mxu0 0
        %2635 = vmatpush1.bf16.msra.mxu0 0
        %2636 = vmatprep.subr.bf16.mxu0 0
        %2637 = vmatpush1.bf16.msra.mxu0 0
        %2638 = vmatprep.subr.bf16.mxu0 0
        %2639 = vmatpush1.bf16.msra.mxu0 0
        %2640 = vmatprep.subr.bf16.mxu0 0
        %2641 = vmatpush1.bf16.msra.mxu0 0
        %2642 = vmatprep.subr.bf16.mxu0 0
        %2643 = vmatpush1.bf16.msra.mxu0 %v2551
        %2644 = vmatprep.subr.bf16.mxu0 0
        %2645 = vmatpush2.bf16.msra.mxu0 0
        %2646 = vmatprep.subr.bf16.mxu0 0
        %2647 = vmatpush2.bf16.msra.mxu0 0
        %2648 = vmatprep.subr.bf16.mxu0 0
        %2649 = vmatpush2.bf16.msra.mxu0 0
        %2650 = vmatprep.subr.bf16.mxu0 0
        %2651 = vmatpush2.bf16.msra.mxu0 0
        %2652 = vmatprep.subr.bf16.mxu0 0
        %2653 = vmatpush2.bf16.msra.mxu0 0
        %2654 = vmatprep.subr.bf16.mxu0 0
        %2655 = vmatpush2.bf16.msra.mxu0 0
        %2656 = vmatprep.subr.bf16.mxu0 0
        %2657 = vmatpush2.bf16.msra.mxu0 0
        %2658 = vmatprep.subr.bf16.mxu0 0
        %2659 = vmatpush2.bf16.msra.mxu0 0
        %2660 = vmatprep.mubr.bf16.mxu0 0
        %2661 = vmatmul.mubr.bf16.gmra.mxu0 %v2575
        %v2662 = vpop.f32.mrf.mxu0
        %v2663 = vadd.f32 0.0, %v2662
        %v2664 = vpop.f32.mrf.mxu0
        %v2665 = vpop.f32.mrf.mxu0
        %v2666 = vadd.f32 0.0, %v2665
        %v2667 = vpop.f32.mrf.mxu0
        %2668 = vmatprep.mubr.bf16.mxu0 0
        %2669 = vmatmul.mubr.bf16.gmra.mxu0 %v2578
        %v2670 = vpop.f32.mrf.mxu0
        %v2671 = vadd.f32 0.0, %v2670
        %v2672 = vpop.f32.mrf.mxu0
        %v2673 = vpop.f32.mrf.mxu0
        %v2674 = vpop.f32.mrf.mxu0
        %2675 = vdwg.mxu0
        %2676 = vmatprep.subr.bf16.mxu0 0
        %2677 = vmatpush1.bf16.msra.mxu0 0
        %2678 = vmatprep.subr.bf16.mxu0 0
        %2679 = vmatpush1.bf16.msra.mxu0 0
        %2680 = vmatprep.subr.bf16.mxu0 0
        %2681 = vmatpush1.bf16.msra.mxu0 0
        %2682 = vmatprep.subr.bf16.mxu0 0
        %2683 = vmatpush1.bf16.msra.mxu0 0
        %2684 = vmatprep.subr.bf16.mxu0 0
        %2685 = vmatpush1.bf16.msra.mxu0 0
        %2686 = vmatprep.subr.bf16.mxu0 0
        %2687 = vmatpush1.bf16.msra.mxu0 0
        %2688 = vmatprep.subr.bf16.mxu0 0
        %2689 = vmatpush1.bf16.msra.mxu0 0
        %2690 = vmatprep.subr.bf16.mxu0 0
        %2691 = vmatpush1.bf16.msra.mxu0 %v2552
        %2692 = vmatprep.subr.bf16.mxu0 0
        %2693 = vmatpush2.bf16.msra.mxu0 0
        %2694 = vmatprep.subr.bf16.mxu0 0
        %2695 = vmatpush2.bf16.msra.mxu0 0
        %2696 = vmatprep.subr.bf16.mxu0 0
        %2697 = vmatpush2.bf16.msra.mxu0 0
        %2698 = vmatprep.subr.bf16.mxu0 0
        %2699 = vmatpush2.bf16.msra.mxu0 0
        %2700 = vmatprep.subr.bf16.mxu0 0
        %2701 = vmatpush2.bf16.msra.mxu0 0
        %2702 = vmatprep.subr.bf16.mxu0 0
        %2703 = vmatpush2.bf16.msra.mxu0 0
        %2704 = vmatprep.subr.bf16.mxu0 0
        %2705 = vmatpush2.bf16.msra.mxu0 0
        %2706 = vmatprep.subr.bf16.mxu0 0
        %2707 = vmatpush2.bf16.msra.mxu0 0
        %2708 = vmatprep.mubr.bf16.mxu0 0
        %2709 = vmatmul.mubr.bf16.gmra.mxu0 %v2575
        %v2710 = vpop.f32.mrf.mxu0
        %v2711 = vadd.f32 0.0, %v2710
        %v2712 = vpop.f32.mrf.mxu0
        %v2713 = vpop.f32.mrf.mxu0
        %v2714 = vadd.f32 0.0, %v2713
        %v2715 = vpop.f32.mrf.mxu0
        %2716 = vmatprep.mubr.bf16.mxu0 0
        %2717 = vmatmul.mubr.bf16.gmra.mxu0 %v2578
        %v2718 = vpop.f32.mrf.mxu0
        %v2719 = vadd.f32 0.0, %v2718
        %v2720 = vpop.f32.mrf.mxu0
        %v2721 = vpop.f32.mrf.mxu0
        %v2722 = vpop.f32.mrf.mxu0
        %2723 = vdwg.mxu0
        %2724 = vmatprep.subr.bf16.mxu0 0
        %2725 = vmatpush1.bf16.msra.mxu0 0
        %2726 = vmatprep.subr.bf16.mxu0 0
        %2727 = vmatpush1.bf16.msra.mxu0 0
        %2728 = vmatprep.subr.bf16.mxu0 0
        %2729 = vmatpush1.bf16.msra.mxu0 0
        %2730 = vmatprep.subr.bf16.mxu0 0
        %2731 = vmatpush1.bf16.msra.mxu0 0
        %2732 = vmatprep.subr.bf16.mxu0 0
        %2733 = vmatpush1.bf16.msra.mxu0 0
        %2734 = vmatprep.subr.bf16.mxu0 0
        %2735 = vmatpush1.bf16.msra.mxu0 0
        %2736 = vmatprep.subr.bf16.mxu0 0
        %2737 = vmatpush1.bf16.msra.mxu0 0
        %2738 = vmatprep.subr.bf16.mxu0 0
        %2739 = vmatpush1.bf16.msra.mxu0 %v2553
        %2740 = vmatprep.subr.bf16.mxu0 0
        %2741 = vmatpush2.bf16.msra.mxu0 0
        %2742 = vmatprep.subr.bf16.mxu0 0
        %2743 = vmatpush2.bf16.msra.mxu0 0
        %2744 = vmatprep.subr.bf16.mxu0 0
        %2745 = vmatpush2.bf16.msra.mxu0 0
        %2746 = vmatprep.subr.bf16.mxu0 0
        %2747 = vmatpush2.bf16.msra.mxu0 0
        %2748 = vmatprep.subr.bf16.mxu0 0
        %2749 = vmatpush2.bf16.msra.mxu0 0
        %2750 = vmatprep.subr.bf16.mxu0 0
        %2751 = vmatpush2.bf16.msra.mxu0 0
        %2752 = vmatprep.subr.bf16.mxu0 0
        %2753 = vmatpush2.bf16.msra.mxu0 0
        %2754 = vmatprep.subr.bf16.mxu0 0
        %2755 = vmatpush2.bf16.msra.mxu0 0
        %2756 = vmatprep.mubr.bf16.mxu0 0
        %2757 = vmatmul.mubr.bf16.gmra.mxu0 %v2575
        %v2758 = vpop.f32.mrf.mxu0
        %v2759 = vadd.f32 0.0, %v2758
        %v2760 = vpop.f32.mrf.mxu0
        %v2761 = vpop.f32.mrf.mxu0
        %v2762 = vadd.f32 0.0, %v2761
        %v2763 = vpop.f32.mrf.mxu0
        %2764 = vmatprep.mubr.bf16.mxu0 0
        %2765 = vmatmul.mubr.bf16.gmra.mxu0 %v2578
        %v2766 = vpop.f32.mrf.mxu0
        %v2767 = vadd.f32 0.0, %v2766
        %v2768 = vpop.f32.mrf.mxu0
        %v2769 = vpop.f32.mrf.mxu0
        %v2770 = vpop.f32.mrf.mxu0
        %2771 = vdwg.mxu0
        %2772 = vmatprep.subr.bf16.mxu0 0
        %2773 = vmatpush1.bf16.msra.mxu0 0
        %2774 = vmatprep.subr.bf16.mxu0 0
        %2775 = vmatpush1.bf16.msra.mxu0 0
        %2776 = vmatprep.subr.bf16.mxu0 0
        %2777 = vmatpush1.bf16.msra.mxu0 0
        %2778 = vmatprep.subr.bf16.mxu0 0
        %2779 = vmatpush1.bf16.msra.mxu0 0
        %2780 = vmatprep.subr.bf16.mxu0 0
        %2781 = vmatpush1.bf16.msra.mxu0 0
        %2782 = vmatprep.subr.bf16.mxu0 0
        %2783 = vmatpush1.bf16.msra.mxu0 0
        %2784 = vmatprep.subr.bf16.mxu0 0
        %2785 = vmatpush1.bf16.msra.mxu0 0
        %2786 = vmatprep.subr.bf16.mxu0 0
        %2787 = vmatpush1.bf16.msra.mxu0 %v2554
        %2788 = vmatprep.subr.bf16.mxu0 0
        %2789 = vmatpush2.bf16.msra.mxu0 0
        %2790 = vmatprep.subr.bf16.mxu0 0
        %2791 = vmatpush2.bf16.msra.mxu0 0
        %2792 = vmatprep.subr.bf16.mxu0 0
        %2793 = vmatpush2.bf16.msra.mxu0 0
        %2794 = vmatprep.subr.bf16.mxu0 0
        %2795 = vmatpush2.bf16.msra.mxu0 0
        %2796 = vmatprep.subr.bf16.mxu0 0
        %2797 = vmatpush2.bf16.msra.mxu0 0
        %2798 = vmatprep.subr.bf16.mxu0 0
        %2799 = vmatpush2.bf16.msra.mxu0 0
        %2800 = vmatprep.subr.bf16.mxu0 0
        %2801 = vmatpush2.bf16.msra.mxu0 0
        %2802 = vmatprep.subr.bf16.mxu0 0
        %2803 = vmatpush2.bf16.msra.mxu0 0
        %2804 = vmatprep.mubr.bf16.mxu0 0
        %2805 = vmatmul.mubr.bf16.gmra.mxu0 %v2575
        %v2806 = vpop.f32.mrf.mxu0
        %v2807 = vadd.f32 0.0, %v2806
        %v2808 = vpop.f32.mrf.mxu0
        %v2809 = vpop.f32.mrf.mxu0
        %v2810 = vadd.f32 0.0, %v2809
        %v2811 = vpop.f32.mrf.mxu0
        %2812 = vmatprep.mubr.bf16.mxu0 0
        %2813 = vmatmul.mubr.bf16.gmra.mxu0 %v2578
        %v2814 = vpop.f32.mrf.mxu0
        %v2815 = vadd.f32 0.0, %v2814
        %v2816 = vpop.f32.mrf.mxu0
        %v2817 = vpop.f32.mrf.mxu0
        %v2818 = vpop.f32.mrf.mxu0
        %2819 = vdwg.mxu0
        %2820 = vmatprep.subr.bf16.mxu0 0
        %2821 = vmatpush1.bf16.msra.mxu0 0
        %2822 = vmatprep.subr.bf16.mxu0 0
        %2823 = vmatpush1.bf16.msra.mxu0 0
        %2824 = vmatprep.subr.bf16.mxu0 0
        %2825 = vmatpush1.bf16.msra.mxu0 0
        %2826 = vmatprep.subr.bf16.mxu0 0
        %2827 = vmatpush1.bf16.msra.mxu0 0
        %2828 = vmatprep.subr.bf16.mxu0 0
        %2829 = vmatpush1.bf16.msra.mxu0 0
        %2830 = vmatprep.subr.bf16.mxu0 0
        %2831 = vmatpush1.bf16.msra.mxu0 0
        %2832 = vmatprep.subr.bf16.mxu0 0
        %2833 = vmatpush1.bf16.msra.mxu0 0
        %2834 = vmatprep.subr.bf16.mxu0 0
        %2835 = vmatpush1.bf16.msra.mxu0 %v2555
        %2836 = vmatprep.subr.bf16.mxu0 0
        %2837 = vmatpush2.bf16.msra.mxu0 0
        %2838 = vmatprep.subr.bf16.mxu0 0
        %2839 = vmatpush2.bf16.msra.mxu0 0
        %2840 = vmatprep.subr.bf16.mxu0 0
        %2841 = vmatpush2.bf16.msra.mxu0 0
        %2842 = vmatprep.subr.bf16.mxu0 0
        %2843 = vmatpush2.bf16.msra.mxu0 0
        %2844 = vmatprep.subr.bf16.mxu0 0
        %2845 = vmatpush2.bf16.msra.mxu0 0
        %2846 = vmatprep.subr.bf16.mxu0 0
        %2847 = vmatpush2.bf16.msra.mxu0 0
        %2848 = vmatprep.subr.bf16.mxu0 0
        %2849 = vmatpush2.bf16.msra.mxu0 0
        %2850 = vmatprep.subr.bf16.mxu0 0
        %2851 = vmatpush2.bf16.msra.mxu0 0
        %2852 = vmatprep.mubr.bf16.mxu0 0
        %2853 = vmatmul.mubr.bf16.gmra.mxu0 %v2575
        %v2854 = vpop.f32.mrf.mxu0
        %v2855 = vadd.f32 0.0, %v2854
        %v2856 = vpop.f32.mrf.mxu0
        %v2857 = vpop.f32.mrf.mxu0
        %v2858 = vadd.f32 0.0, %v2857
        %v2859 = vpop.f32.mrf.mxu0
        %2860 = vmatprep.mubr.bf16.mxu0 0
        %2861 = vmatmul.mubr.bf16.gmra.mxu0 %v2578
        %v2862 = vpop.f32.mrf.mxu0
        %v2863 = vadd.f32 0.0, %v2862
        %v2864 = vpop.f32.mrf.mxu0
        %v2865 = vpop.f32.mrf.mxu0
        %v2866 = vpop.f32.mrf.mxu0
        %2867 = vdwg.mxu0
        %2868 = vmatprep.subr.bf16.mxu0 0
        %2869 = vmatpush1.bf16.msra.mxu0 0
        %2870 = vmatprep.subr.bf16.mxu0 0
        %2871 = vmatpush1.bf16.msra.mxu0 0
        %2872 = vmatprep.subr.bf16.mxu0 0
        %2873 = vmatpush1.bf16.msra.mxu0 0
        %2874 = vmatprep.subr.bf16.mxu0 0
        %2875 = vmatpush1.bf16.msra.mxu0 0
        %2876 = vmatprep.subr.bf16.mxu0 0
        %2877 = vmatpush1.bf16.msra.mxu0 0
        %2878 = vmatprep.subr.bf16.mxu0 0
        %2879 = vmatpush1.bf16.msra.mxu0 0
        %2880 = vmatprep.subr.bf16.mxu0 0
        %2881 = vmatpush1.bf16.msra.mxu0 0
        %2882 = vmatprep.subr.bf16.mxu0 0
        %2883 = vmatpush1.bf16.msra.mxu0 %v2556
        %2884 = vmatprep.subr.bf16.mxu0 0
        %2885 = vmatpush2.bf16.msra.mxu0 0
        %2886 = vmatprep.subr.bf16.mxu0 0
        %2887 = vmatpush2.bf16.msra.mxu0 0
        %2888 = vmatprep.subr.bf16.mxu0 0
        %2889 = vmatpush2.bf16.msra.mxu0 0
        %2890 = vmatprep.subr.bf16.mxu0 0
        %2891 = vmatpush2.bf16.msra.mxu0 0
        %2892 = vmatprep.subr.bf16.mxu0 0
        %2893 = vmatpush2.bf16.msra.mxu0 0
        %2894 = vmatprep.subr.bf16.mxu0 0
        %2895 = vmatpush2.bf16.msra.mxu0 0
        %2896 = vmatprep.subr.bf16.mxu0 0
        %2897 = vmatpush2.bf16.msra.mxu0 0
        %2898 = vmatprep.subr.bf16.mxu0 0
        %2899 = vmatpush2.bf16.msra.mxu0 0
        %2900 = vmatprep.mubr.bf16.mxu0 0
        %2901 = vmatmul.mubr.bf16.gmra.mxu0 %v2575
        %v2902 = vpop.f32.mrf.mxu0
        %v2903 = vadd.f32 0.0, %v2902
        %v2904 = vpop.f32.mrf.mxu0
        %v2905 = vpop.f32.mrf.mxu0
        %v2906 = vadd.f32 0.0, %v2905
        %v2907 = vpop.f32.mrf.mxu0
        %2908 = vmatprep.mubr.bf16.mxu0 0
        %2909 = vmatmul.mubr.bf16.gmra.mxu0 %v2578
        %v2910 = vpop.f32.mrf.mxu0
        %v2911 = vadd.f32 0.0, %v2910
        %v2912 = vpop.f32.mrf.mxu0
        %v2913 = vpop.f32.mrf.mxu0
        %v2914 = vpop.f32.mrf.mxu0
        %2915 = vdwg.mxu0
        %2916 = vmatprep.subr.bf16.mxu0 0
        %2917 = vmatpush1.bf16.msra.mxu0 0
        %2918 = vmatprep.subr.bf16.mxu0 0
        %2919 = vmatpush1.bf16.msra.mxu0 0
        %2920 = vmatprep.subr.bf16.mxu0 0
        %2921 = vmatpush1.bf16.msra.mxu0 0
        %2922 = vmatprep.subr.bf16.mxu0 0
        %2923 = vmatpush1.bf16.msra.mxu0 0
        %2924 = vmatprep.subr.bf16.mxu0 0
        %2925 = vmatpush1.bf16.msra.mxu0 0
        %2926 = vmatprep.subr.bf16.mxu0 0
        %2927 = vmatpush1.bf16.msra.mxu0 0
        %2928 = vmatprep.subr.bf16.mxu0 0
        %2929 = vmatpush1.bf16.msra.mxu0 0
        %2930 = vmatprep.subr.bf16.mxu0 0
        %2931 = vmatpush1.bf16.msra.mxu0 %v2557
        %2932 = vmatprep.subr.bf16.mxu0 0
        %2933 = vmatpush2.bf16.msra.mxu0 0
        %2934 = vmatprep.subr.bf16.mxu0 0
        %2935 = vmatpush2.bf16.msra.mxu0 0
        %2936 = vmatprep.subr.bf16.mxu0 0
        %2937 = vmatpush2.bf16.msra.mxu0 0
        %2938 = vmatprep.subr.bf16.mxu0 0
        %2939 = vmatpush2.bf16.msra.mxu0 0
        %2940 = vmatprep.subr.bf16.mxu0 0
        %2941 = vmatpush2.bf16.msra.mxu0 0
        %2942 = vmatprep.subr.bf16.mxu0 0
        %2943 = vmatpush2.bf16.msra.mxu0 0
        %2944 = vmatprep.subr.bf16.mxu0 0
        %2945 = vmatpush2.bf16.msra.mxu0 0
        %2946 = vmatprep.subr.bf16.mxu0 0
        %2947 = vmatpush2.bf16.msra.mxu0 0
        %2948 = vmatprep.mubr.bf16.mxu0 0
        %2949 = vmatmul.mubr.bf16.gmra.mxu0 %v2575
        %v2950 = vpop.f32.mrf.mxu0
        %v2951 = vadd.f32 0.0, %v2950
        %v2952 = vpop.f32.mrf.mxu0
        %v2953 = vpop.f32.mrf.mxu0
        %v2954 = vadd.f32 0.0, %v2953
        %v2955 = vpop.f32.mrf.mxu0
        %2956 = vmatprep.mubr.bf16.mxu0 0
        %2957 = vmatmul.mubr.bf16.gmra.mxu0 %v2578
        %v2958 = vpop.f32.mrf.mxu0
        %v2959 = vadd.f32 0.0, %v2958
        %v2960 = vpop.f32.mrf.mxu0
        %v2961 = vpop.f32.mrf.mxu0
        %v2962 = vpop.f32.mrf.mxu0
        %2963 = vdwg.mxu0
        %2964 = vmatprep.subr.bf16.mxu0 0
        %2965 = vmatpush1.bf16.msra.mxu0 0
        %2966 = vmatprep.subr.bf16.mxu0 0
        %2967 = vmatpush1.bf16.msra.mxu0 0
        %2968 = vmatprep.subr.bf16.mxu0 0
        %2969 = vmatpush1.bf16.msra.mxu0 0
        %2970 = vmatprep.subr.bf16.mxu0 0
        %2971 = vmatpush1.bf16.msra.mxu0 0
        %2972 = vmatprep.subr.bf16.mxu0 0
        %2973 = vmatpush1.bf16.msra.mxu0 0
        %2974 = vmatprep.subr.bf16.mxu0 0
        %2975 = vmatpush1.bf16.msra.mxu0 0
        %2976 = vmatprep.subr.bf16.mxu0 0
        %2977 = vmatpush1.bf16.msra.mxu0 0
        %2978 = vmatprep.subr.bf16.mxu0 0
        %2979 = vmatpush1.bf16.msra.mxu0 %v2558
        %2980 = vmatprep.subr.bf16.mxu0 0
        %2981 = vmatpush2.bf16.msra.mxu0 0
        %2982 = vmatprep.subr.bf16.mxu0 0
        %2983 = vmatpush2.bf16.msra.mxu0 0
        %2984 = vmatprep.subr.bf16.mxu0 0
        %2985 = vmatpush2.bf16.msra.mxu0 0
        %2986 = vmatprep.subr.bf16.mxu0 0
        %2987 = vmatpush2.bf16.msra.mxu0 0
        %2988 = vmatprep.subr.bf16.mxu0 0
        %2989 = vmatpush2.bf16.msra.mxu0 0
        %2990 = vmatprep.subr.bf16.mxu0 0
        %2991 = vmatpush2.bf16.msra.mxu0 0
        %2992 = vmatprep.subr.bf16.mxu0 0
        %2993 = vmatpush2.bf16.msra.mxu0 0
        %2994 = vmatprep.subr.bf16.mxu0 0
        %2995 = vmatpush2.bf16.msra.mxu0 0
        %2996 = vmatprep.mubr.bf16.mxu0 0
        %2997 = vmatmul.mubr.bf16.gmra.mxu0 %v2575
        %v2998 = vpop.f32.mrf.mxu0
        %v2999 = vadd.f32 0.0, %v2998
        %v3000 = vpop.f32.mrf.mxu0
        %v3001 = vpop.f32.mrf.mxu0
        %v3002 = vadd.f32 0.0, %v3001
        %v3003 = vpop.f32.mrf.mxu0
        %3004 = vmatprep.mubr.bf16.mxu0 0
        %3005 = vmatmul.mubr.bf16.gmra.mxu0 %v2578
        %v3006 = vpop.f32.mrf.mxu0
        %v3007 = vadd.f32 0.0, %v3006
        %v3008 = vpop.f32.mrf.mxu0
        %v3009 = vpop.f32.mrf.mxu0
        %v3010 = vpop.f32.mrf.mxu0
        %3011 = vdwg.mxu0
        %3012 = vmatprep.subr.bf16.mxu0 0
        %3013 = vmatpush1.bf16.msra.mxu0 0
        %3014 = vmatprep.subr.bf16.mxu0 0
        %3015 = vmatpush1.bf16.msra.mxu0 0
        %3016 = vmatprep.subr.bf16.mxu0 0
        %3017 = vmatpush1.bf16.msra.mxu0 0
        %3018 = vmatprep.subr.bf16.mxu0 0
        %3019 = vmatpush1.bf16.msra.mxu0 0
        %3020 = vmatprep.subr.bf16.mxu0 0
        %3021 = vmatpush1.bf16.msra.mxu0 0
        %3022 = vmatprep.subr.bf16.mxu0 0
        %3023 = vmatpush1.bf16.msra.mxu0 0
        %3024 = vmatprep.subr.bf16.mxu0 0
        %3025 = vmatpush1.bf16.msra.mxu0 0
        %3026 = vmatprep.subr.bf16.mxu0 0
        %3027 = vmatpush1.bf16.msra.mxu0 %v2559
        %3028 = vmatprep.subr.bf16.mxu0 0
        %3029 = vmatpush2.bf16.msra.mxu0 0
        %3030 = vmatprep.subr.bf16.mxu0 0
        %3031 = vmatpush2.bf16.msra.mxu0 0
        %3032 = vmatprep.subr.bf16.mxu0 0
        %3033 = vmatpush2.bf16.msra.mxu0 0
        %3034 = vmatprep.subr.bf16.mxu0 0
        %3035 = vmatpush2.bf16.msra.mxu0 0
        %3036 = vmatprep.subr.bf16.mxu0 0
        %3037 = vmatpush2.bf16.msra.mxu0 0
        %3038 = vmatprep.subr.bf16.mxu0 0
        %3039 = vmatpush2.bf16.msra.mxu0 0
        %3040 = vmatprep.subr.bf16.mxu0 0
        %3041 = vmatpush2.bf16.msra.mxu0 0
        %3042 = vmatprep.subr.bf16.mxu0 0
        %3043 = vmatpush2.bf16.msra.mxu0 0
        %3044 = vmatprep.mubr.bf16.mxu0 0
        %3045 = vmatmul.mubr.bf16.gmra.mxu0 %v2575
        %v3046 = vpop.f32.mrf.mxu0
        %v3047 = vadd.f32 0.0, %v3046
        %v3048 = vpop.f32.mrf.mxu0
        %v3049 = vpop.f32.mrf.mxu0
        %v3050 = vadd.f32 0.0, %v3049
        %v3051 = vpop.f32.mrf.mxu0
        %3052 = vmatprep.mubr.bf16.mxu0 0
        %3053 = vmatmul.mubr.bf16.gmra.mxu0 %v2578
        %v3054 = vpop.f32.mrf.mxu0
        %v3055 = vadd.f32 0.0, %v3054
        %v3056 = vpop.f32.mrf.mxu0
        %v3057 = vpop.f32.mrf.mxu0
        %v3058 = vpop.f32.mrf.mxu0
        %3059 = vdwg.mxu0
        %3060 = vmatprep.subr.bf16.mxu0 0
        %3061 = vmatpush1.bf16.msra.mxu0 0
        %3062 = vmatprep.subr.bf16.mxu0 0
        %3063 = vmatpush1.bf16.msra.mxu0 0
        %3064 = vmatprep.subr.bf16.mxu0 0
        %3065 = vmatpush1.bf16.msra.mxu0 0
        %3066 = vmatprep.subr.bf16.mxu0 0
        %3067 = vmatpush1.bf16.msra.mxu0 0
        %3068 = vmatprep.subr.bf16.mxu0 0
        %3069 = vmatpush1.bf16.msra.mxu0 0
        %3070 = vmatprep.subr.bf16.mxu0 0
        %3071 = vmatpush1.bf16.msra.mxu0 0
        %3072 = vmatprep.subr.bf16.mxu0 0
        %3073 = vmatpush1.bf16.msra.mxu0 0
        %3074 = vmatprep.subr.bf16.mxu0 0
        %3075 = vmatpush1.bf16.msra.mxu0 %v2560
        %3076 = vmatprep.subr.bf16.mxu0 0
        %3077 = vmatpush2.bf16.msra.mxu0 0
        %3078 = vmatprep.subr.bf16.mxu0 0
        %3079 = vmatpush2.bf16.msra.mxu0 0
        %3080 = vmatprep.subr.bf16.mxu0 0
        %3081 = vmatpush2.bf16.msra.mxu0 0
        %3082 = vmatprep.subr.bf16.mxu0 0
        %3083 = vmatpush2.bf16.msra.mxu0 0
        %3084 = vmatprep.subr.bf16.mxu0 0
        %3085 = vmatpush2.bf16.msra.mxu0 0
        %3086 = vmatprep.subr.bf16.mxu0 0
        %3087 = vmatpush2.bf16.msra.mxu0 0
        %3088 = vmatprep.subr.bf16.mxu0 0
        %3089 = vmatpush2.bf16.msra.mxu0 0
        %3090 = vmatprep.subr.bf16.mxu0 0
        %3091 = vmatpush2.bf16.msra.mxu0 0
        %3092 = vmatprep.mubr.bf16.mxu0 0
        %3093 = vmatmul.mubr.bf16.gmra.mxu0 %v2575
        %v3094 = vpop.f32.mrf.mxu0
        %v3095 = vadd.f32 0.0, %v3094
        %v3096 = vpop.f32.mrf.mxu0
        %v3097 = vpop.f32.mrf.mxu0
        %v3098 = vadd.f32 0.0, %v3097
        %v3099 = vpop.f32.mrf.mxu0
        %3100 = vmatprep.mubr.bf16.mxu0 0
        %3101 = vmatmul.mubr.bf16.gmra.mxu0 %v2578
        %v3102 = vpop.f32.mrf.mxu0
        %v3103 = vadd.f32 0.0, %v3102
        %v3104 = vpop.f32.mrf.mxu0
        %v3105 = vpop.f32.mrf.mxu0
        %v3106 = vpop.f32.mrf.mxu0
        %3107 = vdwg.mxu0
        %3108 = vmatprep.subr.bf16.mxu0 0
        %3109 = vmatpush1.bf16.msra.mxu0 0
        %3110 = vmatprep.subr.bf16.mxu0 0
        %3111 = vmatpush1.bf16.msra.mxu0 0
        %3112 = vmatprep.subr.bf16.mxu0 0
        %3113 = vmatpush1.bf16.msra.mxu0 0
        %3114 = vmatprep.subr.bf16.mxu0 0
        %3115 = vmatpush1.bf16.msra.mxu0 0
        %3116 = vmatprep.subr.bf16.mxu0 0
        %3117 = vmatpush1.bf16.msra.mxu0 0
        %3118 = vmatprep.subr.bf16.mxu0 0
        %3119 = vmatpush1.bf16.msra.mxu0 0
        %3120 = vmatprep.subr.bf16.mxu0 0
        %3121 = vmatpush1.bf16.msra.mxu0 0
        %3122 = vmatprep.subr.bf16.mxu0 0
        %3123 = vmatpush1.bf16.msra.mxu0 %v2561
        %3124 = vmatprep.subr.bf16.mxu0 0
        %3125 = vmatpush2.bf16.msra.mxu0 0
        %3126 = vmatprep.subr.bf16.mxu0 0
        %3127 = vmatpush2.bf16.msra.mxu0 0
        %3128 = vmatprep.subr.bf16.mxu0 0
        %3129 = vmatpush2.bf16.msra.mxu0 0
        %3130 = vmatprep.subr.bf16.mxu0 0
        %3131 = vmatpush2.bf16.msra.mxu0 0
        %3132 = vmatprep.subr.bf16.mxu0 0
        %3133 = vmatpush2.bf16.msra.mxu0 0
        %3134 = vmatprep.subr.bf16.mxu0 0
        %3135 = vmatpush2.bf16.msra.mxu0 0
        %3136 = vmatprep.subr.bf16.mxu0 0
        %3137 = vmatpush2.bf16.msra.mxu0 0
        %3138 = vmatprep.subr.bf16.mxu0 0
        %3139 = vmatpush2.bf16.msra.mxu0 0
        %3140 = vmatprep.mubr.bf16.mxu0 0
        %3141 = vmatmul.mubr.bf16.gmra.mxu0 %v2575
        %v3142 = vpop.f32.mrf.mxu0
        %v3143 = vadd.f32 0.0, %v3142
        %v3144 = vpop.f32.mrf.mxu0
        %v3145 = vpop.f32.mrf.mxu0
        %v3146 = vadd.f32 0.0, %v3145
        %v3147 = vpop.f32.mrf.mxu0
        %3148 = vmatprep.mubr.bf16.mxu0 0
        %3149 = vmatmul.mubr.bf16.gmra.mxu0 %v2578
        %v3150 = vpop.f32.mrf.mxu0
        %v3151 = vadd.f32 0.0, %v3150
        %v3152 = vpop.f32.mrf.mxu0
        %v3153 = vpop.f32.mrf.mxu0
        %v3154 = vpop.f32.mrf.mxu0
        %3155 = vdwg.mxu0
        %3156 = vmatprep.subr.bf16.mxu0 0
        %3157 = vmatpush1.bf16.msra.mxu0 0
        %3158 = vmatprep.subr.bf16.mxu0 0
        %3159 = vmatpush1.bf16.msra.mxu0 0
        %3160 = vmatprep.subr.bf16.mxu0 0
        %3161 = vmatpush1.bf16.msra.mxu0 0
        %3162 = vmatprep.subr.bf16.mxu0 0
        %3163 = vmatpush1.bf16.msra.mxu0 0
        %3164 = vmatprep.subr.bf16.mxu0 0
        %3165 = vmatpush1.bf16.msra.mxu0 0
        %3166 = vmatprep.subr.bf16.mxu0 0
        %3167 = vmatpush1.bf16.msra.mxu0 0
        %3168 = vmatprep.subr.bf16.mxu0 0
        %3169 = vmatpush1.bf16.msra.mxu0 0
        %3170 = vmatprep.subr.bf16.mxu0 0
        %3171 = vmatpush1.bf16.msra.mxu0 %v2562
        %3172 = vmatprep.subr.bf16.mxu0 0
        %3173 = vmatpush2.bf16.msra.mxu0 0
        %3174 = vmatprep.subr.bf16.mxu0 0
        %3175 = vmatpush2.bf16.msra.mxu0 0
        %3176 = vmatprep.subr.bf16.mxu0 0
        %3177 = vmatpush2.bf16.msra.mxu0 0
        %3178 = vmatprep.subr.bf16.mxu0 0
        %3179 = vmatpush2.bf16.msra.mxu0 0
        %3180 = vmatprep.subr.bf16.mxu0 0
        %3181 = vmatpush2.bf16.msra.mxu0 0
        %3182 = vmatprep.subr.bf16.mxu0 0
        %3183 = vmatpush2.bf16.msra.mxu0 0
        %3184 = vmatprep.subr.bf16.mxu0 0
        %3185 = vmatpush2.bf16.msra.mxu0 0
        %3186 = vmatprep.subr.bf16.mxu0 0
        %3187 = vmatpush2.bf16.msra.mxu0 0
        %3188 = vmatprep.mubr.bf16.mxu0 0
        %3189 = vmatmul.mubr.bf16.gmra.mxu0 %v2575
        %v3190 = vpop.f32.mrf.mxu0
        %v3191 = vadd.f32 0.0, %v3190
        %v3192 = vpop.f32.mrf.mxu0
        %v3193 = vpop.f32.mrf.mxu0
        %v3194 = vadd.f32 0.0, %v3193
        %v3195 = vpop.f32.mrf.mxu0
        %3196 = vmatprep.mubr.bf16.mxu0 0
        %3197 = vmatmul.mubr.bf16.gmra.mxu0 %v2578
        %v3198 = vpop.f32.mrf.mxu0
        %v3199 = vadd.f32 0.0, %v3198
        %v3200 = vpop.f32.mrf.mxu0
        %v3201 = vpop.f32.mrf.mxu0
        %v3202 = vpop.f32.mrf.mxu0
        %3203 = vdwg.mxu0
        %3204 = vmatprep.subr.bf16.mxu0 0
        %3205 = vmatpush1.bf16.msra.mxu0 0
        %3206 = vmatprep.subr.bf16.mxu0 0
        %3207 = vmatpush1.bf16.msra.mxu0 0
        %3208 = vmatprep.subr.bf16.mxu0 0
        %3209 = vmatpush1.bf16.msra.mxu0 0
        %3210 = vmatprep.subr.bf16.mxu0 0
        %3211 = vmatpush1.bf16.msra.mxu0 0
        %3212 = vmatprep.subr.bf16.mxu0 0
        %3213 = vmatpush1.bf16.msra.mxu0 0
        %3214 = vmatprep.subr.bf16.mxu0 0
        %3215 = vmatpush1.bf16.msra.mxu0 0
        %3216 = vmatprep.subr.bf16.mxu0 0
        %3217 = vmatpush1.bf16.msra.mxu0 0
        %3218 = vmatprep.subr.bf16.mxu0 0
        %3219 = vmatpush1.bf16.msra.mxu0 %v2563
        %3220 = vmatprep.subr.bf16.mxu0 0
        %3221 = vmatpush2.bf16.msra.mxu0 0
        %3222 = vmatprep.subr.bf16.mxu0 0
        %3223 = vmatpush2.bf16.msra.mxu0 0
        %3224 = vmatprep.subr.bf16.mxu0 0
        %3225 = vmatpush2.bf16.msra.mxu0 0
        %3226 = vmatprep.subr.bf16.mxu0 0
        %3227 = vmatpush2.bf16.msra.mxu0 0
        %3228 = vmatprep.subr.bf16.mxu0 0
        %3229 = vmatpush2.bf16.msra.mxu0 0
        %3230 = vmatprep.subr.bf16.mxu0 0
        %3231 = vmatpush2.bf16.msra.mxu0 0
        %3232 = vmatprep.subr.bf16.mxu0 0
        %3233 = vmatpush2.bf16.msra.mxu0 0
        %3234 = vmatprep.subr.bf16.mxu0 0
        %3235 = vmatpush2.bf16.msra.mxu0 0
        %3236 = vmatprep.mubr.bf16.mxu0 0
        %3237 = vmatmul.mubr.bf16.gmra.mxu0 %v2575
        %v3238 = vpop.f32.mrf.mxu0
        %v3239 = vadd.f32 0.0, %v3238
        %v3240 = vpop.f32.mrf.mxu0
        %v3241 = vpop.f32.mrf.mxu0
        %v3242 = vadd.f32 0.0, %v3241
        %v3243 = vpop.f32.mrf.mxu0
        %3244 = vmatprep.mubr.bf16.mxu0 0
        %3245 = vmatmul.mubr.bf16.gmra.mxu0 %v2578
        %v3246 = vpop.f32.mrf.mxu0
        %v3247 = vadd.f32 0.0, %v3246
        %v3248 = vpop.f32.mrf.mxu0
        %v3249 = vpop.f32.mrf.mxu0
        %v3250 = vpop.f32.mrf.mxu0
        %3251 = vdwg.mxu0
        %3252 = vmatprep.subr.bf16.mxu0 0
        %3253 = vmatpush1.bf16.msra.mxu0 0
        %3254 = vmatprep.subr.bf16.mxu0 0
        %3255 = vmatpush1.bf16.msra.mxu0 0
        %3256 = vmatprep.subr.bf16.mxu0 0
        %3257 = vmatpush1.bf16.msra.mxu0 0
        %3258 = vmatprep.subr.bf16.mxu0 0
        %3259 = vmatpush1.bf16.msra.mxu0 0
        %3260 = vmatprep.subr.bf16.mxu0 0
        %3261 = vmatpush1.bf16.msra.mxu0 0
        %3262 = vmatprep.subr.bf16.mxu0 0
        %3263 = vmatpush1.bf16.msra.mxu0 0
        %3264 = vmatprep.subr.bf16.mxu0 0
        %3265 = vmatpush1.bf16.msra.mxu0 0
        %3266 = vmatprep.subr.bf16.mxu0 0
        %3267 = vmatpush1.bf16.msra.mxu0 %v2564
        %3268 = vmatprep.subr.bf16.mxu0 0
        %3269 = vmatpush2.bf16.msra.mxu0 0
        %3270 = vmatprep.subr.bf16.mxu0 0
        %3271 = vmatpush2.bf16.msra.mxu0 0
        %3272 = vmatprep.subr.bf16.mxu0 0
        %3273 = vmatpush2.bf16.msra.mxu0 0
        %3274 = vmatprep.subr.bf16.mxu0 0
        %3275 = vmatpush2.bf16.msra.mxu0 0
        %3276 = vmatprep.subr.bf16.mxu0 0
        %3277 = vmatpush2.bf16.msra.mxu0 0
        %3278 = vmatprep.subr.bf16.mxu0 0
        %3279 = vmatpush2.bf16.msra.mxu0 0
        %3280 = vmatprep.subr.bf16.mxu0 0
        %3281 = vmatpush2.bf16.msra.mxu0 0
        %3282 = vmatprep.subr.bf16.mxu0 0
        %3283 = vmatpush2.bf16.msra.mxu0 0
        %3284 = vmatprep.mubr.bf16.mxu0 0
        %3285 = vmatmul.mubr.bf16.gmra.mxu0 %v2575
        %v3286 = vpop.f32.mrf.mxu0
        %v3287 = vadd.f32 0.0, %v3286
        %v3288 = vpop.f32.mrf.mxu0
        %v3289 = vpop.f32.mrf.mxu0
        %v3290 = vadd.f32 0.0, %v3289
        %v3291 = vpop.f32.mrf.mxu0
        %3292 = vmatprep.mubr.bf16.mxu0 0
        %3293 = vmatmul.mubr.bf16.gmra.mxu0 %v2578
        %v3294 = vpop.f32.mrf.mxu0
        %v3295 = vadd.f32 0.0, %v3294
        %v3296 = vpop.f32.mrf.mxu0
        %v3297 = vpop.f32.mrf.mxu0
        %v3298 = vpop.f32.mrf.mxu0
        %3299 = vdwg.mxu0
        %3300 = vmatprep.subr.bf16.mxu0 0
        %3301 = vmatpush1.bf16.msra.mxu0 0
        %3302 = vmatprep.subr.bf16.mxu0 0
        %3303 = vmatpush1.bf16.msra.mxu0 0
        %3304 = vmatprep.subr.bf16.mxu0 0
        %3305 = vmatpush1.bf16.msra.mxu0 0
        %3306 = vmatprep.subr.bf16.mxu0 0
        %3307 = vmatpush1.bf16.msra.mxu0 0
        %3308 = vmatprep.subr.bf16.mxu0 0
        %3309 = vmatpush1.bf16.msra.mxu0 0
        %3310 = vmatprep.subr.bf16.mxu0 0
        %3311 = vmatpush1.bf16.msra.mxu0 0
        %3312 = vmatprep.subr.bf16.mxu0 0
        %3313 = vmatpush1.bf16.msra.mxu0 0
        %3314 = vmatprep.subr.bf16.mxu0 0
        %3315 = vmatpush1.bf16.msra.mxu0 %v2565
        %3316 = vmatprep.subr.bf16.mxu0 0
        %3317 = vmatpush2.bf16.msra.mxu0 0
        %3318 = vmatprep.subr.bf16.mxu0 0
        %3319 = vmatpush2.bf16.msra.mxu0 0
        %3320 = vmatprep.subr.bf16.mxu0 0
        %3321 = vmatpush2.bf16.msra.mxu0 0
        %3322 = vmatprep.subr.bf16.mxu0 0
        %3323 = vmatpush2.bf16.msra.mxu0 0
        %3324 = vmatprep.subr.bf16.mxu0 0
        %3325 = vmatpush2.bf16.msra.mxu0 0
        %3326 = vmatprep.subr.bf16.mxu0 0
        %3327 = vmatpush2.bf16.msra.mxu0 0
        %3328 = vmatprep.subr.bf16.mxu0 0
        %3329 = vmatpush2.bf16.msra.mxu0 0
        %3330 = vmatprep.subr.bf16.mxu0 0
        %3331 = vmatpush2.bf16.msra.mxu0 0
        %3332 = vmatprep.mubr.bf16.mxu0 0
        %3333 = vmatmul.mubr.bf16.gmra.mxu0 %v2575
        %v3334 = vpop.f32.mrf.mxu0
        %v3335 = vadd.f32 0.0, %v3334
        %v3336 = vpop.f32.mrf.mxu0
        %v3337 = vpop.f32.mrf.mxu0
        %v3338 = vadd.f32 0.0, %v3337
        %v3339 = vpop.f32.mrf.mxu0
        %3340 = vmatprep.mubr.bf16.mxu0 0
        %3341 = vmatmul.mubr.bf16.gmra.mxu0 %v2578
        %v3342 = vpop.f32.mrf.mxu0
        %v3343 = vadd.f32 0.0, %v3342
        %v3344 = vpop.f32.mrf.mxu0
        %v3345 = vpop.f32.mrf.mxu0
        %v3346 = vpop.f32.mrf.mxu0
        %3347 = vdwg.mxu0
        %v3348 = vpack.c.bf16 %v2618, %v2615
        %v3349 = vpack.c.bf16 %v2663, %v2623
        %v3350 = vpack.c.bf16 %v2671, %v2666
        %v3351 = vpack.c.bf16 %v2714, %v2711
        %v3352 = vpack.c.bf16 %v2759, %v2719
        %v3353 = vpack.c.bf16 %v2767, %v2762
        %v3354 = vpack.c.bf16 %v2810, %v2807
        %v3355 = vpack.c.bf16 %v2855, %v2815
        %v3356 = vpack.c.bf16 %v2863, %v2858
        %v3357 = vpack.c.bf16 %v2906, %v2903
        %v3358 = vpack.c.bf16 %v2951, %v2911
        %v3359 = vpack.c.bf16 %v2959, %v2954
        %v3360 = vpack.c.bf16 %v3002, %v2999
        %v3361 = vpack.c.bf16 %v3047, %v3007
        %v3362 = vpack.c.bf16 %v3055, %v3050
        %v3363 = vpack.c.bf16 %v3098, %v3095
        %v3364 = vpack.c.bf16 %v3143, %v3103
        %v3365 = vpack.c.bf16 %v3151, %v3146
        %v3366 = vpack.c.bf16 %v3194, %v3191
        %v3367 = vpack.c.bf16 %v3239, %v3199
        %v3368 = vpack.c.bf16 %v3247, %v3242
        %v3369 = vpack.c.bf16 %v3290, %v3287
        %v3370 = vpack.c.bf16 %v3335, %v3295
        %v3371 = vpack.c.bf16 %v3343, %v3338
        %v3376 = vunpack.c.l.b16 %v2546
        %v3377 = vunpack.c.l.b16 %v2547
        %v3378 = vunpack.c.l.b16 %v2548
        %v3379 = vunpack.c.l.b16 %v2549
        %v3380 = vpack.c.b16 %v3377, %v3376
        %v3381 = vpack.c.b16 %v3379, %v3378
        %vm3384 = vcmask 261120
        %v3386 = vsel %vm3384, %v3348, 0
        %v3389 = vsel %vm3384, %v3349, 0
        %v3392 = vsel %vm3384, %v3350, 0
        %v3395 = vsel %vm3384, %v3351, 0
        %v3398 = vsel %vm3384, %v3352, 0
        %v3401 = vsel %vm3384, %v3353, 0
        %v3404 = vsel %vm3384, %v3354, 0
        %v3407 = vsel %vm3384, %v3355, 0
        %v3410 = vsel %vm3384, %v3356, 0
        %v3413 = vsel %vm3384, %v3357, 0
        %v3416 = vsel %vm3384, %v3358, 0
        %v3419 = vsel %vm3384, %v3359, 0
        %v3422 = vsel %vm3384, %v3360, 0
        %v3425 = vsel %vm3384, %v3361, 0
        %v3428 = vsel %vm3384, %v3362, 0
        %v3431 = vsel %vm3384, %v3363, 0
        %v3434 = vsel %vm3384, %v3364, 0
        %v3437 = vsel %vm3384, %v3365, 0
        %v3440 = vsel %vm3384, %v3366, 0
        %v3443 = vsel %vm3384, %v3367, 0
        %v3446 = vsel %vm3384, %v3368, 0
        %v3449 = vsel %vm3384, %v3369, 0
        %v3452 = vsel %vm3384, %v3370, 0
        %v3455 = vsel %vm3384, %v3371, 0
        %3457 = vmatprep.subr.bf16.mxu0 0
        %3458 = vmatpush1.bf16.msra.mxu0 0
        %3459 = vmatprep.subr.bf16.mxu0 0
        %3460 = vmatpush1.bf16.msra.mxu0 0
        %3461 = vmatprep.subr.bf16.mxu0 0
        %3462 = vmatpush1.bf16.msra.mxu0 0
        %3463 = vmatprep.subr.bf16.mxu0 0
        %3464 = vmatpush1.bf16.msra.mxu0 0
        %3465 = vmatprep.subr.bf16.mxu0 0
        %3466 = vmatpush1.bf16.msra.mxu0 0
        %3467 = vmatprep.subr.bf16.mxu0 0
        %3468 = vmatpush1.bf16.msra.mxu0 0
        %3469 = vmatprep.subr.bf16.mxu0 0
        %3470 = vmatpush1.bf16.msra.mxu0 %v3381
        %3471 = vmatprep.subr.bf16.mxu0 0
        %3472 = vmatpush1.bf16.msra.mxu0 %v3380
        %3473 = vmatprep.subr.bf16.mxu0 0
        %3474 = vmatpush2.bf16.msra.mxu0 0
        %3475 = vmatprep.subr.bf16.mxu0 0
        %3476 = vmatpush2.bf16.msra.mxu0 0
        %3477 = vmatprep.subr.bf16.mxu0 0
        %3478 = vmatpush2.bf16.msra.mxu0 0
        %3479 = vmatprep.subr.bf16.mxu0 0
        %3480 = vmatpush2.bf16.msra.mxu0 0
        %3481 = vmatprep.subr.bf16.mxu0 0
        %3482 = vmatpush2.bf16.msra.mxu0 0
        %3483 = vmatprep.subr.bf16.mxu0 0
        %3484 = vmatpush2.bf16.msra.mxu0 0
        %3485 = vmatprep.subr.bf16.mxu0 0
        %3486 = vmatpush2.bf16.msra.mxu0 0
        %3487 = vmatprep.subr.bf16.mxu0 0
        %3488 = vmatpush2.bf16.msra.mxu0 0
        %3489 = vmatprep.mubr.bf16.mxu0 0
        %3490 = vmatmul.mubr.bf16.gmra.mxu0 %v3386
        %v3491 = vpop.f32.mrf.mxu0
        %v3492 = vadd.f32 0.0, %v3491
        %v3493 = vpop.f32.mrf.mxu0
        %v3494 = vpop.f32.mrf.mxu0
        %v3495 = vadd.f32 0.0, %v3494
        %v3496 = vpop.f32.mrf.mxu0
        %3497 = vmatprep.mubr.bf16.mxu0 0
        %3498 = vmatmul.mubr.bf16.gmra.mxu0 %v3389
        %v3499 = vpop.f32.mrf.mxu0
        %v3500 = vadd.f32 0.0, %v3499
        %v3501 = vpop.f32.mrf.mxu0
        %v3502 = vpop.f32.mrf.mxu0
        %v3503 = vadd.f32 0.0, %v3502
        %v3504 = vpop.f32.mrf.mxu0
        %3505 = vmatprep.mubr.bf16.mxu0 0
        %3506 = vmatmul.mubr.bf16.gmra.mxu0 %v3392
        %v3507 = vpop.f32.mrf.mxu0
        %v3508 = vadd.f32 0.0, %v3507
        %v3509 = vpop.f32.mrf.mxu0
        %v3510 = vpop.f32.mrf.mxu0
        %v3511 = vadd.f32 0.0, %v3510
        %v3512 = vpop.f32.mrf.mxu0
        %3513 = vmatprep.mubr.bf16.mxu0 0
        %3514 = vmatmul.mubr.bf16.gmra.mxu0 %v3395
        %v3515 = vpop.f32.mrf.mxu0
        %v3516 = vadd.f32 0.0, %v3515
        %v3517 = vpop.f32.mrf.mxu0
        %v3518 = vpop.f32.mrf.mxu0
        %v3519 = vadd.f32 0.0, %v3518
        %v3520 = vpop.f32.mrf.mxu0
        %3521 = vmatprep.mubr.bf16.mxu0 0
        %3522 = vmatmul.mubr.bf16.gmra.mxu0 %v3398
        %v3523 = vpop.f32.mrf.mxu0
        %v3524 = vadd.f32 0.0, %v3523
        %v3525 = vpop.f32.mrf.mxu0
        %v3526 = vpop.f32.mrf.mxu0
        %v3527 = vadd.f32 0.0, %v3526
        %v3528 = vpop.f32.mrf.mxu0
        %3529 = vmatprep.mubr.bf16.mxu0 0
        %3530 = vmatmul.mubr.bf16.gmra.mxu0 %v3401
        %v3531 = vpop.f32.mrf.mxu0
        %v3532 = vadd.f32 0.0, %v3531
        %v3533 = vpop.f32.mrf.mxu0
        %v3534 = vpop.f32.mrf.mxu0
        %v3535 = vadd.f32 0.0, %v3534
        %v3536 = vpop.f32.mrf.mxu0
        %3537 = vmatprep.mubr.bf16.mxu0 0
        %3538 = vmatmul.mubr.bf16.gmra.mxu0 %v3404
        %v3539 = vpop.f32.mrf.mxu0
        %v3540 = vadd.f32 0.0, %v3539
        %v3541 = vpop.f32.mrf.mxu0
        %v3542 = vpop.f32.mrf.mxu0
        %v3543 = vadd.f32 0.0, %v3542
        %v3544 = vpop.f32.mrf.mxu0
        %3545 = vmatprep.mubr.bf16.mxu0 0
        %3546 = vmatmul.mubr.bf16.gmra.mxu0 %v3407
        %v3547 = vpop.f32.mrf.mxu0
        %v3548 = vadd.f32 0.0, %v3547
        %v3549 = vpop.f32.mrf.mxu0
        %v3550 = vpop.f32.mrf.mxu0
        %v3551 = vadd.f32 0.0, %v3550
        %v3552 = vpop.f32.mrf.mxu0
        %3553 = vmatprep.mubr.bf16.mxu0 0
        %3554 = vmatmul.mubr.bf16.gmra.mxu0 %v3410
        %v3555 = vpop.f32.mrf.mxu0
        %v3556 = vadd.f32 0.0, %v3555
        %v3557 = vpop.f32.mrf.mxu0
        %v3558 = vpop.f32.mrf.mxu0
        %v3559 = vadd.f32 0.0, %v3558
        %v3560 = vpop.f32.mrf.mxu0
        %3561 = vmatprep.mubr.bf16.mxu0 0
        %3562 = vmatmul.mubr.bf16.gmra.mxu0 %v3413
        %v3563 = vpop.f32.mrf.mxu0
        %v3564 = vadd.f32 0.0, %v3563
        %v3565 = vpop.f32.mrf.mxu0
        %v3566 = vpop.f32.mrf.mxu0
        %v3567 = vadd.f32 0.0, %v3566
        %v3568 = vpop.f32.mrf.mxu0
        %3569 = vmatprep.mubr.bf16.mxu0 0
        %3570 = vmatmul.mubr.bf16.gmra.mxu0 %v3416
        %v3571 = vpop.f32.mrf.mxu0
        %v3572 = vadd.f32 0.0, %v3571
        %v3573 = vpop.f32.mrf.mxu0
        %v3574 = vpop.f32.mrf.mxu0
        %v3575 = vadd.f32 0.0, %v3574
        %v3576 = vpop.f32.mrf.mxu0
        %3577 = vmatprep.mubr.bf16.mxu0 0
        %3578 = vmatmul.mubr.bf16.gmra.mxu0 %v3419
        %v3579 = vpop.f32.mrf.mxu0
        %v3580 = vadd.f32 0.0, %v3579
        %v3581 = vpop.f32.mrf.mxu0
        %v3582 = vpop.f32.mrf.mxu0
        %v3583 = vadd.f32 0.0, %v3582
        %v3584 = vpop.f32.mrf.mxu0
        %3585 = vmatprep.mubr.bf16.mxu0 0
        %3586 = vmatmul.mubr.bf16.gmra.mxu0 %v3422
        %v3587 = vpop.f32.mrf.mxu0
        %v3588 = vadd.f32 0.0, %v3587
        %v3589 = vpop.f32.mrf.mxu0
        %v3590 = vpop.f32.mrf.mxu0
        %v3591 = vadd.f32 0.0, %v3590
        %v3592 = vpop.f32.mrf.mxu0
        %3593 = vmatprep.mubr.bf16.mxu0 0
        %3594 = vmatmul.mubr.bf16.gmra.mxu0 %v3425
        %v3595 = vpop.f32.mrf.mxu0
        %v3596 = vadd.f32 0.0, %v3595
        %v3597 = vpop.f32.mrf.mxu0
        %v3598 = vpop.f32.mrf.mxu0
        %v3599 = vadd.f32 0.0, %v3598
        %v3600 = vpop.f32.mrf.mxu0
        %3601 = vmatprep.mubr.bf16.mxu0 0
        %3602 = vmatmul.mubr.bf16.gmra.mxu0 %v3428
        %v3603 = vpop.f32.mrf.mxu0
        %v3604 = vadd.f32 0.0, %v3603
        %v3605 = vpop.f32.mrf.mxu0
        %v3606 = vpop.f32.mrf.mxu0
        %v3607 = vadd.f32 0.0, %v3606
        %v3608 = vpop.f32.mrf.mxu0
        %3609 = vmatprep.mubr.bf16.mxu0 0
        %3610 = vmatmul.mubr.bf16.gmra.mxu0 %v3431
        %v3611 = vpop.f32.mrf.mxu0
        %v3612 = vadd.f32 0.0, %v3611
        %v3613 = vpop.f32.mrf.mxu0
        %v3614 = vpop.f32.mrf.mxu0
        %v3615 = vadd.f32 0.0, %v3614
        %v3616 = vpop.f32.mrf.mxu0
        %3617 = vmatprep.mubr.bf16.mxu0 0
        %3618 = vmatmul.mubr.bf16.gmra.mxu0 %v3434
        %v3619 = vpop.f32.mrf.mxu0
        %v3620 = vadd.f32 0.0, %v3619
        %v3621 = vpop.f32.mrf.mxu0
        %v3622 = vpop.f32.mrf.mxu0
        %v3623 = vadd.f32 0.0, %v3622
        %v3624 = vpop.f32.mrf.mxu0
        %3625 = vmatprep.mubr.bf16.mxu0 0
        %3626 = vmatmul.mubr.bf16.gmra.mxu0 %v3437
        %v3627 = vpop.f32.mrf.mxu0
        %v3628 = vadd.f32 0.0, %v3627
        %v3629 = vpop.f32.mrf.mxu0
        %v3630 = vpop.f32.mrf.mxu0
        %v3631 = vadd.f32 0.0, %v3630
        %v3632 = vpop.f32.mrf.mxu0
        %3633 = vmatprep.mubr.bf16.mxu0 0
        %3634 = vmatmul.mubr.bf16.gmra.mxu0 %v3440
        %v3635 = vpop.f32.mrf.mxu0
        %v3636 = vadd.f32 0.0, %v3635
        %v3637 = vpop.f32.mrf.mxu0
        %v3638 = vpop.f32.mrf.mxu0
        %v3639 = vadd.f32 0.0, %v3638
        %v3640 = vpop.f32.mrf.mxu0
        %3641 = vmatprep.mubr.bf16.mxu0 0
        %3642 = vmatmul.mubr.bf16.gmra.mxu0 %v3443
        %v3643 = vpop.f32.mrf.mxu0
        %v3644 = vadd.f32 0.0, %v3643
        %v3645 = vpop.f32.mrf.mxu0
        %v3646 = vpop.f32.mrf.mxu0
        %v3647 = vadd.f32 0.0, %v3646
        %v3648 = vpop.f32.mrf.mxu0
        %3649 = vmatprep.mubr.bf16.mxu0 0
        %3650 = vmatmul.mubr.bf16.gmra.mxu0 %v3446
        %v3651 = vpop.f32.mrf.mxu0
        %v3652 = vadd.f32 0.0, %v3651
        %v3653 = vpop.f32.mrf.mxu0
        %v3654 = vpop.f32.mrf.mxu0
        %v3655 = vadd.f32 0.0, %v3654
        %v3656 = vpop.f32.mrf.mxu0
        %3657 = vmatprep.mubr.bf16.mxu0 0
        %3658 = vmatmul.mubr.bf16.gmra.mxu0 %v3449
        %v3659 = vpop.f32.mrf.mxu0
        %v3660 = vadd.f32 0.0, %v3659
        %v3661 = vpop.f32.mrf.mxu0
        %v3662 = vpop.f32.mrf.mxu0
        %v3663 = vadd.f32 0.0, %v3662
        %v3664 = vpop.f32.mrf.mxu0
        %3665 = vmatprep.mubr.bf16.mxu0 0
        %3666 = vmatmul.mubr.bf16.gmra.mxu0 %v3452
        %v3667 = vpop.f32.mrf.mxu0
        %v3668 = vadd.f32 0.0, %v3667
        %v3669 = vpop.f32.mrf.mxu0
        %v3670 = vpop.f32.mrf.mxu0
        %v3671 = vadd.f32 0.0, %v3670
        %v3672 = vpop.f32.mrf.mxu0
        %3673 = vmatprep.mubr.bf16.mxu0 0
        %3674 = vmatmul.mubr.bf16.gmra.mxu0 %v3455
        %v3675 = vpop.f32.mrf.mxu0
        %v3676 = vadd.f32 0.0, %v3675
        %v3677 = vpop.f32.mrf.mxu0
        %v3678 = vpop.f32.mrf.mxu0
        %v3679 = vadd.f32 0.0, %v3678
        %v3680 = vpop.f32.mrf.mxu0
        %3681 = vdwg.mxu0
        %v3682 = vadd.f32 %v2495, %v3492
        %v3683 = vadd.f32 %v2496, %v3495
        %v3684 = vadd.f32 %v2497, %v3500
        %v3685 = vadd.f32 %v2498, %v3503
        %v3686 = vadd.f32 %v2499, %v3508
        %v3687 = vadd.f32 %v2500, %v3511
        %v3688 = vadd.f32 %v2501, %v3516
        %v3689 = vadd.f32 %v2502, %v3519
        %v3690 = vadd.f32 %v2503, %v3524
        %v3691 = vadd.f32 %v2504, %v3527
        %v3692 = vadd.f32 %v2505, %v3532
        %v3693 = vadd.f32 %v2506, %v3535
        %v3694 = vadd.f32 %v2507, %v3540
        %v3695 = vadd.f32 %v2508, %v3543
        %v3696 = vadd.f32 %v2509, %v3548
        %v3697 = vadd.f32 %v2510, %v3551
        %v3698 = vadd.f32 %v2511, %v3556
        %v3699 = vadd.f32 %v2512, %v3559
        %v3700 = vadd.f32 %v2513, %v3564
        %v3701 = vadd.f32 %v2514, %v3567
        %v3702 = vadd.f32 %v2515, %v3572
        %v3703 = vadd.f32 %v2516, %v3575
        %v3704 = vadd.f32 %v2517, %v3580
        %v3705 = vadd.f32 %v2518, %v3583
        %v3706 = vadd.f32 %v2519, %v3588
        %v3707 = vadd.f32 %v2520, %v3591
        %v3708 = vadd.f32 %v2521, %v3596
        %v3709 = vadd.f32 %v2522, %v3599
        %v3710 = vadd.f32 %v2523, %v3604
        %v3711 = vadd.f32 %v2524, %v3607
        %v3712 = vadd.f32 %v2525, %v3612
        %v3713 = vadd.f32 %v2526, %v3615
        %v3714 = vadd.f32 %v2527, %v3620
        %v3715 = vadd.f32 %v2528, %v3623
        %v3716 = vadd.f32 %v2529, %v3628
        %v3717 = vadd.f32 %v2530, %v3631
        %v3718 = vadd.f32 %v2531, %v3636
        %v3719 = vadd.f32 %v2532, %v3639
        %v3720 = vadd.f32 %v2533, %v3644
        %v3721 = vadd.f32 %v2534, %v3647
        %v3722 = vadd.f32 %v2535, %v3652
        %v3723 = vadd.f32 %v2536, %v3655
        %v3724 = vadd.f32 %v2537, %v3660
        %v3725 = vadd.f32 %v2538, %v3663
        %v3726 = vadd.f32 %v2539, %v3668
        %v3727 = vadd.f32 %v2540, %v3671
        %v3728 = vadd.f32 %v2541, %v3676
        %v3729 = vadd.f32 %v2542, %v3679
        %v3730 = vld [vmem:[%s555] sm:$0xf]
        %v3731 = vld [vmem:[%s555 + $0x4] sm:$0xf]
        %v3732 = vld [vmem:[%s9] sm:$0xf]
        %v3733 = vld [vmem:[%s9 + $0x4] sm:$0xf]
        %v3734 = vld [vmem:[%s9 + $0x8] sm:$0xf]
        %v3735 = vld [vmem:[%s9 + $0xc] sm:$0xf]
        %v3736 = vld [vmem:[%s9 + $0x10] sm:$0xf]
        %v3737 = vld [vmem:[%s9 + $0x14] sm:$0xf]
        %v3738 = vld [vmem:[%s9 + $0x18] sm:$0xf]
        %v3739 = vld [vmem:[%s9 + $0x1c] sm:$0xf]
        %v3740 = vpack.c.bf16 %v3683, %v3682
        %v3741 = vpack.c.bf16 %v3684, %v3684
        %v3742 = vpack.c.bf16 %v3686, %v3685
        %v3743 = vpack.c.bf16 %v3687, %v3687
        %v3744 = vpack.c.bf16 %v3689, %v3688
        %v3745 = vpack.c.bf16 %v3690, %v3690
        %v3746 = vpack.c.bf16 %v3692, %v3691
        %v3747 = vpack.c.bf16 %v3693, %v3693
        %v3748 = vpack.c.bf16 %v3695, %v3694
        %v3749 = vpack.c.bf16 %v3696, %v3696
        %v3750 = vpack.c.bf16 %v3698, %v3697
        %v3751 = vpack.c.bf16 %v3699, %v3699
        %v3752 = vpack.c.bf16 %v3701, %v3700
        %v3753 = vpack.c.bf16 %v3702, %v3702
        %v3754 = vpack.c.bf16 %v3704, %v3703
        %v3755 = vpack.c.bf16 %v3705, %v3705
        %v3756 = vpack.c.bf16 %v3707, %v3706
        %v3757 = vpack.c.bf16 %v3708, %v3708
        %v3758 = vpack.c.bf16 %v3710, %v3709
        %v3759 = vpack.c.bf16 %v3711, %v3711
        %v3760 = vpack.c.bf16 %v3713, %v3712
        %v3761 = vpack.c.bf16 %v3714, %v3714
        %v3762 = vpack.c.bf16 %v3716, %v3715
        %v3763 = vpack.c.bf16 %v3717, %v3717
        %v3764 = vpack.c.bf16 %v3719, %v3718
        %v3765 = vpack.c.bf16 %v3720, %v3720
        %v3766 = vpack.c.bf16 %v3722, %v3721
        %v3767 = vpack.c.bf16 %v3723, %v3723
        %v3768 = vpack.c.bf16 %v3725, %v3724
        %v3769 = vpack.c.bf16 %v3726, %v3726
        %v3770 = vpack.c.bf16 %v3728, %v3727
        %v3771 = vpack.c.bf16 %v3729, %v3729
        %v3774 = vunpack.c.l.b16 %v3730
        %v3775 = vunpack.c.l.b16 %v3731
        %v3776 = vpack.c.b16 %v3775, %v3774
        %vm3777 = vcmask 195584
        %v3779 = vsel %vm3777, %v3776, 0
        %v3782 = vsel %vm1348, %v3741, 0
        %3784 = vmatprep.subr.bf16.mxu0 0
        %3785 = vmatpush1.bf16.msra.mxu0 0
        %3786 = vmatprep.subr.bf16.mxu0 0
        %3787 = vmatpush1.bf16.msra.mxu0 0
        %3788 = vmatprep.subr.bf16.mxu0 0
        %3789 = vmatpush1.bf16.msra.mxu0 0
        %3790 = vmatprep.subr.bf16.mxu0 0
        %3791 = vmatpush1.bf16.msra.mxu0 0
        %3792 = vmatprep.subr.bf16.mxu0 0
        %3793 = vmatpush1.bf16.msra.mxu0 0
        %3794 = vmatprep.subr.bf16.mxu0 0
        %3795 = vmatpush1.bf16.msra.mxu0 0
        %3796 = vmatprep.subr.bf16.mxu0 0
        %3797 = vmatpush1.bf16.msra.mxu0 %v3782
        %3798 = vmatprep.subr.bf16.mxu0 0
        %3799 = vmatpush1.bf16.msra.mxu0 %v3740
        %3800 = vmatprep.subr.bf16.mxu0 0
        %3801 = vmatpush2.bf16.msra.mxu0 0
        %3802 = vmatprep.subr.bf16.mxu0 0
        %3803 = vmatpush2.bf16.msra.mxu0 0
        %3804 = vmatprep.subr.bf16.mxu0 0
        %3805 = vmatpush2.bf16.msra.mxu0 0
        %3806 = vmatprep.subr.bf16.mxu0 0
        %3807 = vmatpush2.bf16.msra.mxu0 0
        %3808 = vmatprep.subr.bf16.mxu0 0
        %3809 = vmatpush2.bf16.msra.mxu0 0
        %3810 = vmatprep.subr.bf16.mxu0 0
        %3811 = vmatpush2.bf16.msra.mxu0 0
        %3812 = vmatprep.subr.bf16.mxu0 0
        %3813 = vmatpush2.bf16.msra.mxu0 0
        %3814 = vmatprep.subr.bf16.mxu0 0
        %3815 = vmatpush2.bf16.msra.mxu0 0
        %3816 = vmatprep.mubr.bf16.mxu0 0
        %3817 = vmatmul.mubr.bf16.gmra.mxu0 %v3779
        %v3818 = vpop.f32.mrf.mxu0
        %v3819 = vadd.f32 0.0, %v3818
        %v3820 = vpop.f32.mrf.mxu0
        %v3821 = vpop.f32.mrf.mxu0
        %v3822 = vadd.f32 0.0, %v3821
        %v3823 = vpop.f32.mrf.mxu0
        %3824 = vdwg.mxu0
        %v3826 = vsel %vm1348, %v3743, 0
        %3828 = vmatprep.subr.bf16.mxu0 0
        %3829 = vmatpush1.bf16.msra.mxu0 0
        %3830 = vmatprep.subr.bf16.mxu0 0
        %3831 = vmatpush1.bf16.msra.mxu0 0
        %3832 = vmatprep.subr.bf16.mxu0 0
        %3833 = vmatpush1.bf16.msra.mxu0 0
        %3834 = vmatprep.subr.bf16.mxu0 0
        %3835 = vmatpush1.bf16.msra.mxu0 0
        %3836 = vmatprep.subr.bf16.mxu0 0
        %3837 = vmatpush1.bf16.msra.mxu0 0
        %3838 = vmatprep.subr.bf16.mxu0 0
        %3839 = vmatpush1.bf16.msra.mxu0 0
        %3840 = vmatprep.subr.bf16.mxu0 0
        %3841 = vmatpush1.bf16.msra.mxu0 %v3826
        %3842 = vmatprep.subr.bf16.mxu0 0
        %3843 = vmatpush1.bf16.msra.mxu0 %v3742
        %3844 = vmatprep.subr.bf16.mxu0 0
        %3845 = vmatpush2.bf16.msra.mxu0 0
        %3846 = vmatprep.subr.bf16.mxu0 0
        %3847 = vmatpush2.bf16.msra.mxu0 0
        %3848 = vmatprep.subr.bf16.mxu0 0
        %3849 = vmatpush2.bf16.msra.mxu0 0
        %3850 = vmatprep.subr.bf16.mxu0 0
        %3851 = vmatpush2.bf16.msra.mxu0 0
        %3852 = vmatprep.subr.bf16.mxu0 0
        %3853 = vmatpush2.bf16.msra.mxu0 0
        %3854 = vmatprep.subr.bf16.mxu0 0
        %3855 = vmatpush2.bf16.msra.mxu0 0
        %3856 = vmatprep.subr.bf16.mxu0 0
        %3857 = vmatpush2.bf16.msra.mxu0 0
        %3858 = vmatprep.subr.bf16.mxu0 0
        %3859 = vmatpush2.bf16.msra.mxu0 0
        %3860 = vmatprep.mubr.bf16.mxu0 0
        %3861 = vmatmul.mubr.bf16.gmra.mxu0 %v3779
        %v3862 = vpop.f32.mrf.mxu0
        %v3863 = vadd.f32 0.0, %v3862
        %v3864 = vpop.f32.mrf.mxu0
        %v3865 = vpop.f32.mrf.mxu0
        %v3866 = vadd.f32 0.0, %v3865
        %v3867 = vpop.f32.mrf.mxu0
        %3868 = vdwg.mxu0
        %v3870 = vsel %vm1348, %v3745, 0
        %3872 = vmatprep.subr.bf16.mxu0 0
        %3873 = vmatpush1.bf16.msra.mxu0 0
        %3874 = vmatprep.subr.bf16.mxu0 0
        %3875 = vmatpush1.bf16.msra.mxu0 0
        %3876 = vmatprep.subr.bf16.mxu0 0
        %3877 = vmatpush1.bf16.msra.mxu0 0
        %3878 = vmatprep.subr.bf16.mxu0 0
        %3879 = vmatpush1.bf16.msra.mxu0 0
        %3880 = vmatprep.subr.bf16.mxu0 0
        %3881 = vmatpush1.bf16.msra.mxu0 0
        %3882 = vmatprep.subr.bf16.mxu0 0
        %3883 = vmatpush1.bf16.msra.mxu0 0
        %3884 = vmatprep.subr.bf16.mxu0 0
        %3885 = vmatpush1.bf16.msra.mxu0 %v3870
        %3886 = vmatprep.subr.bf16.mxu0 0
        %3887 = vmatpush1.bf16.msra.mxu0 %v3744
        %3888 = vmatprep.subr.bf16.mxu0 0
        %3889 = vmatpush2.bf16.msra.mxu0 0
        %3890 = vmatprep.subr.bf16.mxu0 0
        %3891 = vmatpush2.bf16.msra.mxu0 0
        %3892 = vmatprep.subr.bf16.mxu0 0
        %3893 = vmatpush2.bf16.msra.mxu0 0
        %3894 = vmatprep.subr.bf16.mxu0 0
        %3895 = vmatpush2.bf16.msra.mxu0 0
        %3896 = vmatprep.subr.bf16.mxu0 0
        %3897 = vmatpush2.bf16.msra.mxu0 0
        %3898 = vmatprep.subr.bf16.mxu0 0
        %3899 = vmatpush2.bf16.msra.mxu0 0
        %3900 = vmatprep.subr.bf16.mxu0 0
        %3901 = vmatpush2.bf16.msra.mxu0 0
        %3902 = vmatprep.subr.bf16.mxu0 0
        %3903 = vmatpush2.bf16.msra.mxu0 0
        %3904 = vmatprep.mubr.bf16.mxu0 0
        %3905 = vmatmul.mubr.bf16.gmra.mxu0 %v3779
        %v3906 = vpop.f32.mrf.mxu0
        %v3907 = vadd.f32 0.0, %v3906
        %v3908 = vpop.f32.mrf.mxu0
        %v3909 = vpop.f32.mrf.mxu0
        %v3910 = vadd.f32 0.0, %v3909
        %v3911 = vpop.f32.mrf.mxu0
        %3912 = vdwg.mxu0
        %v3914 = vsel %vm1348, %v3747, 0
        %3916 = vmatprep.subr.bf16.mxu0 0
        %3917 = vmatpush1.bf16.msra.mxu0 0
        %3918 = vmatprep.subr.bf16.mxu0 0
        %3919 = vmatpush1.bf16.msra.mxu0 0
        %3920 = vmatprep.subr.bf16.mxu0 0
        %3921 = vmatpush1.bf16.msra.mxu0 0
        %3922 = vmatprep.subr.bf16.mxu0 0
        %3923 = vmatpush1.bf16.msra.mxu0 0
        %3924 = vmatprep.subr.bf16.mxu0 0
        %3925 = vmatpush1.bf16.msra.mxu0 0
        %3926 = vmatprep.subr.bf16.mxu0 0
        %3927 = vmatpush1.bf16.msra.mxu0 0
        %3928 = vmatprep.subr.bf16.mxu0 0
        %3929 = vmatpush1.bf16.msra.mxu0 %v3914
        %3930 = vmatprep.subr.bf16.mxu0 0
        %3931 = vmatpush1.bf16.msra.mxu0 %v3746
        %3932 = vmatprep.subr.bf16.mxu0 0
        %3933 = vmatpush2.bf16.msra.mxu0 0
        %3934 = vmatprep.subr.bf16.mxu0 0
        %3935 = vmatpush2.bf16.msra.mxu0 0
        %3936 = vmatprep.subr.bf16.mxu0 0
        %3937 = vmatpush2.bf16.msra.mxu0 0
        %3938 = vmatprep.subr.bf16.mxu0 0
        %3939 = vmatpush2.bf16.msra.mxu0 0
        %3940 = vmatprep.subr.bf16.mxu0 0
        %3941 = vmatpush2.bf16.msra.mxu0 0
        %3942 = vmatprep.subr.bf16.mxu0 0
        %3943 = vmatpush2.bf16.msra.mxu0 0
        %3944 = vmatprep.subr.bf16.mxu0 0
        %3945 = vmatpush2.bf16.msra.mxu0 0
        %3946 = vmatprep.subr.bf16.mxu0 0
        %3947 = vmatpush2.bf16.msra.mxu0 0
        %3948 = vmatprep.mubr.bf16.mxu0 0
        %3949 = vmatmul.mubr.bf16.gmra.mxu0 %v3779
        %v3950 = vpop.f32.mrf.mxu0
        %v3951 = vadd.f32 0.0, %v3950
        %v3952 = vpop.f32.mrf.mxu0
        %v3953 = vpop.f32.mrf.mxu0
        %v3954 = vadd.f32 0.0, %v3953
        %v3955 = vpop.f32.mrf.mxu0
        %3956 = vdwg.mxu0
        %v3958 = vsel %vm1348, %v3749, 0
        %3960 = vmatprep.subr.bf16.mxu0 0
        %3961 = vmatpush1.bf16.msra.mxu0 0
        %3962 = vmatprep.subr.bf16.mxu0 0
        %3963 = vmatpush1.bf16.msra.mxu0 0
        %3964 = vmatprep.subr.bf16.mxu0 0
        %3965 = vmatpush1.bf16.msra.mxu0 0
        %3966 = vmatprep.subr.bf16.mxu0 0
        %3967 = vmatpush1.bf16.msra.mxu0 0
        %3968 = vmatprep.subr.bf16.mxu0 0
        %3969 = vmatpush1.bf16.msra.mxu0 0
        %3970 = vmatprep.subr.bf16.mxu0 0
        %3971 = vmatpush1.bf16.msra.mxu0 0
        %3972 = vmatprep.subr.bf16.mxu0 0
        %3973 = vmatpush1.bf16.msra.mxu0 %v3958
        %3974 = vmatprep.subr.bf16.mxu0 0
        %3975 = vmatpush1.bf16.msra.mxu0 %v3748
        %3976 = vmatprep.subr.bf16.mxu0 0
        %3977 = vmatpush2.bf16.msra.mxu0 0
        %3978 = vmatprep.subr.bf16.mxu0 0
        %3979 = vmatpush2.bf16.msra.mxu0 0
        %3980 = vmatprep.subr.bf16.mxu0 0
        %3981 = vmatpush2.bf16.msra.mxu0 0
        %3982 = vmatprep.subr.bf16.mxu0 0
        %3983 = vmatpush2.bf16.msra.mxu0 0
        %3984 = vmatprep.subr.bf16.mxu0 0
        %3985 = vmatpush2.bf16.msra.mxu0 0
        %3986 = vmatprep.subr.bf16.mxu0 0
        %3987 = vmatpush2.bf16.msra.mxu0 0
        %3988 = vmatprep.subr.bf16.mxu0 0
        %3989 = vmatpush2.bf16.msra.mxu0 0
        %3990 = vmatprep.subr.bf16.mxu0 0
        %3991 = vmatpush2.bf16.msra.mxu0 0
        %3992 = vmatprep.mubr.bf16.mxu0 0
        %3993 = vmatmul.mubr.bf16.gmra.mxu0 %v3779
        %v3994 = vpop.f32.mrf.mxu0
        %v3995 = vadd.f32 0.0, %v3994
        %v3996 = vpop.f32.mrf.mxu0
        %v3997 = vpop.f32.mrf.mxu0
        %v3998 = vadd.f32 0.0, %v3997
        %v3999 = vpop.f32.mrf.mxu0
        %4000 = vdwg.mxu0
        %v4002 = vsel %vm1348, %v3751, 0
        %4004 = vmatprep.subr.bf16.mxu0 0
        %4005 = vmatpush1.bf16.msra.mxu0 0
        %4006 = vmatprep.subr.bf16.mxu0 0
        %4007 = vmatpush1.bf16.msra.mxu0 0
        %4008 = vmatprep.subr.bf16.mxu0 0
        %4009 = vmatpush1.bf16.msra.mxu0 0
        %4010 = vmatprep.subr.bf16.mxu0 0
        %4011 = vmatpush1.bf16.msra.mxu0 0
        %4012 = vmatprep.subr.bf16.mxu0 0
        %4013 = vmatpush1.bf16.msra.mxu0 0
        %4014 = vmatprep.subr.bf16.mxu0 0
        %4015 = vmatpush1.bf16.msra.mxu0 0
        %4016 = vmatprep.subr.bf16.mxu0 0
        %4017 = vmatpush1.bf16.msra.mxu0 %v4002
        %4018 = vmatprep.subr.bf16.mxu0 0
        %4019 = vmatpush1.bf16.msra.mxu0 %v3750
        %4020 = vmatprep.subr.bf16.mxu0 0
        %4021 = vmatpush2.bf16.msra.mxu0 0
        %4022 = vmatprep.subr.bf16.mxu0 0
        %4023 = vmatpush2.bf16.msra.mxu0 0
        %4024 = vmatprep.subr.bf16.mxu0 0
        %4025 = vmatpush2.bf16.msra.mxu0 0
        %4026 = vmatprep.subr.bf16.mxu0 0
        %4027 = vmatpush2.bf16.msra.mxu0 0
        %4028 = vmatprep.subr.bf16.mxu0 0
        %4029 = vmatpush2.bf16.msra.mxu0 0
        %4030 = vmatprep.subr.bf16.mxu0 0
        %4031 = vmatpush2.bf16.msra.mxu0 0
        %4032 = vmatprep.subr.bf16.mxu0 0
        %4033 = vmatpush2.bf16.msra.mxu0 0
        %4034 = vmatprep.subr.bf16.mxu0 0
        %4035 = vmatpush2.bf16.msra.mxu0 0
        %4036 = vmatprep.mubr.bf16.mxu0 0
        %4037 = vmatmul.mubr.bf16.gmra.mxu0 %v3779
        %v4038 = vpop.f32.mrf.mxu0
        %v4039 = vadd.f32 0.0, %v4038
        %v4040 = vpop.f32.mrf.mxu0
        %v4041 = vpop.f32.mrf.mxu0
        %v4042 = vadd.f32 0.0, %v4041
        %v4043 = vpop.f32.mrf.mxu0
        %4044 = vdwg.mxu0
        %v4046 = vsel %vm1348, %v3753, 0
        %4048 = vmatprep.subr.bf16.mxu0 0
        %4049 = vmatpush1.bf16.msra.mxu0 0
        %4050 = vmatprep.subr.bf16.mxu0 0
        %4051 = vmatpush1.bf16.msra.mxu0 0
        %4052 = vmatprep.subr.bf16.mxu0 0
        %4053 = vmatpush1.bf16.msra.mxu0 0
        %4054 = vmatprep.subr.bf16.mxu0 0
        %4055 = vmatpush1.bf16.msra.mxu0 0
        %4056 = vmatprep.subr.bf16.mxu0 0
        %4057 = vmatpush1.bf16.msra.mxu0 0
        %4058 = vmatprep.subr.bf16.mxu0 0
        %4059 = vmatpush1.bf16.msra.mxu0 0
        %4060 = vmatprep.subr.bf16.mxu0 0
        %4061 = vmatpush1.bf16.msra.mxu0 %v4046
        %4062 = vmatprep.subr.bf16.mxu0 0
        %4063 = vmatpush1.bf16.msra.mxu0 %v3752
        %4064 = vmatprep.subr.bf16.mxu0 0
        %4065 = vmatpush2.bf16.msra.mxu0 0
        %4066 = vmatprep.subr.bf16.mxu0 0
        %4067 = vmatpush2.bf16.msra.mxu0 0
        %4068 = vmatprep.subr.bf16.mxu0 0
        %4069 = vmatpush2.bf16.msra.mxu0 0
        %4070 = vmatprep.subr.bf16.mxu0 0
        %4071 = vmatpush2.bf16.msra.mxu0 0
        %4072 = vmatprep.subr.bf16.mxu0 0
        %4073 = vmatpush2.bf16.msra.mxu0 0
        %4074 = vmatprep.subr.bf16.mxu0 0
        %4075 = vmatpush2.bf16.msra.mxu0 0
        %4076 = vmatprep.subr.bf16.mxu0 0
        %4077 = vmatpush2.bf16.msra.mxu0 0
        %4078 = vmatprep.subr.bf16.mxu0 0
        %4079 = vmatpush2.bf16.msra.mxu0 0
        %4080 = vmatprep.mubr.bf16.mxu0 0
        %4081 = vmatmul.mubr.bf16.gmra.mxu0 %v3779
        %v4082 = vpop.f32.mrf.mxu0
        %v4083 = vadd.f32 0.0, %v4082
        %v4084 = vpop.f32.mrf.mxu0
        %v4085 = vpop.f32.mrf.mxu0
        %v4086 = vadd.f32 0.0, %v4085
        %v4087 = vpop.f32.mrf.mxu0
        %4088 = vdwg.mxu0
        %v4090 = vsel %vm1348, %v3755, 0
        %4092 = vmatprep.subr.bf16.mxu0 0
        %4093 = vmatpush1.bf16.msra.mxu0 0
        %4094 = vmatprep.subr.bf16.mxu0 0
        %4095 = vmatpush1.bf16.msra.mxu0 0
        %4096 = vmatprep.subr.bf16.mxu0 0
        %4097 = vmatpush1.bf16.msra.mxu0 0
        %4098 = vmatprep.subr.bf16.mxu0 0
        %4099 = vmatpush1.bf16.msra.mxu0 0
        %4100 = vmatprep.subr.bf16.mxu0 0
        %4101 = vmatpush1.bf16.msra.mxu0 0
        %4102 = vmatprep.subr.bf16.mxu0 0
        %4103 = vmatpush1.bf16.msra.mxu0 0
        %4104 = vmatprep.subr.bf16.mxu0 0
        %4105 = vmatpush1.bf16.msra.mxu0 %v4090
        %4106 = vmatprep.subr.bf16.mxu0 0
        %4107 = vmatpush1.bf16.msra.mxu0 %v3754
        %4108 = vmatprep.subr.bf16.mxu0 0
        %4109 = vmatpush2.bf16.msra.mxu0 0
        %4110 = vmatprep.subr.bf16.mxu0 0
        %4111 = vmatpush2.bf16.msra.mxu0 0
        %4112 = vmatprep.subr.bf16.mxu0 0
        %4113 = vmatpush2.bf16.msra.mxu0 0
        %4114 = vmatprep.subr.bf16.mxu0 0
        %4115 = vmatpush2.bf16.msra.mxu0 0
        %4116 = vmatprep.subr.bf16.mxu0 0
        %4117 = vmatpush2.bf16.msra.mxu0 0
        %4118 = vmatprep.subr.bf16.mxu0 0
        %4119 = vmatpush2.bf16.msra.mxu0 0
        %4120 = vmatprep.subr.bf16.mxu0 0
        %4121 = vmatpush2.bf16.msra.mxu0 0
        %4122 = vmatprep.subr.bf16.mxu0 0
        %4123 = vmatpush2.bf16.msra.mxu0 0
        %4124 = vmatprep.mubr.bf16.mxu0 0
        %4125 = vmatmul.mubr.bf16.gmra.mxu0 %v3779
        %v4126 = vpop.f32.mrf.mxu0
        %v4127 = vadd.f32 0.0, %v4126
        %v4128 = vpop.f32.mrf.mxu0
        %v4129 = vpop.f32.mrf.mxu0
        %v4130 = vadd.f32 0.0, %v4129
        %v4131 = vpop.f32.mrf.mxu0
        %4132 = vdwg.mxu0
        %v4134 = vsel %vm1348, %v3757, 0
        %4136 = vmatprep.subr.bf16.mxu0 0
        %4137 = vmatpush1.bf16.msra.mxu0 0
        %4138 = vmatprep.subr.bf16.mxu0 0
        %4139 = vmatpush1.bf16.msra.mxu0 0
        %4140 = vmatprep.subr.bf16.mxu0 0
        %4141 = vmatpush1.bf16.msra.mxu0 0
        %4142 = vmatprep.subr.bf16.mxu0 0
        %4143 = vmatpush1.bf16.msra.mxu0 0
        %4144 = vmatprep.subr.bf16.mxu0 0
        %4145 = vmatpush1.bf16.msra.mxu0 0
        %4146 = vmatprep.subr.bf16.mxu0 0
        %4147 = vmatpush1.bf16.msra.mxu0 0
        %4148 = vmatprep.subr.bf16.mxu0 0
        %4149 = vmatpush1.bf16.msra.mxu0 %v4134
        %4150 = vmatprep.subr.bf16.mxu0 0
        %4151 = vmatpush1.bf16.msra.mxu0 %v3756
        %4152 = vmatprep.subr.bf16.mxu0 0
        %4153 = vmatpush2.bf16.msra.mxu0 0
        %4154 = vmatprep.subr.bf16.mxu0 0
        %4155 = vmatpush2.bf16.msra.mxu0 0
        %4156 = vmatprep.subr.bf16.mxu0 0
        %4157 = vmatpush2.bf16.msra.mxu0 0
        %4158 = vmatprep.subr.bf16.mxu0 0
        %4159 = vmatpush2.bf16.msra.mxu0 0
        %4160 = vmatprep.subr.bf16.mxu0 0
        %4161 = vmatpush2.bf16.msra.mxu0 0
        %4162 = vmatprep.subr.bf16.mxu0 0
        %4163 = vmatpush2.bf16.msra.mxu0 0
        %4164 = vmatprep.subr.bf16.mxu0 0
        %4165 = vmatpush2.bf16.msra.mxu0 0
        %4166 = vmatprep.subr.bf16.mxu0 0
        %4167 = vmatpush2.bf16.msra.mxu0 0
        %4168 = vmatprep.mubr.bf16.mxu0 0
        %4169 = vmatmul.mubr.bf16.gmra.mxu0 %v3779
        %v4170 = vpop.f32.mrf.mxu0
        %v4171 = vadd.f32 0.0, %v4170
        %v4172 = vpop.f32.mrf.mxu0
        %v4173 = vpop.f32.mrf.mxu0
        %v4174 = vadd.f32 0.0, %v4173
        %v4175 = vpop.f32.mrf.mxu0
        %4176 = vdwg.mxu0
        %v4178 = vsel %vm1348, %v3759, 0
        %4180 = vmatprep.subr.bf16.mxu0 0
        %4181 = vmatpush1.bf16.msra.mxu0 0
        %4182 = vmatprep.subr.bf16.mxu0 0
        %4183 = vmatpush1.bf16.msra.mxu0 0
        %4184 = vmatprep.subr.bf16.mxu0 0
        %4185 = vmatpush1.bf16.msra.mxu0 0
        %4186 = vmatprep.subr.bf16.mxu0 0
        %4187 = vmatpush1.bf16.msra.mxu0 0
        %4188 = vmatprep.subr.bf16.mxu0 0
        %4189 = vmatpush1.bf16.msra.mxu0 0
        %4190 = vmatprep.subr.bf16.mxu0 0
        %4191 = vmatpush1.bf16.msra.mxu0 0
        %4192 = vmatprep.subr.bf16.mxu0 0
        %4193 = vmatpush1.bf16.msra.mxu0 %v4178
        %4194 = vmatprep.subr.bf16.mxu0 0
        %4195 = vmatpush1.bf16.msra.mxu0 %v3758
        %4196 = vmatprep.subr.bf16.mxu0 0
        %4197 = vmatpush2.bf16.msra.mxu0 0
        %4198 = vmatprep.subr.bf16.mxu0 0
        %4199 = vmatpush2.bf16.msra.mxu0 0
        %4200 = vmatprep.subr.bf16.mxu0 0
        %4201 = vmatpush2.bf16.msra.mxu0 0
        %4202 = vmatprep.subr.bf16.mxu0 0
        %4203 = vmatpush2.bf16.msra.mxu0 0
        %4204 = vmatprep.subr.bf16.mxu0 0
        %4205 = vmatpush2.bf16.msra.mxu0 0
        %4206 = vmatprep.subr.bf16.mxu0 0
        %4207 = vmatpush2.bf16.msra.mxu0 0
        %4208 = vmatprep.subr.bf16.mxu0 0
        %4209 = vmatpush2.bf16.msra.mxu0 0
        %4210 = vmatprep.subr.bf16.mxu0 0
        %4211 = vmatpush2.bf16.msra.mxu0 0
        %4212 = vmatprep.mubr.bf16.mxu0 0
        %4213 = vmatmul.mubr.bf16.gmra.mxu0 %v3779
        %v4214 = vpop.f32.mrf.mxu0
        %v4215 = vadd.f32 0.0, %v4214
        %v4216 = vpop.f32.mrf.mxu0
        %v4217 = vpop.f32.mrf.mxu0
        %v4218 = vadd.f32 0.0, %v4217
        %v4219 = vpop.f32.mrf.mxu0
        %4220 = vdwg.mxu0
        %v4222 = vsel %vm1348, %v3761, 0
        %4224 = vmatprep.subr.bf16.mxu0 0
        %4225 = vmatpush1.bf16.msra.mxu0 0
        %4226 = vmatprep.subr.bf16.mxu0 0
        %4227 = vmatpush1.bf16.msra.mxu0 0
        %4228 = vmatprep.subr.bf16.mxu0 0
        %4229 = vmatpush1.bf16.msra.mxu0 0
        %4230 = vmatprep.subr.bf16.mxu0 0
        %4231 = vmatpush1.bf16.msra.mxu0 0
        %4232 = vmatprep.subr.bf16.mxu0 0
        %4233 = vmatpush1.bf16.msra.mxu0 0
        %4234 = vmatprep.subr.bf16.mxu0 0
        %4235 = vmatpush1.bf16.msra.mxu0 0
        %4236 = vmatprep.subr.bf16.mxu0 0
        %4237 = vmatpush1.bf16.msra.mxu0 %v4222
        %4238 = vmatprep.subr.bf16.mxu0 0
        %4239 = vmatpush1.bf16.msra.mxu0 %v3760
        %4240 = vmatprep.subr.bf16.mxu0 0
        %4241 = vmatpush2.bf16.msra.mxu0 0
        %4242 = vmatprep.subr.bf16.mxu0 0
        %4243 = vmatpush2.bf16.msra.mxu0 0
        %4244 = vmatprep.subr.bf16.mxu0 0
        %4245 = vmatpush2.bf16.msra.mxu0 0
        %4246 = vmatprep.subr.bf16.mxu0 0
        %4247 = vmatpush2.bf16.msra.mxu0 0
        %4248 = vmatprep.subr.bf16.mxu0 0
        %4249 = vmatpush2.bf16.msra.mxu0 0
        %4250 = vmatprep.subr.bf16.mxu0 0
        %4251 = vmatpush2.bf16.msra.mxu0 0
        %4252 = vmatprep.subr.bf16.mxu0 0
        %4253 = vmatpush2.bf16.msra.mxu0 0
        %4254 = vmatprep.subr.bf16.mxu0 0
        %4255 = vmatpush2.bf16.msra.mxu0 0
        %4256 = vmatprep.mubr.bf16.mxu0 0
        %4257 = vmatmul.mubr.bf16.gmra.mxu0 %v3779
        %v4258 = vpop.f32.mrf.mxu0
        %v4259 = vadd.f32 0.0, %v4258
        %v4260 = vpop.f32.mrf.mxu0
        %v4261 = vpop.f32.mrf.mxu0
        %v4262 = vadd.f32 0.0, %v4261
        %v4263 = vpop.f32.mrf.mxu0
        %4264 = vdwg.mxu0
        %v4266 = vsel %vm1348, %v3763, 0
        %4268 = vmatprep.subr.bf16.mxu0 0
        %4269 = vmatpush1.bf16.msra.mxu0 0
        %4270 = vmatprep.subr.bf16.mxu0 0
        %4271 = vmatpush1.bf16.msra.mxu0 0
        %4272 = vmatprep.subr.bf16.mxu0 0
        %4273 = vmatpush1.bf16.msra.mxu0 0
        %4274 = vmatprep.subr.bf16.mxu0 0
        %4275 = vmatpush1.bf16.msra.mxu0 0
        %4276 = vmatprep.subr.bf16.mxu0 0
        %4277 = vmatpush1.bf16.msra.mxu0 0
        %4278 = vmatprep.subr.bf16.mxu0 0
        %4279 = vmatpush1.bf16.msra.mxu0 0
        %4280 = vmatprep.subr.bf16.mxu0 0
        %4281 = vmatpush1.bf16.msra.mxu0 %v4266
        %4282 = vmatprep.subr.bf16.mxu0 0
        %4283 = vmatpush1.bf16.msra.mxu0 %v3762
        %4284 = vmatprep.subr.bf16.mxu0 0
        %4285 = vmatpush2.bf16.msra.mxu0 0
        %4286 = vmatprep.subr.bf16.mxu0 0
        %4287 = vmatpush2.bf16.msra.mxu0 0
        %4288 = vmatprep.subr.bf16.mxu0 0
        %4289 = vmatpush2.bf16.msra.mxu0 0
        %4290 = vmatprep.subr.bf16.mxu0 0
        %4291 = vmatpush2.bf16.msra.mxu0 0
        %4292 = vmatprep.subr.bf16.mxu0 0
        %4293 = vmatpush2.bf16.msra.mxu0 0
        %4294 = vmatprep.subr.bf16.mxu0 0
        %4295 = vmatpush2.bf16.msra.mxu0 0
        %4296 = vmatprep.subr.bf16.mxu0 0
        %4297 = vmatpush2.bf16.msra.mxu0 0
        %4298 = vmatprep.subr.bf16.mxu0 0
        %4299 = vmatpush2.bf16.msra.mxu0 0
        %4300 = vmatprep.mubr.bf16.mxu0 0
        %4301 = vmatmul.mubr.bf16.gmra.mxu0 %v3779
        %v4302 = vpop.f32.mrf.mxu0
        %v4303 = vadd.f32 0.0, %v4302
        %v4304 = vpop.f32.mrf.mxu0
        %v4305 = vpop.f32.mrf.mxu0
        %v4306 = vadd.f32 0.0, %v4305
        %v4307 = vpop.f32.mrf.mxu0
        %4308 = vdwg.mxu0
        %v4310 = vsel %vm1348, %v3765, 0
        %4312 = vmatprep.subr.bf16.mxu0 0
        %4313 = vmatpush1.bf16.msra.mxu0 0
        %4314 = vmatprep.subr.bf16.mxu0 0
        %4315 = vmatpush1.bf16.msra.mxu0 0
        %4316 = vmatprep.subr.bf16.mxu0 0
        %4317 = vmatpush1.bf16.msra.mxu0 0
        %4318 = vmatprep.subr.bf16.mxu0 0
        %4319 = vmatpush1.bf16.msra.mxu0 0
        %4320 = vmatprep.subr.bf16.mxu0 0
        %4321 = vmatpush1.bf16.msra.mxu0 0
        %4322 = vmatprep.subr.bf16.mxu0 0
        %4323 = vmatpush1.bf16.msra.mxu0 0
        %4324 = vmatprep.subr.bf16.mxu0 0
        %4325 = vmatpush1.bf16.msra.mxu0 %v4310
        %4326 = vmatprep.subr.bf16.mxu0 0
        %4327 = vmatpush1.bf16.msra.mxu0 %v3764
        %4328 = vmatprep.subr.bf16.mxu0 0
        %4329 = vmatpush2.bf16.msra.mxu0 0
        %4330 = vmatprep.subr.bf16.mxu0 0
        %4331 = vmatpush2.bf16.msra.mxu0 0
        %4332 = vmatprep.subr.bf16.mxu0 0
        %4333 = vmatpush2.bf16.msra.mxu0 0
        %4334 = vmatprep.subr.bf16.mxu0 0
        %4335 = vmatpush2.bf16.msra.mxu0 0
        %4336 = vmatprep.subr.bf16.mxu0 0
        %4337 = vmatpush2.bf16.msra.mxu0 0
        %4338 = vmatprep.subr.bf16.mxu0 0
        %4339 = vmatpush2.bf16.msra.mxu0 0
        %4340 = vmatprep.subr.bf16.mxu0 0
        %4341 = vmatpush2.bf16.msra.mxu0 0
        %4342 = vmatprep.subr.bf16.mxu0 0
        %4343 = vmatpush2.bf16.msra.mxu0 0
        %4344 = vmatprep.mubr.bf16.mxu0 0
        %4345 = vmatmul.mubr.bf16.gmra.mxu0 %v3779
        %v4346 = vpop.f32.mrf.mxu0
        %v4347 = vadd.f32 0.0, %v4346
        %v4348 = vpop.f32.mrf.mxu0
        %v4349 = vpop.f32.mrf.mxu0
        %v4350 = vadd.f32 0.0, %v4349
        %v4351 = vpop.f32.mrf.mxu0
        %4352 = vdwg.mxu0
        %v4354 = vsel %vm1348, %v3767, 0
        %4356 = vmatprep.subr.bf16.mxu0 0
        %4357 = vmatpush1.bf16.msra.mxu0 0
        %4358 = vmatprep.subr.bf16.mxu0 0
        %4359 = vmatpush1.bf16.msra.mxu0 0
        %4360 = vmatprep.subr.bf16.mxu0 0
        %4361 = vmatpush1.bf16.msra.mxu0 0
        %4362 = vmatprep.subr.bf16.mxu0 0
        %4363 = vmatpush1.bf16.msra.mxu0 0
        %4364 = vmatprep.subr.bf16.mxu0 0
        %4365 = vmatpush1.bf16.msra.mxu0 0
        %4366 = vmatprep.subr.bf16.mxu0 0
        %4367 = vmatpush1.bf16.msra.mxu0 0
        %4368 = vmatprep.subr.bf16.mxu0 0
        %4369 = vmatpush1.bf16.msra.mxu0 %v4354
        %4370 = vmatprep.subr.bf16.mxu0 0
        %4371 = vmatpush1.bf16.msra.mxu0 %v3766
        %4372 = vmatprep.subr.bf16.mxu0 0
        %4373 = vmatpush2.bf16.msra.mxu0 0
        %4374 = vmatprep.subr.bf16.mxu0 0
        %4375 = vmatpush2.bf16.msra.mxu0 0
        %4376 = vmatprep.subr.bf16.mxu0 0
        %4377 = vmatpush2.bf16.msra.mxu0 0
        %4378 = vmatprep.subr.bf16.mxu0 0
        %4379 = vmatpush2.bf16.msra.mxu0 0
        %4380 = vmatprep.subr.bf16.mxu0 0
        %4381 = vmatpush2.bf16.msra.mxu0 0
        %4382 = vmatprep.subr.bf16.mxu0 0
        %4383 = vmatpush2.bf16.msra.mxu0 0
        %4384 = vmatprep.subr.bf16.mxu0 0
        %4385 = vmatpush2.bf16.msra.mxu0 0
        %4386 = vmatprep.subr.bf16.mxu0 0
        %4387 = vmatpush2.bf16.msra.mxu0 0
        %4388 = vmatprep.mubr.bf16.mxu0 0
        %4389 = vmatmul.mubr.bf16.gmra.mxu0 %v3779
        %v4390 = vpop.f32.mrf.mxu0
        %v4391 = vadd.f32 0.0, %v4390
        %v4392 = vpop.f32.mrf.mxu0
        %v4393 = vpop.f32.mrf.mxu0
        %v4394 = vadd.f32 0.0, %v4393
        %v4395 = vpop.f32.mrf.mxu0
        %4396 = vdwg.mxu0
        %v4398 = vsel %vm1348, %v3769, 0
        %4400 = vmatprep.subr.bf16.mxu0 0
        %4401 = vmatpush1.bf16.msra.mxu0 0
        %4402 = vmatprep.subr.bf16.mxu0 0
        %4403 = vmatpush1.bf16.msra.mxu0 0
        %4404 = vmatprep.subr.bf16.mxu0 0
        %4405 = vmatpush1.bf16.msra.mxu0 0
        %4406 = vmatprep.subr.bf16.mxu0 0
        %4407 = vmatpush1.bf16.msra.mxu0 0
        %4408 = vmatprep.subr.bf16.mxu0 0
        %4409 = vmatpush1.bf16.msra.mxu0 0
        %4410 = vmatprep.subr.bf16.mxu0 0
        %4411 = vmatpush1.bf16.msra.mxu0 0
        %4412 = vmatprep.subr.bf16.mxu0 0
        %4413 = vmatpush1.bf16.msra.mxu0 %v4398
        %4414 = vmatprep.subr.bf16.mxu0 0
        %4415 = vmatpush1.bf16.msra.mxu0 %v3768
        %4416 = vmatprep.subr.bf16.mxu0 0
        %4417 = vmatpush2.bf16.msra.mxu0 0
        %4418 = vmatprep.subr.bf16.mxu0 0
        %4419 = vmatpush2.bf16.msra.mxu0 0
        %4420 = vmatprep.subr.bf16.mxu0 0
        %4421 = vmatpush2.bf16.msra.mxu0 0
        %4422 = vmatprep.subr.bf16.mxu0 0
        %4423 = vmatpush2.bf16.msra.mxu0 0
        %4424 = vmatprep.subr.bf16.mxu0 0
        %4425 = vmatpush2.bf16.msra.mxu0 0
        %4426 = vmatprep.subr.bf16.mxu0 0
        %4427 = vmatpush2.bf16.msra.mxu0 0
        %4428 = vmatprep.subr.bf16.mxu0 0
        %4429 = vmatpush2.bf16.msra.mxu0 0
        %4430 = vmatprep.subr.bf16.mxu0 0
        %4431 = vmatpush2.bf16.msra.mxu0 0
        %4432 = vmatprep.mubr.bf16.mxu0 0
        %4433 = vmatmul.mubr.bf16.gmra.mxu0 %v3779
        %v4434 = vpop.f32.mrf.mxu0
        %v4435 = vadd.f32 0.0, %v4434
        %v4436 = vpop.f32.mrf.mxu0
        %v4437 = vpop.f32.mrf.mxu0
        %v4438 = vadd.f32 0.0, %v4437
        %v4439 = vpop.f32.mrf.mxu0
        %4440 = vdwg.mxu0
        %v4442 = vsel %vm1348, %v3771, 0
        %4444 = vmatprep.subr.bf16.mxu0 0
        %4445 = vmatpush1.bf16.msra.mxu0 0
        %4446 = vmatprep.subr.bf16.mxu0 0
        %4447 = vmatpush1.bf16.msra.mxu0 0
        %4448 = vmatprep.subr.bf16.mxu0 0
        %4449 = vmatpush1.bf16.msra.mxu0 0
        %4450 = vmatprep.subr.bf16.mxu0 0
        %4451 = vmatpush1.bf16.msra.mxu0 0
        %4452 = vmatprep.subr.bf16.mxu0 0
        %4453 = vmatpush1.bf16.msra.mxu0 0
        %4454 = vmatprep.subr.bf16.mxu0 0
        %4455 = vmatpush1.bf16.msra.mxu0 0
        %4456 = vmatprep.subr.bf16.mxu0 0
        %4457 = vmatpush1.bf16.msra.mxu0 %v4442
        %4458 = vmatprep.subr.bf16.mxu0 0
        %4459 = vmatpush1.bf16.msra.mxu0 %v3770
        %4460 = vmatprep.subr.bf16.mxu0 0
        %4461 = vmatpush2.bf16.msra.mxu0 0
        %4462 = vmatprep.subr.bf16.mxu0 0
        %4463 = vmatpush2.bf16.msra.mxu0 0
        %4464 = vmatprep.subr.bf16.mxu0 0
        %4465 = vmatpush2.bf16.msra.mxu0 0
        %4466 = vmatprep.subr.bf16.mxu0 0
        %4467 = vmatpush2.bf16.msra.mxu0 0
        %4468 = vmatprep.subr.bf16.mxu0 0
        %4469 = vmatpush2.bf16.msra.mxu0 0
        %4470 = vmatprep.subr.bf16.mxu0 0
        %4471 = vmatpush2.bf16.msra.mxu0 0
        %4472 = vmatprep.subr.bf16.mxu0 0
        %4473 = vmatpush2.bf16.msra.mxu0 0
        %4474 = vmatprep.subr.bf16.mxu0 0
        %4475 = vmatpush2.bf16.msra.mxu0 0
        %4476 = vmatprep.mubr.bf16.mxu0 0
        %4477 = vmatmul.mubr.bf16.gmra.mxu0 %v3779
        %v4478 = vpop.f32.mrf.mxu0
        %v4479 = vadd.f32 0.0, %v4478
        %v4480 = vpop.f32.mrf.mxu0
        %v4481 = vpop.f32.mrf.mxu0
        %v4482 = vadd.f32 0.0, %v4481
        %v4483 = vpop.f32.mrf.mxu0
        %4484 = vdwg.mxu0
        %v4485 = vpack.c.bf16 %v3822, %v3819
        %v4486 = vpack.c.bf16 %v3866, %v3863
        %v4487 = vpack.c.bf16 %v3910, %v3907
        %v4488 = vpack.c.bf16 %v3954, %v3951
        %v4489 = vpack.c.bf16 %v3998, %v3995
        %v4490 = vpack.c.bf16 %v4042, %v4039
        %v4491 = vpack.c.bf16 %v4086, %v4083
        %v4492 = vpack.c.bf16 %v4130, %v4127
        %v4493 = vpack.c.bf16 %v4174, %v4171
        %v4494 = vpack.c.bf16 %v4218, %v4215
        %v4495 = vpack.c.bf16 %v4262, %v4259
        %v4496 = vpack.c.bf16 %v4306, %v4303
        %v4497 = vpack.c.bf16 %v4350, %v4347
        %v4498 = vpack.c.bf16 %v4394, %v4391
        %v4499 = vpack.c.bf16 %v4438, %v4435
        %v4500 = vpack.c.bf16 %v4482, %v4479
        %v4509 = vunpack.c.l.b16 %v3732
        %v4510 = vunpack.c.l.b16 %v3733
        %v4511 = vunpack.c.l.b16 %v3734
        %v4512 = vunpack.c.l.b16 %v3735
        %v4513 = vunpack.c.l.b16 %v3736
        %v4514 = vunpack.c.l.b16 %v3737
        %v4515 = vunpack.c.l.b16 %v3738
        %v4516 = vunpack.c.l.b16 %v3739
        %v4517 = vpack.c.b16 %v4510, %v4509
        %v4518 = vpack.c.b16 %v4512, %v4511
        %v4519 = vpack.c.b16 %v4514, %v4513
        %v4520 = vpack.c.b16 %v4516, %v4515
        %vm4525 = vcmask 523264
        %v4527 = vsel %vm4525, %v4485, 0
        %v4530 = vsel %vm4525, %v4486, 0
        %v4533 = vsel %vm4525, %v4487, 0
        %v4536 = vsel %vm4525, %v4488, 0
        %v4539 = vsel %vm4525, %v4489, 0
        %v4542 = vsel %vm4525, %v4490, 0
        %v4545 = vsel %vm4525, %v4491, 0
        %v4548 = vsel %vm4525, %v4492, 0
        %v4551 = vsel %vm4525, %v4493, 0
        %v4554 = vsel %vm4525, %v4494, 0
        %v4557 = vsel %vm4525, %v4495, 0
        %v4560 = vsel %vm4525, %v4496, 0
        %v4563 = vsel %vm4525, %v4497, 0
        %v4566 = vsel %vm4525, %v4498, 0
        %v4569 = vsel %vm4525, %v4499, 0
        %v4572 = vsel %vm4525, %v4500, 0
        %4574 = vmatprep.subr.bf16.mxu0 0
        %4575 = vmatpush1.bf16.msra.mxu0 0
        %4576 = vmatprep.subr.bf16.mxu0 0
        %4577 = vmatpush1.bf16.msra.mxu0 0
        %4578 = vmatprep.subr.bf16.mxu0 0
        %4579 = vmatpush1.bf16.msra.mxu0 0
        %4580 = vmatprep.subr.bf16.mxu0 0
        %4581 = vmatpush1.bf16.msra.mxu0 0
        %4582 = vmatprep.subr.bf16.mxu0 0
        %4583 = vmatpush1.bf16.msra.mxu0 %v4520
        %4584 = vmatprep.subr.bf16.mxu0 0
        %4585 = vmatpush1.bf16.msra.mxu0 %v4519
        %4586 = vmatprep.subr.bf16.mxu0 0
        %4587 = vmatpush1.bf16.msra.mxu0 %v4518
        %4588 = vmatprep.subr.bf16.mxu0 0
        %4589 = vmatpush1.bf16.msra.mxu0 %v4517
        %4590 = vmatprep.subr.bf16.mxu0 0
        %4591 = vmatpush2.bf16.msra.mxu0 0
        %4592 = vmatprep.subr.bf16.mxu0 0
        %4593 = vmatpush2.bf16.msra.mxu0 0
        %4594 = vmatprep.subr.bf16.mxu0 0
        %4595 = vmatpush2.bf16.msra.mxu0 0
        %4596 = vmatprep.subr.bf16.mxu0 0
        %4597 = vmatpush2.bf16.msra.mxu0 0
        %4598 = vmatprep.subr.bf16.mxu0 0
        %4599 = vmatpush2.bf16.msra.mxu0 0
        %4600 = vmatprep.subr.bf16.mxu0 0
        %4601 = vmatpush2.bf16.msra.mxu0 0
        %4602 = vmatprep.subr.bf16.mxu0 0
        %4603 = vmatpush2.bf16.msra.mxu0 0
        %4604 = vmatprep.subr.bf16.mxu0 0
        %4605 = vmatpush2.bf16.msra.mxu0 0
        %4606 = vmatprep.mubr.bf16.mxu0 0
        %4607 = vmatmul.mubr.bf16.gmra.mxu0 %v4527
        %v4608 = vpop.f32.mrf.mxu0
        %v4609 = vadd.f32 0.0, %v4608
        %v4610 = vpop.f32.mrf.mxu0
        %v4611 = vpop.f32.mrf.mxu0
        %v4612 = vadd.f32 0.0, %v4611
        %v4613 = vpop.f32.mrf.mxu0
        %4614 = vmatprep.mubr.bf16.mxu0 0
        %4615 = vmatmul.mubr.bf16.gmra.mxu0 %v4530
        %v4616 = vpop.f32.mrf.mxu0
        %v4617 = vadd.f32 0.0, %v4616
        %v4618 = vpop.f32.mrf.mxu0
        %v4619 = vpop.f32.mrf.mxu0
        %v4620 = vadd.f32 0.0, %v4619
        %v4621 = vpop.f32.mrf.mxu0
        %4622 = vmatprep.mubr.bf16.mxu0 0
        %4623 = vmatmul.mubr.bf16.gmra.mxu0 %v4533
        %v4624 = vpop.f32.mrf.mxu0
        %v4625 = vadd.f32 0.0, %v4624
        %v4626 = vpop.f32.mrf.mxu0
        %v4627 = vpop.f32.mrf.mxu0
        %v4628 = vadd.f32 0.0, %v4627
        %v4629 = vpop.f32.mrf.mxu0
        %4630 = vmatprep.mubr.bf16.mxu0 0
        %4631 = vmatmul.mubr.bf16.gmra.mxu0 %v4536
        %v4632 = vpop.f32.mrf.mxu0
        %v4633 = vadd.f32 0.0, %v4632
        %v4634 = vpop.f32.mrf.mxu0
        %v4635 = vpop.f32.mrf.mxu0
        %v4636 = vadd.f32 0.0, %v4635
        %v4637 = vpop.f32.mrf.mxu0
        %4638 = vmatprep.mubr.bf16.mxu0 0
        %4639 = vmatmul.mubr.bf16.gmra.mxu0 %v4539
        %v4640 = vpop.f32.mrf.mxu0
        %v4641 = vadd.f32 0.0, %v4640
        %v4642 = vpop.f32.mrf.mxu0
        %v4643 = vpop.f32.mrf.mxu0
        %v4644 = vadd.f32 0.0, %v4643
        %v4645 = vpop.f32.mrf.mxu0
        %4646 = vmatprep.mubr.bf16.mxu0 0
        %4647 = vmatmul.mubr.bf16.gmra.mxu0 %v4542
        %v4648 = vpop.f32.mrf.mxu0
        %v4649 = vadd.f32 0.0, %v4648
        %v4650 = vpop.f32.mrf.mxu0
        %v4651 = vpop.f32.mrf.mxu0
        %v4652 = vadd.f32 0.0, %v4651
        %v4653 = vpop.f32.mrf.mxu0
        %4654 = vmatprep.mubr.bf16.mxu0 0
        %4655 = vmatmul.mubr.bf16.gmra.mxu0 %v4545
        %v4656 = vpop.f32.mrf.mxu0
        %v4657 = vadd.f32 0.0, %v4656
        %v4658 = vpop.f32.mrf.mxu0
        %v4659 = vpop.f32.mrf.mxu0
        %v4660 = vadd.f32 0.0, %v4659
        %v4661 = vpop.f32.mrf.mxu0
        %4662 = vmatprep.mubr.bf16.mxu0 0
        %4663 = vmatmul.mubr.bf16.gmra.mxu0 %v4548
        %v4664 = vpop.f32.mrf.mxu0
        %v4665 = vadd.f32 0.0, %v4664
        %v4666 = vpop.f32.mrf.mxu0
        %v4667 = vpop.f32.mrf.mxu0
        %v4668 = vadd.f32 0.0, %v4667
        %v4669 = vpop.f32.mrf.mxu0
        %4670 = vmatprep.mubr.bf16.mxu0 0
        %4671 = vmatmul.mubr.bf16.gmra.mxu0 %v4551
        %v4672 = vpop.f32.mrf.mxu0
        %v4673 = vadd.f32 0.0, %v4672
        %v4674 = vpop.f32.mrf.mxu0
        %v4675 = vpop.f32.mrf.mxu0
        %v4676 = vadd.f32 0.0, %v4675
        %v4677 = vpop.f32.mrf.mxu0
        %4678 = vmatprep.mubr.bf16.mxu0 0
        %4679 = vmatmul.mubr.bf16.gmra.mxu0 %v4554
        %v4680 = vpop.f32.mrf.mxu0
        %v4681 = vadd.f32 0.0, %v4680
        %v4682 = vpop.f32.mrf.mxu0
        %v4683 = vpop.f32.mrf.mxu0
        %v4684 = vadd.f32 0.0, %v4683
        %v4685 = vpop.f32.mrf.mxu0
        %4686 = vmatprep.mubr.bf16.mxu0 0
        %4687 = vmatmul.mubr.bf16.gmra.mxu0 %v4557
        %v4688 = vpop.f32.mrf.mxu0
        %v4689 = vadd.f32 0.0, %v4688
        %v4690 = vpop.f32.mrf.mxu0
        %v4691 = vpop.f32.mrf.mxu0
        %v4692 = vadd.f32 0.0, %v4691
        %v4693 = vpop.f32.mrf.mxu0
        %4694 = vmatprep.mubr.bf16.mxu0 0
        %4695 = vmatmul.mubr.bf16.gmra.mxu0 %v4560
        %v4696 = vpop.f32.mrf.mxu0
        %v4697 = vadd.f32 0.0, %v4696
        %v4698 = vpop.f32.mrf.mxu0
        %v4699 = vpop.f32.mrf.mxu0
        %v4700 = vadd.f32 0.0, %v4699
        %v4701 = vpop.f32.mrf.mxu0
        %4702 = vmatprep.mubr.bf16.mxu0 0
        %4703 = vmatmul.mubr.bf16.gmra.mxu0 %v4563
        %v4704 = vpop.f32.mrf.mxu0
        %v4705 = vadd.f32 0.0, %v4704
        %v4706 = vpop.f32.mrf.mxu0
        %v4707 = vpop.f32.mrf.mxu0
        %v4708 = vadd.f32 0.0, %v4707
        %v4709 = vpop.f32.mrf.mxu0
        %4710 = vmatprep.mubr.bf16.mxu0 0
        %4711 = vmatmul.mubr.bf16.gmra.mxu0 %v4566
        %v4712 = vpop.f32.mrf.mxu0
        %v4713 = vadd.f32 0.0, %v4712
        %v4714 = vpop.f32.mrf.mxu0
        %v4715 = vpop.f32.mrf.mxu0
        %v4716 = vadd.f32 0.0, %v4715
        %v4717 = vpop.f32.mrf.mxu0
        %4718 = vmatprep.mubr.bf16.mxu0 0
        %4719 = vmatmul.mubr.bf16.gmra.mxu0 %v4569
        %v4720 = vpop.f32.mrf.mxu0
        %v4721 = vadd.f32 0.0, %v4720
        %v4722 = vpop.f32.mrf.mxu0
        %v4723 = vpop.f32.mrf.mxu0
        %v4724 = vadd.f32 0.0, %v4723
        %v4725 = vpop.f32.mrf.mxu0
        %4726 = vmatprep.mubr.bf16.mxu0 0
        %4727 = vmatmul.mubr.bf16.gmra.mxu0 %v4572
        %v4728 = vpop.f32.mrf.mxu0
        %v4729 = vadd.f32 0.0, %v4728
        %v4730 = vpop.f32.mrf.mxu0
        %v4731 = vpop.f32.mrf.mxu0
        %v4732 = vadd.f32 0.0, %v4731
        %v4733 = vpop.f32.mrf.mxu0
        %4734 = vdwg.mxu0
        %4735 = vst [vmem:[%s530] sm:$0xff] %v4609
        %4736 = vst [vmem:[%s530 + $0x8] sm:$0xff] %v4612
        %4737 = vst [vmem:[%s530 + $0x10] sm:$0xff] %v4617
        %4738 = vst [vmem:[%s530 + $0x18] sm:$0xff] %v4620
        %4739 = vst [vmem:[%s530 + $0x20] sm:$0xff] %v4625
        %4740 = vst [vmem:[%s530 + $0x28] sm:$0xff] %v4628
        %4741 = vst [vmem:[%s530 + $0x30] sm:$0xff] %v4633
        %4742 = vst [vmem:[%s530 + $0x38] sm:$0xff] %v4636
        %4743 = vst [vmem:[%s530 + $0x40] sm:$0xff] %v4641
        %4744 = vst [vmem:[%s530 + $0x48] sm:$0xff] %v4644
        %4745 = vst [vmem:[%s530 + $0x50] sm:$0xff] %v4649
        %4746 = vst [vmem:[%s530 + $0x58] sm:$0xff] %v4652
        %4747 = vst [vmem:[%s530 + $0x60] sm:$0xff] %v4657
        %4748 = vst [vmem:[%s530 + $0x68] sm:$0xff] %v4660
        %4749 = vst [vmem:[%s530 + $0x70] sm:$0xff] %v4665
        %4750 = vst [vmem:[%s530 + $0x78] sm:$0xff] %v4668
        %4751 = vst [vmem:[%s530 + $0x80] sm:$0xff] %v4673
        %4752 = vst [vmem:[%s530 + $0x88] sm:$0xff] %v4676
        %4753 = vst [vmem:[%s530 + $0x90] sm:$0xff] %v4681
        %4754 = vst [vmem:[%s530 + $0x98] sm:$0xff] %v4684
        %4755 = vst [vmem:[%s530 + $0xa0] sm:$0xff] %v4689
        %4756 = vst [vmem:[%s530 + $0xa8] sm:$0xff] %v4692
        %4757 = vst [vmem:[%s530 + $0xb0] sm:$0xff] %v4697
        %4758 = vst [vmem:[%s530 + $0xb8] sm:$0xff] %v4700
        %4759 = vst [vmem:[%s530 + $0xc0] sm:$0xff] %v4705
        %4760 = vst [vmem:[%s530 + $0xc8] sm:$0xff] %v4708
        %4761 = vst [vmem:[%s530 + $0xd0] sm:$0xff] %v4713
        %4762 = vst [vmem:[%s530 + $0xd8] sm:$0xff] %v4716
        %4763 = vst [vmem:[%s530 + $0xe0] sm:$0xff] %v4721
        %4764 = vst [vmem:[%s530 + $0xe8] sm:$0xff] %v4724
        %4765 = vst [vmem:[%s530 + $0xf0] sm:$0xff] %v4729
        %4766 = vst [vmem:[%s530 + $0xf8] sm:$0xff] %v4732
        %s4767 = sand.u32 %s347, 1
        %s4768 = scalar_lea.sflag [#allocation5], %s4767
        %s4769 = sand.u32 %s347, 1
        %s4770 = smul.addr %s4769, 256
        %s4771 = scalar_lea.vmem [#allocation4], %s4770
        // Predicated region
        $region69: #{_lambda_.1} parent=67 // pred_check
          %p4772 = pneg %p357
        $region70: #{_lambda_.1} parent=67 // pred_check_branch
          %4774 = sbr.rel (%p4772) target = $region72
        $region71: #{_lambda_.1} parent=67 // pred_region
          #allocation7 [shape = 'u32[6]{0}', space=smem, size = 0x18, scoped, tag = 'DMA stride descriptor']
          %s4775 = smul.u32 2, %s38
          %s4777 = ssub.s32 4096, 4096
          %4778 = vsyncadd %s4768, %s4777
          %s4779 = smul.addr %s37, 128
          %s4780 = sadd.s32 %s4775, %s4779
          %s4781 = smul.addr %s4780, 128
          %s4782 = scalar_lea.hbm %s13, %s4781
          %s4784 = sshll.u32 1, 14
          %s4785 = sxor.u32 4294967295, %s4784
          %s4788 = sshll.u32 7, 18
          %s4789 = sxor.u32 4294967295, %s4788
          %s4790 = sand.u32 0, %s4789
          %s4792 = sor.u32 %s4790, 0
          %s4793 = sshll.u32 %s4771, 4
          %s4794 = int_to_ptr.vmem [resolvable:$true] %s4793
          %4800 = sst [smem:[#allocation7]] 256
          %s4801 = scalar_lea.smem [#allocation7], 1
          %4802 = sst [smem:[%s4801]] 1024
          %s4803 = scalar_lea.smem [#allocation7], 2
          %4804 = sst [smem:[%s4803]] 2
          %s4805 = scalar_lea.smem [#allocation7], 3
          %4806 = sst [smem:[%s4805]] 128
          %s4807 = scalar_lea.smem [#allocation7], 4
          %4808 = sst [smem:[%s4807]] 128
          %s4809 = scalar_lea.smem [#allocation7], 5
          %4810 = sst [smem:[%s4809]] 8
          %4812 = dma.general %s4794, 4096, %s4782, %s4768, 131072, [#allocation7], %s4792, 0
        $region72: #{_lambda_.1} parent=67 // pred_fallthru
          _
      $region68: #{_lambda_.1} parent=5 // pred_fallthru
        _
      %p4813 = scmp.le.s32.totalorder 2, %s28
      // Predicated region
      $region73: #{_lambda_.1} parent=5 // pred_check
        %p4814 = pneg %p4813
      $region74: #{_lambda_.1} parent=5 // pred_check_branch
        %4816 = sbr.rel (%p4814) target = $region76
      $region75: #{_lambda_.1} parent=5 // pred_region
        %s4817 = ssub.s32 %s28, 2
        // Predicated region
        $region77: #{_lambda_.1} parent=75 // pred_check
          %p4818 = pneg %p363
        $region78: #{_lambda_.1} parent=75 // pred_check_branch
          %4820 = sbr.rel (%p4818) target = $region80
        $region79: #{_lambda_.1} parent=75 // pred_region
          %s4821 = sand.u32 %s348, 1
          %s4822 = scalar_lea.sflag [#allocation5], %s4821
          %s4823 = sand.u32 %s348, 1
          %s4824 = smul.addr %s4823, 256
          %s4825 = scalar_lea.vmem [#allocation4], %s4824
          %4826 = dma.done %s4822, 4096
        $region80: #{_lambda_.1} parent=75 // pred_fallthru
          _
      $region76: #{_lambda_.1} parent=5 // pred_fallthru
        _
    $region6: #{_lambda_.1} parent=1 // loop_footer
      %s32 = sadd.s32 1, %s28
    $region7: #{_lambda_.1} parent=1 // loop_footer_branch
      %27 = sbr.rel target = $region3
    $region8: #{_lambda_.1} parent=1 // loop_exit
      _
    %4827 = vsyncpa [#allocation5], 1
    %s4828 = scalar_lea.sflag [#allocation5], 1
    %4829 = vsyncpa %s4828, 1

</llo_original>
